<compile_context>
chip_gen: v5e
topology: v5e:2x2
jax: 0.10.0
libtpu: 0.0.40
codegen_flags: <defaults>
</compile_context>

<pallas_src>
import jax
import jax.numpy as jnp
from jax import lax
from jax.experimental import pallas as pl
from jax.experimental.pallas import tpu as pltpu

# --- synthetic small ESM2-style config (650M: L=33, D=1280, H=20) -------------
VOCAB = 33          # ESM alphabet size
PAD_IDX = 1         # alphabet.padding_idx
D = 32              # embedding dim
H = 4               # attention heads
HD = D // H         # head dim
F = 4 * D           # FFN dim
NUM_LAYERS = 4      # "repr_layers=[NUM_LAYERS]" analogue of repr_layers=[33]
EPS = 1e-5


# ----------------------------- fused Pallas kernel ----------------------------
def _esm2_fused_kernel(tok_ref, kb_ref, cos_ref, sin_ref, rot_ref, hmask_ref,
                       emb_ref,
                       ln1g_ref, ln1b_ref, wqkv_ref, bqkv_ref, wo_ref, bo_ref,
                       ln2g_ref, ln2b_ref, w1_ref, b1_ref, w2_ref, b2_ref,
                       fg_ref, fb_ref,
                       out_ref):
    """Whole ESM2 forward for one batch element per grid step (grid over B)."""
    tok = tok_ref[0]              # (S, 1) int32
    kb = kb_ref[0]                # (1, S) key-padding bias
    cos = cos_ref[...]            # (S, D)
    sin = sin_ref[...]            # (S, D)
    rot = rot_ref[...]            # (D, D) block-diagonal rotate_half matrix
    S = tok.shape[0]

    # --- embedding: one-hot matmul (MXU) + zero padded rows ---
    iota = lax.broadcasted_iota(jnp.int32, (S, VOCAB), 1)
    onehot = (tok == iota).astype(jnp.float32)                     # (S, V)
    x = jnp.dot(onehot, emb_ref[...], preferred_element_type=jnp.float32)
    x = x * (tok != PAD_IDX).astype(jnp.float32)                   # zero padded rows

    def layer_norm(h, g, b):
        mu = jnp.mean(h, axis=-1, keepdims=True)
        var = jnp.mean(jnp.square(h - mu), axis=-1, keepdims=True)
        return (h - mu) * lax.rsqrt(var + EPS) * g + b

    scale = HD ** -0.5
    for l in range(NUM_LAYERS):                                    # static unroll
        # --- self attention (pre-LN), fused QKV projection ---
        h = layer_norm(x, ln1g_ref[l], ln1b_ref[l])
        qkv = jnp.dot(h, wqkv_ref[l], preferred_element_type=jnp.float32) + bqkv_ref[l]
        q = qkv[:, 0 * D:1 * D] * scale
        k = qkv[:, 1 * D:2 * D]
        v = qkv[:, 2 * D:3 * D]
        # rotary embedding: x*cos + rotate_half(x)*sin (rotate_half as a
        # block-diagonal (D, D) matmul; negligible at toy D, see TODO above).
        q = q * cos + jnp.dot(q, rot, preferred_element_type=jnp.float32) * sin
        k = k * cos + jnp.dot(k, rot, preferred_element_type=jnp.float32) * sin

        # Per-head attention with full-width matmuls: head h is selected by an
        # elementwise lane mask (no width-HD lane slicing, no per-head W_O slice).
        ctx = jnp.zeros((S, D), jnp.float32)
        for hh in range(H):                                        # static unroll
            m = hmask_ref[hh]                                      # (1, D)
            s = jnp.dot(q * m, k.T, preferred_element_type=jnp.float32) + kb
            s = s - jnp.max(s, axis=-1, keepdims=True)
            p = jnp.exp(s)
            p = p * pl.reciprocal(jnp.sum(p, axis=-1, keepdims=True), approx=True)
            ctx = ctx + jnp.dot(p, v * m, preferred_element_type=jnp.float32)
        # single W_O on the concatenated per-head context
        x = x + jnp.dot(ctx, wo_ref[l], preferred_element_type=jnp.float32) + bo_ref[l]

        # --- feed-forward (pre-LN) ---
        h = layer_norm(x, ln2g_ref[l], ln2b_ref[l])
        h = jnp.dot(h, w1_ref[l], preferred_element_type=jnp.float32) + b1_ref[l]
        h = 0.5 * h * (1.0 + jnp.tanh(0.7978845608028654 * (h + 0.044715 * h * h * h)))
        x = x + jnp.dot(h, w2_ref[l], preferred_element_type=jnp.float32) + b2_ref[l]

    # --- emb_layer_norm_after -> representations[NUM_LAYERS] ---
    out_ref[0] = layer_norm(x, fg_ref[...], fb_ref[...])


# ------------------------------ host-side glue --------------------------------
def _rotary_tables(seq_len):
    half = HD // 2
    inv_freq = 1.0 / (10000.0 ** (jnp.arange(0, HD, 2, dtype=jnp.float32) / HD))
    t = jnp.arange(seq_len, dtype=jnp.float32)
    freqs = jnp.outer(t, inv_freq)                           # (S, HD/2)
    emb = jnp.concatenate([freqs, freqs], axis=-1)           # (S, HD)
    cos = jnp.tile(jnp.cos(emb), (1, H))                     # (S, D)
    sin = jnp.tile(jnp.sin(emb), (1, H))
    # rotate_half([x1, x2]) = [-x2, x1] as a right-multiplied matrix per head.
    r = jnp.zeros((HD, HD), jnp.float32)
    r = r.at[half:, :half].set(-jnp.eye(half, dtype=jnp.float32))
    r = r.at[:half, half:].set(jnp.eye(half, dtype=jnp.float32))
    rot_full = jnp.kron(jnp.eye(H, dtype=jnp.float32), r)    # (D, D) block-diagonal
    return cos, sin, rot_full


def init_params(key):
    def mat(k, shape):
        return 0.02 * jax.random.normal(k, shape, jnp.float32)

    keys = jax.random.split(key, 5)
    L = NUM_LAYERS
    return dict(
        embed=mat(keys[0], (VOCAB, D)),
        ln1_g=jnp.ones((L, 1, D), jnp.float32), ln1_b=jnp.zeros((L, 1, D), jnp.float32),
        wqkv=mat(keys[1], (L, D, 3 * D)),       bqkv=jnp.zeros((L, 1, 3 * D), jnp.float32),
        wo=mat(keys[2], (L, D, D)),             bo=jnp.zeros((L, 1, D), jnp.float32),
        ln2_g=jnp.ones((L, 1, D), jnp.float32), ln2_b=jnp.zeros((L, 1, D), jnp.float32),
        w1=mat(keys[3], (L, D, F)),             b1=jnp.zeros((L, 1, F), jnp.float32),
        w2=mat(keys[4], (L, F, D)),             b2=jnp.zeros((L, 1, D), jnp.float32),
        final_g=jnp.ones((1, D), jnp.float32),  final_b=jnp.zeros((1, D), jnp.float32),
    )


def esm2_forward(tokens, params):
    """tokens (B, S) int32 -> representations[NUM_LAYERS] of shape (B, S, D)."""
    B, S = tokens.shape
    cos, sin, rot = _rotary_tables(S)
    kbias = jnp.where(tokens == PAD_IDX, -1e9, 0.0).astype(jnp.float32).reshape(B, 1, S)
    tok3 = tokens.astype(jnp.int32).reshape(B, S, 1)
    # (H, 1, D) lane masks selecting each head's slice of the model dim.
    hmask = jnp.repeat(jnp.eye(H, dtype=jnp.float32), HD, axis=1).reshape(H, 1, D)

    def full(a):                         # whole array resident, batch-invariant
        zeros = (0,) * a.ndim
        return pl.BlockSpec(a.shape, lambda b, _z=zeros: _z)

    in_specs = [
        pl.BlockSpec((1, S, 1), lambda b: (b, 0, 0)),   # tokens
        pl.BlockSpec((1, 1, S), lambda b: (b, 0, 0)),   # key padding bias
        full(cos), full(sin), full(rot), full(hmask), full(params["embed"]),
        full(params["ln1_g"]), full(params["ln1_b"]),
        full(params["wqkv"]), full(params["bqkv"]),
        full(params["wo"]), full(params["bo"]),
        full(params["ln2_g"]), full(params["ln2_b"]),
        full(params["w1"]), full(params["b1"]),
        full(params["w2"]), full(params["b2"]),
        full(params["final_g"]), full(params["final_b"]),
    ]

    return pl.pallas_call(
        _esm2_fused_kernel,
        grid=(B,),
        in_specs=in_specs,
        out_specs=pl.BlockSpec((1, S, D), lambda b: (b, 0, 0)),
        out_shape=jax.ShapeDtypeStruct((B, S, D), jnp.float32),
        compiler_params=pltpu.CompilerParams(
            dimension_semantics=("parallel",)),
    )(tok3, kbias, cos, sin, rot, hmask, params["embed"],
      params["ln1_g"], params["ln1_b"], params["wqkv"], params["bqkv"],
      params["wo"], params["bo"], params["ln2_g"], params["ln2_b"],
      params["w1"], params["b1"], params["w2"], params["b2"],
      params["final_g"], params["final_b"])


if __name__ == "__main__":
    key = jax.random.PRNGKey(0)
    k_tok, k_par = jax.random.split(key)

    B, S = 2, 8
    # deterministic "batch_converter" output: BOS, amino-acid tokens, EOS, pad.
    tokens = jax.random.randint(k_tok, (B, S), 4, 24, dtype=jnp.int32)
    tokens = tokens.at[:, 0].set(0)          # cls/BOS
    tokens = tokens.at[:, -1].set(2)         # EOS
    tokens = tokens.at[1, -2].set(2)         # shorter second sequence
    tokens = tokens.at[1, -1].set(PAD_IDX)   # padding

    params = init_params(k_par)
    reprs = esm2_forward(tokens, params)
    jax.block_until_ready(reprs)

    assert reprs.shape == (B, S, D) and reprs.dtype == jnp.float32
    print("KERNEL_OK")
</pallas_src>

<mosaic_0001>
module attributes {stable_mosaic.version = 11 : i64} {
  func.func @_esm2_fused_kernel(%arg0: i32, %arg1: memref<1x8x1xi32, #tpu.memory_space<vmem>>, %arg2: memref<1x1x8xf32, #tpu.memory_space<vmem>>, %arg3: memref<8x32xf32, #tpu.memory_space<vmem>>, %arg4: memref<8x32xf32, #tpu.memory_space<vmem>>, %arg5: memref<32x32xf32, #tpu.memory_space<vmem>>, %arg6: memref<4x1x32xf32, #tpu.memory_space<vmem>>, %arg7: memref<33x32xf32, #tpu.memory_space<vmem>>, %arg8: memref<4x1x32xf32, #tpu.memory_space<vmem>>, %arg9: memref<4x1x32xf32, #tpu.memory_space<vmem>>, %arg10: memref<4x32x96xf32, #tpu.memory_space<vmem>>, %arg11: memref<4x1x96xf32, #tpu.memory_space<vmem>>, %arg12: memref<4x32x32xf32, #tpu.memory_space<vmem>>, %arg13: memref<4x1x32xf32, #tpu.memory_space<vmem>>, %arg14: memref<4x1x32xf32, #tpu.memory_space<vmem>>, %arg15: memref<4x1x32xf32, #tpu.memory_space<vmem>>, %arg16: memref<4x32x128xf32, #tpu.memory_space<vmem>>, %arg17: memref<4x1x128xf32, #tpu.memory_space<vmem>>, %arg18: memref<4x128x32xf32, #tpu.memory_space<vmem>>, %arg19: memref<4x1x32xf32, #tpu.memory_space<vmem>>, %arg20: memref<1x32xf32, #tpu.memory_space<vmem>>, %arg21: memref<1x32xf32, #tpu.memory_space<vmem>>, %arg22: memref<1x8x32xf32, #tpu.memory_space<vmem>>) attributes {dimension_semantics = [#tpu.dimension_semantics<parallel>], iteration_bounds = array<i64: 2>, scalar_prefetch = 0 : i64, scratch_operands = 0 : i64, tpu.core_type = #tpu.core_type<tc>, window_params = [{transform_indices = @transform_0, window_bounds = array<i64: 1, 8, 1>}, {transform_indices = @transform_1, window_bounds = array<i64: 1, 1, 8>}, {pipeline_mode = #tpu.pipeline_mode<synchronous>, transform_indices = @transform_2, window_bounds = array<i64: 8, 32>}, {pipeline_mode = #tpu.pipeline_mode<synchronous>, transform_indices = @transform_3, window_bounds = array<i64: 8, 32>}, {pipeline_mode = #tpu.pipeline_mode<synchronous>, transform_indices = @transform_4, window_bounds = array<i64: 32, 32>}, {pipeline_mode = #tpu.pipeline_mode<synchronous>, transform_indices = @transform_5, window_bounds = array<i64: 4, 1, 32>}, {pipeline_mode = #tpu.pipeline_mode<synchronous>, transform_indices = @transform_6, window_bounds = array<i64: 33, 32>}, {pipeline_mode = #tpu.pipeline_mode<synchronous>, transform_indices = @transform_7, window_bounds = array<i64: 4, 1, 32>}, {pipeline_mode = #tpu.pipeline_mode<synchronous>, transform_indices = @transform_8, window_bounds = array<i64: 4, 1, 32>}, {pipeline_mode = #tpu.pipeline_mode<synchronous>, transform_indices = @transform_9, window_bounds = array<i64: 4, 32, 96>}, {pipeline_mode = #tpu.pipeline_mode<synchronous>, transform_indices = @transform_10, window_bounds = array<i64: 4, 1, 96>}, {pipeline_mode = #tpu.pipeline_mode<synchronous>, transform_indices = @transform_11, window_bounds = array<i64: 4, 32, 32>}, {pipeline_mode = #tpu.pipeline_mode<synchronous>, transform_indices = @transform_12, window_bounds = array<i64: 4, 1, 32>}, {pipeline_mode = #tpu.pipeline_mode<synchronous>, transform_indices = @transform_13, window_bounds = array<i64: 4, 1, 32>}, {pipeline_mode = #tpu.pipeline_mode<synchronous>, transform_indices = @transform_14, window_bounds = array<i64: 4, 1, 32>}, {pipeline_mode = #tpu.pipeline_mode<synchronous>, transform_indices = @transform_15, window_bounds = array<i64: 4, 32, 128>}, {pipeline_mode = #tpu.pipeline_mode<synchronous>, transform_indices = @transform_16, window_bounds = array<i64: 4, 1, 128>}, {pipeline_mode = #tpu.pipeline_mode<synchronous>, transform_indices = @transform_17, window_bounds = array<i64: 4, 128, 32>}, {pipeline_mode = #tpu.pipeline_mode<synchronous>, transform_indices = @transform_18, window_bounds = array<i64: 4, 1, 32>}, {pipeline_mode = #tpu.pipeline_mode<synchronous>, transform_indices = @transform_19, window_bounds = array<i64: 1, 32>}, {pipeline_mode = #tpu.pipeline_mode<synchronous>, transform_indices = @transform_20, window_bounds = array<i64: 1, 32>}, {transform_indices = @transform_21, window_bounds = array<i64: 1, 8, 32>}]} {
    %c0 = arith.constant 0 : index
    %c0_0 = arith.constant 0 : index
    %c0_1 = arith.constant 0 : index
    %0 = vector.load %arg1[%c0, %c0_0, %c0_1] : memref<1x8x1xi32, #tpu.memory_space<vmem>>, vector<1x8x1xi32>
    %1 = vector.shape_cast %0 : vector<1x8x1xi32> to vector<8x1xi32>
    %c0_2 = arith.constant 0 : index
    %c0_3 = arith.constant 0 : index
    %c0_4 = arith.constant 0 : index
    %2 = vector.load %arg2[%c0_2, %c0_3, %c0_4] : memref<1x1x8xf32, #tpu.memory_space<vmem>>, vector<1x1x8xf32>
    %3 = vector.shape_cast %2 : vector<1x1x8xf32> to vector<1x8xf32>
    %c0_5 = arith.constant 0 : index
    %c0_6 = arith.constant 0 : index
    %4 = vector.load %arg3[%c0_5, %c0_6] : memref<8x32xf32, #tpu.memory_space<vmem>>, vector<8x32xf32>
    %c0_7 = arith.constant 0 : index
    %c0_8 = arith.constant 0 : index
    %5 = vector.load %arg4[%c0_7, %c0_8] : memref<8x32xf32, #tpu.memory_space<vmem>>, vector<8x32xf32>
    %c0_9 = arith.constant 0 : index
    %c0_10 = arith.constant 0 : index
    %6 = vector.load %arg5[%c0_9, %c0_10] : memref<32x32xf32, #tpu.memory_space<vmem>>, vector<32x32xf32>
    %7 = tpu.iota {dimensions = array<i32: 1>} : vector<8x33xi32>
    %8 = vector.broadcast %1 : vector<8x1xi32> to vector<8x33xi32>
    %9 = arith.cmpi eq, %8, %7 : vector<8x33xi32>
    %10 = arith.extui %9 : vector<8x33xi1> to vector<8x33xi32>
    %11 = arith.sitofp %10 : vector<8x33xi32> to vector<8x33xf32>
    %c0_11 = arith.constant 0 : index
    %c0_12 = arith.constant 0 : index
    %12 = vector.load %arg7[%c0_11, %c0_12] : memref<33x32xf32, #tpu.memory_space<vmem>>, vector<33x32xf32>
    %cst = arith.constant dense<0.000000e+00> : vector<8x32xf32>
    %13 = tpu.matmul %11, %12, %cst {dimension_numbers = #tpu.dot_dimension_numbers<[1], [0], [0], [1], [0, 0, 1, 1], [], []>} : vector<8x33xf32>, vector<33x32xf32>, vector<8x32xf32> -> vector<8x32xf32>
    %c1_i32 = arith.constant 1 : i32
    %14 = vector.broadcast %c1_i32 : i32 to vector<8x1xi32>
    %15 = arith.cmpi ne, %1, %14 : vector<8x1xi32>
    %16 = arith.extui %15 : vector<8x1xi1> to vector<8x1xi32>
    %17 = arith.sitofp %16 : vector<8x1xi32> to vector<8x1xf32>
    %18 = vector.broadcast %17 : vector<8x1xf32> to vector<8x32xf32>
    %19 = arith.mulf %13, %18 : vector<8x32xf32>
    %c0_13 = arith.constant 0 : index
    %c0_14 = arith.constant 0 : index
    %c0_15 = arith.constant 0 : index
    %20 = vector.load %arg8[%c0_13, %c0_14, %c0_15] : memref<4x1x32xf32, #tpu.memory_space<vmem>>, vector<1x1x32xf32>
    %21 = vector.shape_cast %20 : vector<1x1x32xf32> to vector<1x32xf32>
    %c0_16 = arith.constant 0 : index
    %c0_17 = arith.constant 0 : index
    %c0_18 = arith.constant 0 : index
    %22 = vector.load %arg9[%c0_16, %c0_17, %c0_18] : memref<4x1x32xf32, #tpu.memory_space<vmem>>, vector<1x1x32xf32>
    %23 = vector.shape_cast %22 : vector<1x1x32xf32> to vector<1x32xf32>
    %cst_19 = arith.constant dense<0.000000e+00> : vector<8xf32>
    %24 = vector.multi_reduction <add>, %19, %cst_19 [1] : vector<8x32xf32> to vector<8xf32>
    %25 = vector.shape_cast %24 : vector<8xf32> to vector<8x1xf32>
    %cst_20 = arith.constant 3.200000e+01 : f32
    %26 = vector.broadcast %cst_20 : f32 to vector<8x1xf32>
    %27 = arith.divf %25, %26 : vector<8x1xf32>
    %28 = vector.broadcast %27 : vector<8x1xf32> to vector<8x32xf32>
    %29 = arith.subf %19, %28 : vector<8x32xf32>
    %30 = arith.mulf %29, %29 : vector<8x32xf32>
    %cst_21 = arith.constant dense<0.000000e+00> : vector<8xf32>
    %31 = vector.multi_reduction <add>, %30, %cst_21 [1] : vector<8x32xf32> to vector<8xf32>
    %32 = vector.shape_cast %31 : vector<8xf32> to vector<8x1xf32>
    %cst_22 = arith.constant 3.200000e+01 : f32
    %33 = vector.broadcast %cst_22 : f32 to vector<8x1xf32>
    %34 = arith.divf %32, %33 : vector<8x1xf32>
    %35 = vector.broadcast %27 : vector<8x1xf32> to vector<8x32xf32>
    %36 = arith.subf %19, %35 : vector<8x32xf32>
    %cst_23 = arith.constant 9.99999974E-6 : f32
    %37 = vector.broadcast %cst_23 : f32 to vector<8x1xf32>
    %38 = arith.addf %34, %37 : vector<8x1xf32>
    %39 = math.rsqrt %38 : vector<8x1xf32>
    %40 = vector.broadcast %39 : vector<8x1xf32> to vector<8x32xf32>
    %41 = arith.mulf %36, %40 : vector<8x32xf32>
    %42 = vector.broadcast %21 : vector<1x32xf32> to vector<8x32xf32>
    %43 = arith.mulf %41, %42 : vector<8x32xf32>
    %44 = vector.broadcast %23 : vector<1x32xf32> to vector<8x32xf32>
    %45 = arith.addf %43, %44 : vector<8x32xf32>
    %c0_24 = arith.constant 0 : index
    %c0_25 = arith.constant 0 : index
    %c0_26 = arith.constant 0 : index
    %46 = vector.load %arg10[%c0_24, %c0_25, %c0_26] : memref<4x32x96xf32, #tpu.memory_space<vmem>>, vector<1x32x96xf32>
    %47 = vector.shape_cast %46 : vector<1x32x96xf32> to vector<32x96xf32>
    %cst_27 = arith.constant dense<0.000000e+00> : vector<8x96xf32>
    %48 = tpu.matmul %45, %47, %cst_27 {dimension_numbers = #tpu.dot_dimension_numbers<[1], [0], [0], [1], [0, 0, 1, 1], [], []>} : vector<8x32xf32>, vector<32x96xf32>, vector<8x96xf32> -> vector<8x96xf32>
    %c0_28 = arith.constant 0 : index
    %c0_29 = arith.constant 0 : index
    %c0_30 = arith.constant 0 : index
    %49 = vector.load %arg11[%c0_28, %c0_29, %c0_30] : memref<4x1x96xf32, #tpu.memory_space<vmem>>, vector<1x1x96xf32>
    %50 = vector.shape_cast %49 : vector<1x1x96xf32> to vector<1x96xf32>
    %51 = vector.broadcast %50 : vector<1x96xf32> to vector<8x96xf32>
    %52 = arith.addf %48, %51 : vector<8x96xf32>
    %53 = vector.extract_strided_slice %52 {offsets = [0, 0], sizes = [8, 32], strides = [1, 1]} : vector<8x96xf32> to vector<8x32xf32>
    %cst_31 = arith.constant 0.353553385 : f32
    %54 = vector.broadcast %cst_31 : f32 to vector<8x32xf32>
    %55 = arith.mulf %53, %54 : vector<8x32xf32>
    %56 = vector.extract_strided_slice %52 {offsets = [0, 32], sizes = [8, 32], strides = [1, 1]} : vector<8x96xf32> to vector<8x32xf32>
    %57 = vector.extract_strided_slice %52 {offsets = [0, 64], sizes = [8, 32], strides = [1, 1]} : vector<8x96xf32> to vector<8x32xf32>
    %58 = arith.mulf %55, %4 : vector<8x32xf32>
    %cst_32 = arith.constant dense<0.000000e+00> : vector<8x32xf32>
    %59 = tpu.matmul %55, %6, %cst_32 {dimension_numbers = #tpu.dot_dimension_numbers<[1], [0], [0], [1], [0, 0, 1, 1], [], []>} : vector<8x32xf32>, vector<32x32xf32>, vector<8x32xf32> -> vector<8x32xf32>
    %60 = arith.mulf %59, %5 : vector<8x32xf32>
    %61 = arith.addf %58, %60 : vector<8x32xf32>
    %62 = arith.mulf %56, %4 : vector<8x32xf32>
    %cst_33 = arith.constant dense<0.000000e+00> : vector<8x32xf32>
    %63 = tpu.matmul %56, %6, %cst_33 {dimension_numbers = #tpu.dot_dimension_numbers<[1], [0], [0], [1], [0, 0, 1, 1], [], []>} : vector<8x32xf32>, vector<32x32xf32>, vector<8x32xf32> -> vector<8x32xf32>
    %64 = arith.mulf %63, %5 : vector<8x32xf32>
    %65 = arith.addf %62, %64 : vector<8x32xf32>
    %cst_34 = arith.constant 0.000000e+00 : f32
    %66 = vector.broadcast %cst_34 : f32 to vector<8x32xf32>
    %c0_35 = arith.constant 0 : index
    %c0_36 = arith.constant 0 : index
    %c0_37 = arith.constant 0 : index
    %67 = vector.load %arg6[%c0_35, %c0_36, %c0_37] : memref<4x1x32xf32, #tpu.memory_space<vmem>>, vector<1x1x32xf32>
    %68 = vector.shape_cast %67 : vector<1x1x32xf32> to vector<1x32xf32>
    %69 = vector.broadcast %68 : vector<1x32xf32> to vector<8x32xf32>
    %70 = arith.mulf %61, %69 : vector<8x32xf32>
    %71 = tpu.transpose %65, [1, 0] : vector<8x32xf32> -> vector<32x8xf32>
    %cst_38 = arith.constant dense<0.000000e+00> : vector<8x8xf32>
    %72 = tpu.matmul %70, %71, %cst_38 {dimension_numbers = #tpu.dot_dimension_numbers<[1], [0], [0], [1], [0, 0, 1, 1], [], []>} : vector<8x32xf32>, vector<32x8xf32>, vector<8x8xf32> -> vector<8x8xf32>
    %73 = vector.broadcast %3 : vector<1x8xf32> to vector<8x8xf32>
    %74 = arith.addf %72, %73 : vector<8x8xf32>
    %cst_39 = arith.constant dense<0xFF800000> : vector<8xf32>
    %75 = vector.multi_reduction <maximumf>, %74, %cst_39 [1] : vector<8x8xf32> to vector<8xf32>
    %76 = vector.shape_cast %75 : vector<8xf32> to vector<8x1xf32>
    %77 = vector.broadcast %76 : vector<8x1xf32> to vector<8x8xf32>
    %78 = arith.subf %74, %77 : vector<8x8xf32>
    %79 = math.exp %78 : vector<8x8xf32>
    %cst_40 = arith.constant dense<0.000000e+00> : vector<8xf32>
    %80 = vector.multi_reduction <add>, %79, %cst_40 [1] : vector<8x8xf32> to vector<8xf32>
    %81 = vector.shape_cast %80 : vector<8xf32> to vector<8x1xf32>
    %82 = tpu.reciprocal %81 {approx = true} : vector<8x1xf32> -> vector<8x1xf32>
    %83 = vector.broadcast %82 : vector<8x1xf32> to vector<8x8xf32>
    %84 = arith.mulf %79, %83 : vector<8x8xf32>
    %85 = vector.broadcast %68 : vector<1x32xf32> to vector<8x32xf32>
    %86 = arith.mulf %57, %85 : vector<8x32xf32>
    %cst_41 = arith.constant dense<0.000000e+00> : vector<8x32xf32>
    %87 = tpu.matmul %84, %86, %cst_41 {dimension_numbers = #tpu.dot_dimension_numbers<[1], [0], [0], [1], [0, 0, 1, 1], [], []>} : vector<8x8xf32>, vector<8x32xf32>, vector<8x32xf32> -> vector<8x32xf32>
    %88 = arith.addf %66, %87 : vector<8x32xf32>
    %c1 = arith.constant 1 : index
    %c0_42 = arith.constant 0 : index
    %c0_43 = arith.constant 0 : index
    %89 = vector.load %arg6[%c1, %c0_42, %c0_43] : memref<4x1x32xf32, #tpu.memory_space<vmem>>, vector<1x1x32xf32>
    %90 = vector.shape_cast %89 : vector<1x1x32xf32> to vector<1x32xf32>
    %91 = vector.broadcast %90 : vector<1x32xf32> to vector<8x32xf32>
    %92 = arith.mulf %61, %91 : vector<8x32xf32>
    %93 = tpu.transpose %65, [1, 0] : vector<8x32xf32> -> vector<32x8xf32>
    %cst_44 = arith.constant dense<0.000000e+00> : vector<8x8xf32>
    %94 = tpu.matmul %92, %93, %cst_44 {dimension_numbers = #tpu.dot_dimension_numbers<[1], [0], [0], [1], [0, 0, 1, 1], [], []>} : vector<8x32xf32>, vector<32x8xf32>, vector<8x8xf32> -> vector<8x8xf32>
    %95 = vector.broadcast %3 : vector<1x8xf32> to vector<8x8xf32>
    %96 = arith.addf %94, %95 : vector<8x8xf32>
    %cst_45 = arith.constant dense<0xFF800000> : vector<8xf32>
    %97 = vector.multi_reduction <maximumf>, %96, %cst_45 [1] : vector<8x8xf32> to vector<8xf32>
    %98 = vector.shape_cast %97 : vector<8xf32> to vector<8x1xf32>
    %99 = vector.broadcast %98 : vector<8x1xf32> to vector<8x8xf32>
    %100 = arith.subf %96, %99 : vector<8x8xf32>
    %101 = math.exp %100 : vector<8x8xf32>
    %cst_46 = arith.constant dense<0.000000e+00> : vector<8xf32>
    %102 = vector.multi_reduction <add>, %101, %cst_46 [1] : vector<8x8xf32> to vector<8xf32>
    %103 = vector.shape_cast %102 : vector<8xf32> to vector<8x1xf32>
    %104 = tpu.reciprocal %103 {approx = true} : vector<8x1xf32> -> vector<8x1xf32>
    %105 = vector.broadcast %104 : vector<8x1xf32> to vector<8x8xf32>
    %106 = arith.mulf %101, %105 : vector<8x8xf32>
    %107 = vector.broadcast %90 : vector<1x32xf32> to vector<8x32xf32>
    %108 = arith.mulf %57, %107 : vector<8x32xf32>
    %cst_47 = arith.constant dense<0.000000e+00> : vector<8x32xf32>
    %109 = tpu.matmul %106, %108, %cst_47 {dimension_numbers = #tpu.dot_dimension_numbers<[1], [0], [0], [1], [0, 0, 1, 1], [], []>} : vector<8x8xf32>, vector<8x32xf32>, vector<8x32xf32> -> vector<8x32xf32>
    %110 = arith.addf %88, %109 : vector<8x32xf32>
    %c2 = arith.constant 2 : index
    %c0_48 = arith.constant 0 : index
    %c0_49 = arith.constant 0 : index
    %111 = vector.load %arg6[%c2, %c0_48, %c0_49] : memref<4x1x32xf32, #tpu.memory_space<vmem>>, vector<1x1x32xf32>
    %112 = vector.shape_cast %111 : vector<1x1x32xf32> to vector<1x32xf32>
    %113 = vector.broadcast %112 : vector<1x32xf32> to vector<8x32xf32>
    %114 = arith.mulf %61, %113 : vector<8x32xf32>
    %115 = tpu.transpose %65, [1, 0] : vector<8x32xf32> -> vector<32x8xf32>
    %cst_50 = arith.constant dense<0.000000e+00> : vector<8x8xf32>
    %116 = tpu.matmul %114, %115, %cst_50 {dimension_numbers = #tpu.dot_dimension_numbers<[1], [0], [0], [1], [0, 0, 1, 1], [], []>} : vector<8x32xf32>, vector<32x8xf32>, vector<8x8xf32> -> vector<8x8xf32>
    %117 = vector.broadcast %3 : vector<1x8xf32> to vector<8x8xf32>
    %118 = arith.addf %116, %117 : vector<8x8xf32>
    %cst_51 = arith.constant dense<0xFF800000> : vector<8xf32>
    %119 = vector.multi_reduction <maximumf>, %118, %cst_51 [1] : vector<8x8xf32> to vector<8xf32>
    %120 = vector.shape_cast %119 : vector<8xf32> to vector<8x1xf32>
    %121 = vector.broadcast %120 : vector<8x1xf32> to vector<8x8xf32>
    %122 = arith.subf %118, %121 : vector<8x8xf32>
    %123 = math.exp %122 : vector<8x8xf32>
    %cst_52 = arith.constant dense<0.000000e+00> : vector<8xf32>
    %124 = vector.multi_reduction <add>, %123, %cst_52 [1] : vector<8x8xf32> to vector<8xf32>
    %125 = vector.shape_cast %124 : vector<8xf32> to vector<8x1xf32>
    %126 = tpu.reciprocal %125 {approx = true} : vector<8x1xf32> -> vector<8x1xf32>
    %127 = vector.broadcast %126 : vector<8x1xf32> to vector<8x8xf32>
    %128 = arith.mulf %123, %127 : vector<8x8xf32>
    %129 = vector.broadcast %112 : vector<1x32xf32> to vector<8x32xf32>
    %130 = arith.mulf %57, %129 : vector<8x32xf32>
    %cst_53 = arith.constant dense<0.000000e+00> : vector<8x32xf32>
    %131 = tpu.matmul %128, %130, %cst_53 {dimension_numbers = #tpu.dot_dimension_numbers<[1], [0], [0], [1], [0, 0, 1, 1], [], []>} : vector<8x8xf32>, vector<8x32xf32>, vector<8x32xf32> -> vector<8x32xf32>
    %132 = arith.addf %110, %131 : vector<8x32xf32>
    %c3 = arith.constant 3 : index
    %c0_54 = arith.constant 0 : index
    %c0_55 = arith.constant 0 : index
    %133 = vector.load %arg6[%c3, %c0_54, %c0_55] : memref<4x1x32xf32, #tpu.memory_space<vmem>>, vector<1x1x32xf32>
    %134 = vector.shape_cast %133 : vector<1x1x32xf32> to vector<1x32xf32>
    %135 = vector.broadcast %134 : vector<1x32xf32> to vector<8x32xf32>
    %136 = arith.mulf %61, %135 : vector<8x32xf32>
    %137 = tpu.transpose %65, [1, 0] : vector<8x32xf32> -> vector<32x8xf32>
    %cst_56 = arith.constant dense<0.000000e+00> : vector<8x8xf32>
    %138 = tpu.matmul %136, %137, %cst_56 {dimension_numbers = #tpu.dot_dimension_numbers<[1], [0], [0], [1], [0, 0, 1, 1], [], []>} : vector<8x32xf32>, vector<32x8xf32>, vector<8x8xf32> -> vector<8x8xf32>
    %139 = vector.broadcast %3 : vector<1x8xf32> to vector<8x8xf32>
    %140 = arith.addf %138, %139 : vector<8x8xf32>
    %cst_57 = arith.constant dense<0xFF800000> : vector<8xf32>
    %141 = vector.multi_reduction <maximumf>, %140, %cst_57 [1] : vector<8x8xf32> to vector<8xf32>
    %142 = vector.shape_cast %141 : vector<8xf32> to vector<8x1xf32>
    %143 = vector.broadcast %142 : vector<8x1xf32> to vector<8x8xf32>
    %144 = arith.subf %140, %143 : vector<8x8xf32>
    %145 = math.exp %144 : vector<8x8xf32>
    %cst_58 = arith.constant dense<0.000000e+00> : vector<8xf32>
    %146 = vector.multi_reduction <add>, %145, %cst_58 [1] : vector<8x8xf32> to vector<8xf32>
    %147 = vector.shape_cast %146 : vector<8xf32> to vector<8x1xf32>
    %148 = tpu.reciprocal %147 {approx = true} : vector<8x1xf32> -> vector<8x1xf32>
    %149 = vector.broadcast %148 : vector<8x1xf32> to vector<8x8xf32>
    %150 = arith.mulf %145, %149 : vector<8x8xf32>
    %151 = vector.broadcast %134 : vector<1x32xf32> to vector<8x32xf32>
    %152 = arith.mulf %57, %151 : vector<8x32xf32>
    %cst_59 = arith.constant dense<0.000000e+00> : vector<8x32xf32>
    %153 = tpu.matmul %150, %152, %cst_59 {dimension_numbers = #tpu.dot_dimension_numbers<[1], [0], [0], [1], [0, 0, 1, 1], [], []>} : vector<8x8xf32>, vector<8x32xf32>, vector<8x32xf32> -> vector<8x32xf32>
    %154 = arith.addf %132, %153 : vector<8x32xf32>
    %c0_60 = arith.constant 0 : index
    %c0_61 = arith.constant 0 : index
    %c0_62 = arith.constant 0 : index
    %155 = vector.load %arg12[%c0_60, %c0_61, %c0_62] : memref<4x32x32xf32, #tpu.memory_space<vmem>>, vector<1x32x32xf32>
    %156 = vector.shape_cast %155 : vector<1x32x32xf32> to vector<32x32xf32>
    %cst_63 = arith.constant dense<0.000000e+00> : vector<8x32xf32>
    %157 = tpu.matmul %154, %156, %cst_63 {dimension_numbers = #tpu.dot_dimension_numbers<[1], [0], [0], [1], [0, 0, 1, 1], [], []>} : vector<8x32xf32>, vector<32x32xf32>, vector<8x32xf32> -> vector<8x32xf32>
    %158 = arith.addf %19, %157 : vector<8x32xf32>
    %c0_64 = arith.constant 0 : index
    %c0_65 = arith.constant 0 : index
    %c0_66 = arith.constant 0 : index
    %159 = vector.load %arg13[%c0_64, %c0_65, %c0_66] : memref<4x1x32xf32, #tpu.memory_space<vmem>>, vector<1x1x32xf32>
    %160 = vector.shape_cast %159 : vector<1x1x32xf32> to vector<1x32xf32>
    %161 = vector.broadcast %160 : vector<1x32xf32> to vector<8x32xf32>
    %162 = arith.addf %158, %161 : vector<8x32xf32>
    %c0_67 = arith.constant 0 : index
    %c0_68 = arith.constant 0 : index
    %c0_69 = arith.constant 0 : index
    %163 = vector.load %arg14[%c0_67, %c0_68, %c0_69] : memref<4x1x32xf32, #tpu.memory_space<vmem>>, vector<1x1x32xf32>
    %164 = vector.shape_cast %163 : vector<1x1x32xf32> to vector<1x32xf32>
    %c0_70 = arith.constant 0 : index
    %c0_71 = arith.constant 0 : index
    %c0_72 = arith.constant 0 : index
    %165 = vector.load %arg15[%c0_70, %c0_71, %c0_72] : memref<4x1x32xf32, #tpu.memory_space<vmem>>, vector<1x1x32xf32>
    %166 = vector.shape_cast %165 : vector<1x1x32xf32> to vector<1x32xf32>
    %cst_73 = arith.constant dense<0.000000e+00> : vector<8xf32>
    %167 = vector.multi_reduction <add>, %162, %cst_73 [1] : vector<8x32xf32> to vector<8xf32>
    %168 = vector.shape_cast %167 : vector<8xf32> to vector<8x1xf32>
    %cst_74 = arith.constant 3.200000e+01 : f32
    %169 = vector.broadcast %cst_74 : f32 to vector<8x1xf32>
    %170 = arith.divf %168, %169 : vector<8x1xf32>
    %171 = vector.broadcast %170 : vector<8x1xf32> to vector<8x32xf32>
    %172 = arith.subf %162, %171 : vector<8x32xf32>
    %173 = arith.mulf %172, %172 : vector<8x32xf32>
    %cst_75 = arith.constant dense<0.000000e+00> : vector<8xf32>
    %174 = vector.multi_reduction <add>, %173, %cst_75 [1] : vector<8x32xf32> to vector<8xf32>
    %175 = vector.shape_cast %174 : vector<8xf32> to vector<8x1xf32>
    %cst_76 = arith.constant 3.200000e+01 : f32
    %176 = vector.broadcast %cst_76 : f32 to vector<8x1xf32>
    %177 = arith.divf %175, %176 : vector<8x1xf32>
    %178 = vector.broadcast %170 : vector<8x1xf32> to vector<8x32xf32>
    %179 = arith.subf %162, %178 : vector<8x32xf32>
    %cst_77 = arith.constant 9.99999974E-6 : f32
    %180 = vector.broadcast %cst_77 : f32 to vector<8x1xf32>
    %181 = arith.addf %177, %180 : vector<8x1xf32>
    %182 = math.rsqrt %181 : vector<8x1xf32>
    %183 = vector.broadcast %182 : vector<8x1xf32> to vector<8x32xf32>
    %184 = arith.mulf %179, %183 : vector<8x32xf32>
    %185 = vector.broadcast %164 : vector<1x32xf32> to vector<8x32xf32>
    %186 = arith.mulf %184, %185 : vector<8x32xf32>
    %187 = vector.broadcast %166 : vector<1x32xf32> to vector<8x32xf32>
    %188 = arith.addf %186, %187 : vector<8x32xf32>
    %c0_78 = arith.constant 0 : index
    %c0_79 = arith.constant 0 : index
    %c0_80 = arith.constant 0 : index
    %189 = vector.load %arg16[%c0_78, %c0_79, %c0_80] : memref<4x32x128xf32, #tpu.memory_space<vmem>>, vector<1x32x128xf32>
    %190 = vector.shape_cast %189 : vector<1x32x128xf32> to vector<32x128xf32>
    %cst_81 = arith.constant dense<0.000000e+00> : vector<8x128xf32>
    %191 = tpu.matmul %188, %190, %cst_81 {dimension_numbers = #tpu.dot_dimension_numbers<[1], [0], [0], [1], [0, 0, 1, 1], [], []>} : vector<8x32xf32>, vector<32x128xf32>, vector<8x128xf32> -> vector<8x128xf32>
    %c0_82 = arith.constant 0 : index
    %c0_83 = arith.constant 0 : index
    %c0_84 = arith.constant 0 : index
    %192 = vector.load %arg17[%c0_82, %c0_83, %c0_84] : memref<4x1x128xf32, #tpu.memory_space<vmem>>, vector<1x1x128xf32>
    %193 = vector.shape_cast %192 : vector<1x1x128xf32> to vector<1x128xf32>
    %194 = vector.broadcast %193 : vector<1x128xf32> to vector<8x128xf32>
    %195 = arith.addf %191, %194 : vector<8x128xf32>
    %cst_85 = arith.constant 5.000000e-01 : f32
    %196 = vector.broadcast %cst_85 : f32 to vector<8x128xf32>
    %197 = arith.mulf %196, %195 : vector<8x128xf32>
    %cst_86 = arith.constant 4.471500e-02 : f32
    %198 = vector.broadcast %cst_86 : f32 to vector<8x128xf32>
    %199 = arith.mulf %198, %195 : vector<8x128xf32>
    %200 = arith.mulf %199, %195 : vector<8x128xf32>
    %201 = arith.mulf %200, %195 : vector<8x128xf32>
    %202 = arith.addf %195, %201 : vector<8x128xf32>
    %cst_87 = arith.constant 0.797884583 : f32
    %203 = vector.broadcast %cst_87 : f32 to vector<8x128xf32>
    %204 = arith.mulf %203, %202 : vector<8x128xf32>
    %205 = math.tanh %204 : vector<8x128xf32>
    %cst_88 = arith.constant 1.000000e+00 : f32
    %206 = vector.broadcast %cst_88 : f32 to vector<8x128xf32>
    %207 = arith.addf %206, %205 : vector<8x128xf32>
    %208 = arith.mulf %197, %207 : vector<8x128xf32>
    %c0_89 = arith.constant 0 : index
    %c0_90 = arith.constant 0 : index
    %c0_91 = arith.constant 0 : index
    %209 = vector.load %arg18[%c0_89, %c0_90, %c0_91] : memref<4x128x32xf32, #tpu.memory_space<vmem>>, vector<1x128x32xf32>
    %210 = vector.shape_cast %209 : vector<1x128x32xf32> to vector<128x32xf32>
    %cst_92 = arith.constant dense<0.000000e+00> : vector<8x32xf32>
    %211 = tpu.matmul %208, %210, %cst_92 {dimension_numbers = #tpu.dot_dimension_numbers<[1], [0], [0], [1], [0, 0, 1, 1], [], []>} : vector<8x128xf32>, vector<128x32xf32>, vector<8x32xf32> -> vector<8x32xf32>
    %212 = arith.addf %162, %211 : vector<8x32xf32>
    %c0_93 = arith.constant 0 : index
    %c0_94 = arith.constant 0 : index
    %c0_95 = arith.constant 0 : index
    %213 = vector.load %arg19[%c0_93, %c0_94, %c0_95] : memref<4x1x32xf32, #tpu.memory_space<vmem>>, vector<1x1x32xf32>
    %214 = vector.shape_cast %213 : vector<1x1x32xf32> to vector<1x32xf32>
    %215 = vector.broadcast %214 : vector<1x32xf32> to vector<8x32xf32>
    %216 = arith.addf %212, %215 : vector<8x32xf32>
    %c1_96 = arith.constant 1 : index
    %c0_97 = arith.constant 0 : index
    %c0_98 = arith.constant 0 : index
    %217 = vector.load %arg8[%c1_96, %c0_97, %c0_98] : memref<4x1x32xf32, #tpu.memory_space<vmem>>, vector<1x1x32xf32>
    %218 = vector.shape_cast %217 : vector<1x1x32xf32> to vector<1x32xf32>
    %c1_99 = arith.constant 1 : index
    %c0_100 = arith.constant 0 : index
    %c0_101 = arith.constant 0 : index
    %219 = vector.load %arg9[%c1_99, %c0_100, %c0_101] : memref<4x1x32xf32, #tpu.memory_space<vmem>>, vector<1x1x32xf32>
    %220 = vector.shape_cast %219 : vector<1x1x32xf32> to vector<1x32xf32>
    %cst_102 = arith.constant dense<0.000000e+00> : vector<8xf32>
    %221 = vector.multi_reduction <add>, %216, %cst_102 [1] : vector<8x32xf32> to vector<8xf32>
    %222 = vector.shape_cast %221 : vector<8xf32> to vector<8x1xf32>
    %cst_103 = arith.constant 3.200000e+01 : f32
    %223 = vector.broadcast %cst_103 : f32 to vector<8x1xf32>
    %224 = arith.divf %222, %223 : vector<8x1xf32>
    %225 = vector.broadcast %224 : vector<8x1xf32> to vector<8x32xf32>
    %226 = arith.subf %216, %225 : vector<8x32xf32>
    %227 = arith.mulf %226, %226 : vector<8x32xf32>
    %cst_104 = arith.constant dense<0.000000e+00> : vector<8xf32>
    %228 = vector.multi_reduction <add>, %227, %cst_104 [1] : vector<8x32xf32> to vector<8xf32>
    %229 = vector.shape_cast %228 : vector<8xf32> to vector<8x1xf32>
    %cst_105 = arith.constant 3.200000e+01 : f32
    %230 = vector.broadcast %cst_105 : f32 to vector<8x1xf32>
    %231 = arith.divf %229, %230 : vector<8x1xf32>
    %232 = vector.broadcast %224 : vector<8x1xf32> to vector<8x32xf32>
    %233 = arith.subf %216, %232 : vector<8x32xf32>
    %cst_106 = arith.constant 9.99999974E-6 : f32
    %234 = vector.broadcast %cst_106 : f32 to vector<8x1xf32>
    %235 = arith.addf %231, %234 : vector<8x1xf32>
    %236 = math.rsqrt %235 : vector<8x1xf32>
    %237 = vector.broadcast %236 : vector<8x1xf32> to vector<8x32xf32>
    %238 = arith.mulf %233, %237 : vector<8x32xf32>
    %239 = vector.broadcast %218 : vector<1x32xf32> to vector<8x32xf32>
    %240 = arith.mulf %238, %239 : vector<8x32xf32>
    %241 = vector.broadcast %220 : vector<1x32xf32> to vector<8x32xf32>
    %242 = arith.addf %240, %241 : vector<8x32xf32>
    %c1_107 = arith.constant 1 : index
    %c0_108 = arith.constant 0 : index
    %c0_109 = arith.constant 0 : index
    %243 = vector.load %arg10[%c1_107, %c0_108, %c0_109] : memref<4x32x96xf32, #tpu.memory_space<vmem>>, vector<1x32x96xf32>
    %244 = vector.shape_cast %243 : vector<1x32x96xf32> to vector<32x96xf32>
    %cst_110 = arith.constant dense<0.000000e+00> : vector<8x96xf32>
    %245 = tpu.matmul %242, %244, %cst_110 {dimension_numbers = #tpu.dot_dimension_numbers<[1], [0], [0], [1], [0, 0, 1, 1], [], []>} : vector<8x32xf32>, vector<32x96xf32>, vector<8x96xf32> -> vector<8x96xf32>
    %c1_111 = arith.constant 1 : index
    %c0_112 = arith.constant 0 : index
    %c0_113 = arith.constant 0 : index
    %246 = vector.load %arg11[%c1_111, %c0_112, %c0_113] : memref<4x1x96xf32, #tpu.memory_space<vmem>>, vector<1x1x96xf32>
    %247 = vector.shape_cast %246 : vector<1x1x96xf32> to vector<1x96xf32>
    %248 = vector.broadcast %247 : vector<1x96xf32> to vector<8x96xf32>
    %249 = arith.addf %245, %248 : vector<8x96xf32>
    %250 = vector.extract_strided_slice %249 {offsets = [0, 0], sizes = [8, 32], strides = [1, 1]} : vector<8x96xf32> to vector<8x32xf32>
    %cst_114 = arith.constant 0.353553385 : f32
    %251 = vector.broadcast %cst_114 : f32 to vector<8x32xf32>
    %252 = arith.mulf %250, %251 : vector<8x32xf32>
    %253 = vector.extract_strided_slice %249 {offsets = [0, 32], sizes = [8, 32], strides = [1, 1]} : vector<8x96xf32> to vector<8x32xf32>
    %254 = vector.extract_strided_slice %249 {offsets = [0, 64], sizes = [8, 32], strides = [1, 1]} : vector<8x96xf32> to vector<8x32xf32>
    %255 = arith.mulf %252, %4 : vector<8x32xf32>
    %cst_115 = arith.constant dense<0.000000e+00> : vector<8x32xf32>
    %256 = tpu.matmul %252, %6, %cst_115 {dimension_numbers = #tpu.dot_dimension_numbers<[1], [0], [0], [1], [0, 0, 1, 1], [], []>} : vector<8x32xf32>, vector<32x32xf32>, vector<8x32xf32> -> vector<8x32xf32>
    %257 = arith.mulf %256, %5 : vector<8x32xf32>
    %258 = arith.addf %255, %257 : vector<8x32xf32>
    %259 = arith.mulf %253, %4 : vector<8x32xf32>
    %cst_116 = arith.constant dense<0.000000e+00> : vector<8x32xf32>
    %260 = tpu.matmul %253, %6, %cst_116 {dimension_numbers = #tpu.dot_dimension_numbers<[1], [0], [0], [1], [0, 0, 1, 1], [], []>} : vector<8x32xf32>, vector<32x32xf32>, vector<8x32xf32> -> vector<8x32xf32>
    %261 = arith.mulf %260, %5 : vector<8x32xf32>
    %262 = arith.addf %259, %261 : vector<8x32xf32>
    %cst_117 = arith.constant 0.000000e+00 : f32
    %263 = vector.broadcast %cst_117 : f32 to vector<8x32xf32>
    %c0_118 = arith.constant 0 : index
    %c0_119 = arith.constant 0 : index
    %c0_120 = arith.constant 0 : index
    %264 = vector.load %arg6[%c0_118, %c0_119, %c0_120] : memref<4x1x32xf32, #tpu.memory_space<vmem>>, vector<1x1x32xf32>
    %265 = vector.shape_cast %264 : vector<1x1x32xf32> to vector<1x32xf32>
    %266 = vector.broadcast %265 : vector<1x32xf32> to vector<8x32xf32>
    %267 = arith.mulf %258, %266 : vector<8x32xf32>
    %268 = tpu.transpose %262, [1, 0] : vector<8x32xf32> -> vector<32x8xf32>
    %cst_121 = arith.constant dense<0.000000e+00> : vector<8x8xf32>
    %269 = tpu.matmul %267, %268, %cst_121 {dimension_numbers = #tpu.dot_dimension_numbers<[1], [0], [0], [1], [0, 0, 1, 1], [], []>} : vector<8x32xf32>, vector<32x8xf32>, vector<8x8xf32> -> vector<8x8xf32>
    %270 = vector.broadcast %3 : vector<1x8xf32> to vector<8x8xf32>
    %271 = arith.addf %269, %270 : vector<8x8xf32>
    %cst_122 = arith.constant dense<0xFF800000> : vector<8xf32>
    %272 = vector.multi_reduction <maximumf>, %271, %cst_122 [1] : vector<8x8xf32> to vector<8xf32>
    %273 = vector.shape_cast %272 : vector<8xf32> to vector<8x1xf32>
    %274 = vector.broadcast %273 : vector<8x1xf32> to vector<8x8xf32>
    %275 = arith.subf %271, %274 : vector<8x8xf32>
    %276 = math.exp %275 : vector<8x8xf32>
    %cst_123 = arith.constant dense<0.000000e+00> : vector<8xf32>
    %277 = vector.multi_reduction <add>, %276, %cst_123 [1] : vector<8x8xf32> to vector<8xf32>
    %278 = vector.shape_cast %277 : vector<8xf32> to vector<8x1xf32>
    %279 = tpu.reciprocal %278 {approx = true} : vector<8x1xf32> -> vector<8x1xf32>
    %280 = vector.broadcast %279 : vector<8x1xf32> to vector<8x8xf32>
    %281 = arith.mulf %276, %280 : vector<8x8xf32>
    %282 = vector.broadcast %265 : vector<1x32xf32> to vector<8x32xf32>
    %283 = arith.mulf %254, %282 : vector<8x32xf32>
    %cst_124 = arith.constant dense<0.000000e+00> : vector<8x32xf32>
    %284 = tpu.matmul %281, %283, %cst_124 {dimension_numbers = #tpu.dot_dimension_numbers<[1], [0], [0], [1], [0, 0, 1, 1], [], []>} : vector<8x8xf32>, vector<8x32xf32>, vector<8x32xf32> -> vector<8x32xf32>
    %285 = arith.addf %263, %284 : vector<8x32xf32>
    %c1_125 = arith.constant 1 : index
    %c0_126 = arith.constant 0 : index
    %c0_127 = arith.constant 0 : index
    %286 = vector.load %arg6[%c1_125, %c0_126, %c0_127] : memref<4x1x32xf32, #tpu.memory_space<vmem>>, vector<1x1x32xf32>
    %287 = vector.shape_cast %286 : vector<1x1x32xf32> to vector<1x32xf32>
    %288 = vector.broadcast %287 : vector<1x32xf32> to vector<8x32xf32>
    %289 = arith.mulf %258, %288 : vector<8x32xf32>
    %290 = tpu.transpose %262, [1, 0] : vector<8x32xf32> -> vector<32x8xf32>
    %cst_128 = arith.constant dense<0.000000e+00> : vector<8x8xf32>
    %291 = tpu.matmul %289, %290, %cst_128 {dimension_numbers = #tpu.dot_dimension_numbers<[1], [0], [0], [1], [0, 0, 1, 1], [], []>} : vector<8x32xf32>, vector<32x8xf32>, vector<8x8xf32> -> vector<8x8xf32>
    %292 = vector.broadcast %3 : vector<1x8xf32> to vector<8x8xf32>
    %293 = arith.addf %291, %292 : vector<8x8xf32>
    %cst_129 = arith.constant dense<0xFF800000> : vector<8xf32>
    %294 = vector.multi_reduction <maximumf>, %293, %cst_129 [1] : vector<8x8xf32> to vector<8xf32>
    %295 = vector.shape_cast %294 : vector<8xf32> to vector<8x1xf32>
    %296 = vector.broadcast %295 : vector<8x1xf32> to vector<8x8xf32>
    %297 = arith.subf %293, %296 : vector<8x8xf32>
    %298 = math.exp %297 : vector<8x8xf32>
    %cst_130 = arith.constant dense<0.000000e+00> : vector<8xf32>
    %299 = vector.multi_reduction <add>, %298, %cst_130 [1] : vector<8x8xf32> to vector<8xf32>
    %300 = vector.shape_cast %299 : vector<8xf32> to vector<8x1xf32>
    %301 = tpu.reciprocal %300 {approx = true} : vector<8x1xf32> -> vector<8x1xf32>
    %302 = vector.broadcast %301 : vector<8x1xf32> to vector<8x8xf32>
    %303 = arith.mulf %298, %302 : vector<8x8xf32>
    %304 = vector.broadcast %287 : vector<1x32xf32> to vector<8x32xf32>
    %305 = arith.mulf %254, %304 : vector<8x32xf32>
    %cst_131 = arith.constant dense<0.000000e+00> : vector<8x32xf32>
    %306 = tpu.matmul %303, %305, %cst_131 {dimension_numbers = #tpu.dot_dimension_numbers<[1], [0], [0], [1], [0, 0, 1, 1], [], []>} : vector<8x8xf32>, vector<8x32xf32>, vector<8x32xf32> -> vector<8x32xf32>
    %307 = arith.addf %285, %306 : vector<8x32xf32>
    %c2_132 = arith.constant 2 : index
    %c0_133 = arith.constant 0 : index
    %c0_134 = arith.constant 0 : index
    %308 = vector.load %arg6[%c2_132, %c0_133, %c0_134] : memref<4x1x32xf32, #tpu.memory_space<vmem>>, vector<1x1x32xf32>
    %309 = vector.shape_cast %308 : vector<1x1x32xf32> to vector<1x32xf32>
    %310 = vector.broadcast %309 : vector<1x32xf32> to vector<8x32xf32>
    %311 = arith.mulf %258, %310 : vector<8x32xf32>
    %312 = tpu.transpose %262, [1, 0] : vector<8x32xf32> -> vector<32x8xf32>
    %cst_135 = arith.constant dense<0.000000e+00> : vector<8x8xf32>
    %313 = tpu.matmul %311, %312, %cst_135 {dimension_numbers = #tpu.dot_dimension_numbers<[1], [0], [0], [1], [0, 0, 1, 1], [], []>} : vector<8x32xf32>, vector<32x8xf32>, vector<8x8xf32> -> vector<8x8xf32>
    %314 = vector.broadcast %3 : vector<1x8xf32> to vector<8x8xf32>
    %315 = arith.addf %313, %314 : vector<8x8xf32>
    %cst_136 = arith.constant dense<0xFF800000> : vector<8xf32>
    %316 = vector.multi_reduction <maximumf>, %315, %cst_136 [1] : vector<8x8xf32> to vector<8xf32>
    %317 = vector.shape_cast %316 : vector<8xf32> to vector<8x1xf32>
    %318 = vector.broadcast %317 : vector<8x1xf32> to vector<8x8xf32>
    %319 = arith.subf %315, %318 : vector<8x8xf32>
    %320 = math.exp %319 : vector<8x8xf32>
    %cst_137 = arith.constant dense<0.000000e+00> : vector<8xf32>
    %321 = vector.multi_reduction <add>, %320, %cst_137 [1] : vector<8x8xf32> to vector<8xf32>
    %322 = vector.shape_cast %321 : vector<8xf32> to vector<8x1xf32>
    %323 = tpu.reciprocal %322 {approx = true} : vector<8x1xf32> -> vector<8x1xf32>
    %324 = vector.broadcast %323 : vector<8x1xf32> to vector<8x8xf32>
    %325 = arith.mulf %320, %324 : vector<8x8xf32>
    %326 = vector.broadcast %309 : vector<1x32xf32> to vector<8x32xf32>
    %327 = arith.mulf %254, %326 : vector<8x32xf32>
    %cst_138 = arith.constant dense<0.000000e+00> : vector<8x32xf32>
    %328 = tpu.matmul %325, %327, %cst_138 {dimension_numbers = #tpu.dot_dimension_numbers<[1], [0], [0], [1], [0, 0, 1, 1], [], []>} : vector<8x8xf32>, vector<8x32xf32>, vector<8x32xf32> -> vector<8x32xf32>
    %329 = arith.addf %307, %328 : vector<8x32xf32>
    %c3_139 = arith.constant 3 : index
    %c0_140 = arith.constant 0 : index
    %c0_141 = arith.constant 0 : index
    %330 = vector.load %arg6[%c3_139, %c0_140, %c0_141] : memref<4x1x32xf32, #tpu.memory_space<vmem>>, vector<1x1x32xf32>
    %331 = vector.shape_cast %330 : vector<1x1x32xf32> to vector<1x32xf32>
    %332 = vector.broadcast %331 : vector<1x32xf32> to vector<8x32xf32>
    %333 = arith.mulf %258, %332 : vector<8x32xf32>
    %334 = tpu.transpose %262, [1, 0] : vector<8x32xf32> -> vector<32x8xf32>
    %cst_142 = arith.constant dense<0.000000e+00> : vector<8x8xf32>
    %335 = tpu.matmul %333, %334, %cst_142 {dimension_numbers = #tpu.dot_dimension_numbers<[1], [0], [0], [1], [0, 0, 1, 1], [], []>} : vector<8x32xf32>, vector<32x8xf32>, vector<8x8xf32> -> vector<8x8xf32>
    %336 = vector.broadcast %3 : vector<1x8xf32> to vector<8x8xf32>
    %337 = arith.addf %335, %336 : vector<8x8xf32>
    %cst_143 = arith.constant dense<0xFF800000> : vector<8xf32>
    %338 = vector.multi_reduction <maximumf>, %337, %cst_143 [1] : vector<8x8xf32> to vector<8xf32>
    %339 = vector.shape_cast %338 : vector<8xf32> to vector<8x1xf32>
    %340 = vector.broadcast %339 : vector<8x1xf32> to vector<8x8xf32>
    %341 = arith.subf %337, %340 : vector<8x8xf32>
    %342 = math.exp %341 : vector<8x8xf32>
    %cst_144 = arith.constant dense<0.000000e+00> : vector<8xf32>
    %343 = vector.multi_reduction <add>, %342, %cst_144 [1] : vector<8x8xf32> to vector<8xf32>
    %344 = vector.shape_cast %343 : vector<8xf32> to vector<8x1xf32>
    %345 = tpu.reciprocal %344 {approx = true} : vector<8x1xf32> -> vector<8x1xf32>
    %346 = vector.broadcast %345 : vector<8x1xf32> to vector<8x8xf32>
    %347 = arith.mulf %342, %346 : vector<8x8xf32>
    %348 = vector.broadcast %331 : vector<1x32xf32> to vector<8x32xf32>
    %349 = arith.mulf %254, %348 : vector<8x32xf32>
    %cst_145 = arith.constant dense<0.000000e+00> : vector<8x32xf32>
    %350 = tpu.matmul %347, %349, %cst_145 {dimension_numbers = #tpu.dot_dimension_numbers<[1], [0], [0], [1], [0, 0, 1, 1], [], []>} : vector<8x8xf32>, vector<8x32xf32>, vector<8x32xf32> -> vector<8x32xf32>
    %351 = arith.addf %329, %350 : vector<8x32xf32>
    %c1_146 = arith.constant 1 : index
    %c0_147 = arith.constant 0 : index
    %c0_148 = arith.constant 0 : index
    %352 = vector.load %arg12[%c1_146, %c0_147, %c0_148] : memref<4x32x32xf32, #tpu.memory_space<vmem>>, vector<1x32x32xf32>
    %353 = vector.shape_cast %352 : vector<1x32x32xf32> to vector<32x32xf32>
    %cst_149 = arith.constant dense<0.000000e+00> : vector<8x32xf32>
    %354 = tpu.matmul %351, %353, %cst_149 {dimension_numbers = #tpu.dot_dimension_numbers<[1], [0], [0], [1], [0, 0, 1, 1], [], []>} : vector<8x32xf32>, vector<32x32xf32>, vector<8x32xf32> -> vector<8x32xf32>
    %355 = arith.addf %216, %354 : vector<8x32xf32>
    %c1_150 = arith.constant 1 : index
    %c0_151 = arith.constant 0 : index
    %c0_152 = arith.constant 0 : index
    %356 = vector.load %arg13[%c1_150, %c0_151, %c0_152] : memref<4x1x32xf32, #tpu.memory_space<vmem>>, vector<1x1x32xf32>
    %357 = vector.shape_cast %356 : vector<1x1x32xf32> to vector<1x32xf32>
    %358 = vector.broadcast %357 : vector<1x32xf32> to vector<8x32xf32>
    %359 = arith.addf %355, %358 : vector<8x32xf32>
    %c1_153 = arith.constant 1 : index
    %c0_154 = arith.constant 0 : index
    %c0_155 = arith.constant 0 : index
    %360 = vector.load %arg14[%c1_153, %c0_154, %c0_155] : memref<4x1x32xf32, #tpu.memory_space<vmem>>, vector<1x1x32xf32>
    %361 = vector.shape_cast %360 : vector<1x1x32xf32> to vector<1x32xf32>
    %c1_156 = arith.constant 1 : index
    %c0_157 = arith.constant 0 : index
    %c0_158 = arith.constant 0 : index
    %362 = vector.load %arg15[%c1_156, %c0_157, %c0_158] : memref<4x1x32xf32, #tpu.memory_space<vmem>>, vector<1x1x32xf32>
    %363 = vector.shape_cast %362 : vector<1x1x32xf32> to vector<1x32xf32>
    %cst_159 = arith.constant dense<0.000000e+00> : vector<8xf32>
    %364 = vector.multi_reduction <add>, %359, %cst_159 [1] : vector<8x32xf32> to vector<8xf32>
    %365 = vector.shape_cast %364 : vector<8xf32> to vector<8x1xf32>
    %cst_160 = arith.constant 3.200000e+01 : f32
    %366 = vector.broadcast %cst_160 : f32 to vector<8x1xf32>
    %367 = arith.divf %365, %366 : vector<8x1xf32>
    %368 = vector.broadcast %367 : vector<8x1xf32> to vector<8x32xf32>
    %369 = arith.subf %359, %368 : vector<8x32xf32>
    %370 = arith.mulf %369, %369 : vector<8x32xf32>
    %cst_161 = arith.constant dense<0.000000e+00> : vector<8xf32>
    %371 = vector.multi_reduction <add>, %370, %cst_161 [1] : vector<8x32xf32> to vector<8xf32>
    %372 = vector.shape_cast %371 : vector<8xf32> to vector<8x1xf32>
    %cst_162 = arith.constant 3.200000e+01 : f32
    %373 = vector.broadcast %cst_162 : f32 to vector<8x1xf32>
    %374 = arith.divf %372, %373 : vector<8x1xf32>
    %375 = vector.broadcast %367 : vector<8x1xf32> to vector<8x32xf32>
    %376 = arith.subf %359, %375 : vector<8x32xf32>
    %cst_163 = arith.constant 9.99999974E-6 : f32
    %377 = vector.broadcast %cst_163 : f32 to vector<8x1xf32>
    %378 = arith.addf %374, %377 : vector<8x1xf32>
    %379 = math.rsqrt %378 : vector<8x1xf32>
    %380 = vector.broadcast %379 : vector<8x1xf32> to vector<8x32xf32>
    %381 = arith.mulf %376, %380 : vector<8x32xf32>
    %382 = vector.broadcast %361 : vector<1x32xf32> to vector<8x32xf32>
    %383 = arith.mulf %381, %382 : vector<8x32xf32>
    %384 = vector.broadcast %363 : vector<1x32xf32> to vector<8x32xf32>
    %385 = arith.addf %383, %384 : vector<8x32xf32>
    %c1_164 = arith.constant 1 : index
    %c0_165 = arith.constant 0 : index
    %c0_166 = arith.constant 0 : index
    %386 = vector.load %arg16[%c1_164, %c0_165, %c0_166] : memref<4x32x128xf32, #tpu.memory_space<vmem>>, vector<1x32x128xf32>
    %387 = vector.shape_cast %386 : vector<1x32x128xf32> to vector<32x128xf32>
    %cst_167 = arith.constant dense<0.000000e+00> : vector<8x128xf32>
    %388 = tpu.matmul %385, %387, %cst_167 {dimension_numbers = #tpu.dot_dimension_numbers<[1], [0], [0], [1], [0, 0, 1, 1], [], []>} : vector<8x32xf32>, vector<32x128xf32>, vector<8x128xf32> -> vector<8x128xf32>
    %c1_168 = arith.constant 1 : index
    %c0_169 = arith.constant 0 : index
    %c0_170 = arith.constant 0 : index
    %389 = vector.load %arg17[%c1_168, %c0_169, %c0_170] : memref<4x1x128xf32, #tpu.memory_space<vmem>>, vector<1x1x128xf32>
    %390 = vector.shape_cast %389 : vector<1x1x128xf32> to vector<1x128xf32>
    %391 = vector.broadcast %390 : vector<1x128xf32> to vector<8x128xf32>
    %392 = arith.addf %388, %391 : vector<8x128xf32>
    %cst_171 = arith.constant 5.000000e-01 : f32
    %393 = vector.broadcast %cst_171 : f32 to vector<8x128xf32>
    %394 = arith.mulf %393, %392 : vector<8x128xf32>
    %cst_172 = arith.constant 4.471500e-02 : f32
    %395 = vector.broadcast %cst_172 : f32 to vector<8x128xf32>
    %396 = arith.mulf %395, %392 : vector<8x128xf32>
    %397 = arith.mulf %396, %392 : vector<8x128xf32>
    %398 = arith.mulf %397, %392 : vector<8x128xf32>
    %399 = arith.addf %392, %398 : vector<8x128xf32>
    %cst_173 = arith.constant 0.797884583 : f32
    %400 = vector.broadcast %cst_173 : f32 to vector<8x128xf32>
    %401 = arith.mulf %400, %399 : vector<8x128xf32>
    %402 = math.tanh %401 : vector<8x128xf32>
    %cst_174 = arith.constant 1.000000e+00 : f32
    %403 = vector.broadcast %cst_174 : f32 to vector<8x128xf32>
    %404 = arith.addf %403, %402 : vector<8x128xf32>
    %405 = arith.mulf %394, %404 : vector<8x128xf32>
    %c1_175 = arith.constant 1 : index
    %c0_176 = arith.constant 0 : index
    %c0_177 = arith.constant 0 : index
    %406 = vector.load %arg18[%c1_175, %c0_176, %c0_177] : memref<4x128x32xf32, #tpu.memory_space<vmem>>, vector<1x128x32xf32>
    %407 = vector.shape_cast %406 : vector<1x128x32xf32> to vector<128x32xf32>
    %cst_178 = arith.constant dense<0.000000e+00> : vector<8x32xf32>
    %408 = tpu.matmul %405, %407, %cst_178 {dimension_numbers = #tpu.dot_dimension_numbers<[1], [0], [0], [1], [0, 0, 1, 1], [], []>} : vector<8x128xf32>, vector<128x32xf32>, vector<8x32xf32> -> vector<8x32xf32>
    %409 = arith.addf %359, %408 : vector<8x32xf32>
    %c1_179 = arith.constant 1 : index
    %c0_180 = arith.constant 0 : index
    %c0_181 = arith.constant 0 : index
    %410 = vector.load %arg19[%c1_179, %c0_180, %c0_181] : memref<4x1x32xf32, #tpu.memory_space<vmem>>, vector<1x1x32xf32>
    %411 = vector.shape_cast %410 : vector<1x1x32xf32> to vector<1x32xf32>
    %412 = vector.broadcast %411 : vector<1x32xf32> to vector<8x32xf32>
    %413 = arith.addf %409, %412 : vector<8x32xf32>
    %c2_182 = arith.constant 2 : index
    %c0_183 = arith.constant 0 : index
    %c0_184 = arith.constant 0 : index
    %414 = vector.load %arg8[%c2_182, %c0_183, %c0_184] : memref<4x1x32xf32, #tpu.memory_space<vmem>>, vector<1x1x32xf32>
    %415 = vector.shape_cast %414 : vector<1x1x32xf32> to vector<1x32xf32>
    %c2_185 = arith.constant 2 : index
    %c0_186 = arith.constant 0 : index
    %c0_187 = arith.constant 0 : index
    %416 = vector.load %arg9[%c2_185, %c0_186, %c0_187] : memref<4x1x32xf32, #tpu.memory_space<vmem>>, vector<1x1x32xf32>
    %417 = vector.shape_cast %416 : vector<1x1x32xf32> to vector<1x32xf32>
    %cst_188 = arith.constant dense<0.000000e+00> : vector<8xf32>
    %418 = vector.multi_reduction <add>, %413, %cst_188 [1] : vector<8x32xf32> to vector<8xf32>
    %419 = vector.shape_cast %418 : vector<8xf32> to vector<8x1xf32>
    %cst_189 = arith.constant 3.200000e+01 : f32
    %420 = vector.broadcast %cst_189 : f32 to vector<8x1xf32>
    %421 = arith.divf %419, %420 : vector<8x1xf32>
    %422 = vector.broadcast %421 : vector<8x1xf32> to vector<8x32xf32>
    %423 = arith.subf %413, %422 : vector<8x32xf32>
    %424 = arith.mulf %423, %423 : vector<8x32xf32>
    %cst_190 = arith.constant dense<0.000000e+00> : vector<8xf32>
    %425 = vector.multi_reduction <add>, %424, %cst_190 [1] : vector<8x32xf32> to vector<8xf32>
    %426 = vector.shape_cast %425 : vector<8xf32> to vector<8x1xf32>
    %cst_191 = arith.constant 3.200000e+01 : f32
    %427 = vector.broadcast %cst_191 : f32 to vector<8x1xf32>
    %428 = arith.divf %426, %427 : vector<8x1xf32>
    %429 = vector.broadcast %421 : vector<8x1xf32> to vector<8x32xf32>
    %430 = arith.subf %413, %429 : vector<8x32xf32>
    %cst_192 = arith.constant 9.99999974E-6 : f32
    %431 = vector.broadcast %cst_192 : f32 to vector<8x1xf32>
    %432 = arith.addf %428, %431 : vector<8x1xf32>
    %433 = math.rsqrt %432 : vector<8x1xf32>
    %434 = vector.broadcast %433 : vector<8x1xf32> to vector<8x32xf32>
    %435 = arith.mulf %430, %434 : vector<8x32xf32>
    %436 = vector.broadcast %415 : vector<1x32xf32> to vector<8x32xf32>
    %437 = arith.mulf %435, %436 : vector<8x32xf32>
    %438 = vector.broadcast %417 : vector<1x32xf32> to vector<8x32xf32>
    %439 = arith.addf %437, %438 : vector<8x32xf32>
    %c2_193 = arith.constant 2 : index
    %c0_194 = arith.constant 0 : index
    %c0_195 = arith.constant 0 : index
    %440 = vector.load %arg10[%c2_193, %c0_194, %c0_195] : memref<4x32x96xf32, #tpu.memory_space<vmem>>, vector<1x32x96xf32>
    %441 = vector.shape_cast %440 : vector<1x32x96xf32> to vector<32x96xf32>
    %cst_196 = arith.constant dense<0.000000e+00> : vector<8x96xf32>
    %442 = tpu.matmul %439, %441, %cst_196 {dimension_numbers = #tpu.dot_dimension_numbers<[1], [0], [0], [1], [0, 0, 1, 1], [], []>} : vector<8x32xf32>, vector<32x96xf32>, vector<8x96xf32> -> vector<8x96xf32>
    %c2_197 = arith.constant 2 : index
    %c0_198 = arith.constant 0 : index
    %c0_199 = arith.constant 0 : index
    %443 = vector.load %arg11[%c2_197, %c0_198, %c0_199] : memref<4x1x96xf32, #tpu.memory_space<vmem>>, vector<1x1x96xf32>
    %444 = vector.shape_cast %443 : vector<1x1x96xf32> to vector<1x96xf32>
    %445 = vector.broadcast %444 : vector<1x96xf32> to vector<8x96xf32>
    %446 = arith.addf %442, %445 : vector<8x96xf32>
    %447 = vector.extract_strided_slice %446 {offsets = [0, 0], sizes = [8, 32], strides = [1, 1]} : vector<8x96xf32> to vector<8x32xf32>
    %cst_200 = arith.constant 0.353553385 : f32
    %448 = vector.broadcast %cst_200 : f32 to vector<8x32xf32>
    %449 = arith.mulf %447, %448 : vector<8x32xf32>
    %450 = vector.extract_strided_slice %446 {offsets = [0, 32], sizes = [8, 32], strides = [1, 1]} : vector<8x96xf32> to vector<8x32xf32>
    %451 = vector.extract_strided_slice %446 {offsets = [0, 64], sizes = [8, 32], strides = [1, 1]} : vector<8x96xf32> to vector<8x32xf32>
    %452 = arith.mulf %449, %4 : vector<8x32xf32>
    %cst_201 = arith.constant dense<0.000000e+00> : vector<8x32xf32>
    %453 = tpu.matmul %449, %6, %cst_201 {dimension_numbers = #tpu.dot_dimension_numbers<[1], [0], [0], [1], [0, 0, 1, 1], [], []>} : vector<8x32xf32>, vector<32x32xf32>, vector<8x32xf32> -> vector<8x32xf32>
    %454 = arith.mulf %453, %5 : vector<8x32xf32>
    %455 = arith.addf %452, %454 : vector<8x32xf32>
    %456 = arith.mulf %450, %4 : vector<8x32xf32>
    %cst_202 = arith.constant dense<0.000000e+00> : vector<8x32xf32>
    %457 = tpu.matmul %450, %6, %cst_202 {dimension_numbers = #tpu.dot_dimension_numbers<[1], [0], [0], [1], [0, 0, 1, 1], [], []>} : vector<8x32xf32>, vector<32x32xf32>, vector<8x32xf32> -> vector<8x32xf32>
    %458 = arith.mulf %457, %5 : vector<8x32xf32>
    %459 = arith.addf %456, %458 : vector<8x32xf32>
    %cst_203 = arith.constant 0.000000e+00 : f32
    %460 = vector.broadcast %cst_203 : f32 to vector<8x32xf32>
    %c0_204 = arith.constant 0 : index
    %c0_205 = arith.constant 0 : index
    %c0_206 = arith.constant 0 : index
    %461 = vector.load %arg6[%c0_204, %c0_205, %c0_206] : memref<4x1x32xf32, #tpu.memory_space<vmem>>, vector<1x1x32xf32>
    %462 = vector.shape_cast %461 : vector<1x1x32xf32> to vector<1x32xf32>
    %463 = vector.broadcast %462 : vector<1x32xf32> to vector<8x32xf32>
    %464 = arith.mulf %455, %463 : vector<8x32xf32>
    %465 = tpu.transpose %459, [1, 0] : vector<8x32xf32> -> vector<32x8xf32>
    %cst_207 = arith.constant dense<0.000000e+00> : vector<8x8xf32>
    %466 = tpu.matmul %464, %465, %cst_207 {dimension_numbers = #tpu.dot_dimension_numbers<[1], [0], [0], [1], [0, 0, 1, 1], [], []>} : vector<8x32xf32>, vector<32x8xf32>, vector<8x8xf32> -> vector<8x8xf32>
    %467 = vector.broadcast %3 : vector<1x8xf32> to vector<8x8xf32>
    %468 = arith.addf %466, %467 : vector<8x8xf32>
    %cst_208 = arith.constant dense<0xFF800000> : vector<8xf32>
    %469 = vector.multi_reduction <maximumf>, %468, %cst_208 [1] : vector<8x8xf32> to vector<8xf32>
    %470 = vector.shape_cast %469 : vector<8xf32> to vector<8x1xf32>
    %471 = vector.broadcast %470 : vector<8x1xf32> to vector<8x8xf32>
    %472 = arith.subf %468, %471 : vector<8x8xf32>
    %473 = math.exp %472 : vector<8x8xf32>
    %cst_209 = arith.constant dense<0.000000e+00> : vector<8xf32>
    %474 = vector.multi_reduction <add>, %473, %cst_209 [1] : vector<8x8xf32> to vector<8xf32>
    %475 = vector.shape_cast %474 : vector<8xf32> to vector<8x1xf32>
    %476 = tpu.reciprocal %475 {approx = true} : vector<8x1xf32> -> vector<8x1xf32>
    %477 = vector.broadcast %476 : vector<8x1xf32> to vector<8x8xf32>
    %478 = arith.mulf %473, %477 : vector<8x8xf32>
    %479 = vector.broadcast %462 : vector<1x32xf32> to vector<8x32xf32>
    %480 = arith.mulf %451, %479 : vector<8x32xf32>
    %cst_210 = arith.constant dense<0.000000e+00> : vector<8x32xf32>
    %481 = tpu.matmul %478, %480, %cst_210 {dimension_numbers = #tpu.dot_dimension_numbers<[1], [0], [0], [1], [0, 0, 1, 1], [], []>} : vector<8x8xf32>, vector<8x32xf32>, vector<8x32xf32> -> vector<8x32xf32>
    %482 = arith.addf %460, %481 : vector<8x32xf32>
    %c1_211 = arith.constant 1 : index
    %c0_212 = arith.constant 0 : index
    %c0_213 = arith.constant 0 : index
    %483 = vector.load %arg6[%c1_211, %c0_212, %c0_213] : memref<4x1x32xf32, #tpu.memory_space<vmem>>, vector<1x1x32xf32>
    %484 = vector.shape_cast %483 : vector<1x1x32xf32> to vector<1x32xf32>
    %485 = vector.broadcast %484 : vector<1x32xf32> to vector<8x32xf32>
    %486 = arith.mulf %455, %485 : vector<8x32xf32>
    %487 = tpu.transpose %459, [1, 0] : vector<8x32xf32> -> vector<32x8xf32>
    %cst_214 = arith.constant dense<0.000000e+00> : vector<8x8xf32>
    %488 = tpu.matmul %486, %487, %cst_214 {dimension_numbers = #tpu.dot_dimension_numbers<[1], [0], [0], [1], [0, 0, 1, 1], [], []>} : vector<8x32xf32>, vector<32x8xf32>, vector<8x8xf32> -> vector<8x8xf32>
    %489 = vector.broadcast %3 : vector<1x8xf32> to vector<8x8xf32>
    %490 = arith.addf %488, %489 : vector<8x8xf32>
    %cst_215 = arith.constant dense<0xFF800000> : vector<8xf32>
    %491 = vector.multi_reduction <maximumf>, %490, %cst_215 [1] : vector<8x8xf32> to vector<8xf32>
    %492 = vector.shape_cast %491 : vector<8xf32> to vector<8x1xf32>
    %493 = vector.broadcast %492 : vector<8x1xf32> to vector<8x8xf32>
    %494 = arith.subf %490, %493 : vector<8x8xf32>
    %495 = math.exp %494 : vector<8x8xf32>
    %cst_216 = arith.constant dense<0.000000e+00> : vector<8xf32>
    %496 = vector.multi_reduction <add>, %495, %cst_216 [1] : vector<8x8xf32> to vector<8xf32>
    %497 = vector.shape_cast %496 : vector<8xf32> to vector<8x1xf32>
    %498 = tpu.reciprocal %497 {approx = true} : vector<8x1xf32> -> vector<8x1xf32>
    %499 = vector.broadcast %498 : vector<8x1xf32> to vector<8x8xf32>
    %500 = arith.mulf %495, %499 : vector<8x8xf32>
    %501 = vector.broadcast %484 : vector<1x32xf32> to vector<8x32xf32>
    %502 = arith.mulf %451, %501 : vector<8x32xf32>
    %cst_217 = arith.constant dense<0.000000e+00> : vector<8x32xf32>
    %503 = tpu.matmul %500, %502, %cst_217 {dimension_numbers = #tpu.dot_dimension_numbers<[1], [0], [0], [1], [0, 0, 1, 1], [], []>} : vector<8x8xf32>, vector<8x32xf32>, vector<8x32xf32> -> vector<8x32xf32>
    %504 = arith.addf %482, %503 : vector<8x32xf32>
    %c2_218 = arith.constant 2 : index
    %c0_219 = arith.constant 0 : index
    %c0_220 = arith.constant 0 : index
    %505 = vector.load %arg6[%c2_218, %c0_219, %c0_220] : memref<4x1x32xf32, #tpu.memory_space<vmem>>, vector<1x1x32xf32>
    %506 = vector.shape_cast %505 : vector<1x1x32xf32> to vector<1x32xf32>
    %507 = vector.broadcast %506 : vector<1x32xf32> to vector<8x32xf32>
    %508 = arith.mulf %455, %507 : vector<8x32xf32>
    %509 = tpu.transpose %459, [1, 0] : vector<8x32xf32> -> vector<32x8xf32>
    %cst_221 = arith.constant dense<0.000000e+00> : vector<8x8xf32>
    %510 = tpu.matmul %508, %509, %cst_221 {dimension_numbers = #tpu.dot_dimension_numbers<[1], [0], [0], [1], [0, 0, 1, 1], [], []>} : vector<8x32xf32>, vector<32x8xf32>, vector<8x8xf32> -> vector<8x8xf32>
    %511 = vector.broadcast %3 : vector<1x8xf32> to vector<8x8xf32>
    %512 = arith.addf %510, %511 : vector<8x8xf32>
    %cst_222 = arith.constant dense<0xFF800000> : vector<8xf32>
    %513 = vector.multi_reduction <maximumf>, %512, %cst_222 [1] : vector<8x8xf32> to vector<8xf32>
    %514 = vector.shape_cast %513 : vector<8xf32> to vector<8x1xf32>
    %515 = vector.broadcast %514 : vector<8x1xf32> to vector<8x8xf32>
    %516 = arith.subf %512, %515 : vector<8x8xf32>
    %517 = math.exp %516 : vector<8x8xf32>
    %cst_223 = arith.constant dense<0.000000e+00> : vector<8xf32>
    %518 = vector.multi_reduction <add>, %517, %cst_223 [1] : vector<8x8xf32> to vector<8xf32>
    %519 = vector.shape_cast %518 : vector<8xf32> to vector<8x1xf32>
    %520 = tpu.reciprocal %519 {approx = true} : vector<8x1xf32> -> vector<8x1xf32>
    %521 = vector.broadcast %520 : vector<8x1xf32> to vector<8x8xf32>
    %522 = arith.mulf %517, %521 : vector<8x8xf32>
    %523 = vector.broadcast %506 : vector<1x32xf32> to vector<8x32xf32>
    %524 = arith.mulf %451, %523 : vector<8x32xf32>
    %cst_224 = arith.constant dense<0.000000e+00> : vector<8x32xf32>
    %525 = tpu.matmul %522, %524, %cst_224 {dimension_numbers = #tpu.dot_dimension_numbers<[1], [0], [0], [1], [0, 0, 1, 1], [], []>} : vector<8x8xf32>, vector<8x32xf32>, vector<8x32xf32> -> vector<8x32xf32>
    %526 = arith.addf %504, %525 : vector<8x32xf32>
    %c3_225 = arith.constant 3 : index
    %c0_226 = arith.constant 0 : index
    %c0_227 = arith.constant 0 : index
    %527 = vector.load %arg6[%c3_225, %c0_226, %c0_227] : memref<4x1x32xf32, #tpu.memory_space<vmem>>, vector<1x1x32xf32>
    %528 = vector.shape_cast %527 : vector<1x1x32xf32> to vector<1x32xf32>
    %529 = vector.broadcast %528 : vector<1x32xf32> to vector<8x32xf32>
    %530 = arith.mulf %455, %529 : vector<8x32xf32>
    %531 = tpu.transpose %459, [1, 0] : vector<8x32xf32> -> vector<32x8xf32>
    %cst_228 = arith.constant dense<0.000000e+00> : vector<8x8xf32>
    %532 = tpu.matmul %530, %531, %cst_228 {dimension_numbers = #tpu.dot_dimension_numbers<[1], [0], [0], [1], [0, 0, 1, 1], [], []>} : vector<8x32xf32>, vector<32x8xf32>, vector<8x8xf32> -> vector<8x8xf32>
    %533 = vector.broadcast %3 : vector<1x8xf32> to vector<8x8xf32>
    %534 = arith.addf %532, %533 : vector<8x8xf32>
    %cst_229 = arith.constant dense<0xFF800000> : vector<8xf32>
    %535 = vector.multi_reduction <maximumf>, %534, %cst_229 [1] : vector<8x8xf32> to vector<8xf32>
    %536 = vector.shape_cast %535 : vector<8xf32> to vector<8x1xf32>
    %537 = vector.broadcast %536 : vector<8x1xf32> to vector<8x8xf32>
    %538 = arith.subf %534, %537 : vector<8x8xf32>
    %539 = math.exp %538 : vector<8x8xf32>
    %cst_230 = arith.constant dense<0.000000e+00> : vector<8xf32>
    %540 = vector.multi_reduction <add>, %539, %cst_230 [1] : vector<8x8xf32> to vector<8xf32>
    %541 = vector.shape_cast %540 : vector<8xf32> to vector<8x1xf32>
    %542 = tpu.reciprocal %541 {approx = true} : vector<8x1xf32> -> vector<8x1xf32>
    %543 = vector.broadcast %542 : vector<8x1xf32> to vector<8x8xf32>
    %544 = arith.mulf %539, %543 : vector<8x8xf32>
    %545 = vector.broadcast %528 : vector<1x32xf32> to vector<8x32xf32>
    %546 = arith.mulf %451, %545 : vector<8x32xf32>
    %cst_231 = arith.constant dense<0.000000e+00> : vector<8x32xf32>
    %547 = tpu.matmul %544, %546, %cst_231 {dimension_numbers = #tpu.dot_dimension_numbers<[1], [0], [0], [1], [0, 0, 1, 1], [], []>} : vector<8x8xf32>, vector<8x32xf32>, vector<8x32xf32> -> vector<8x32xf32>
    %548 = arith.addf %526, %547 : vector<8x32xf32>
    %c2_232 = arith.constant 2 : index
    %c0_233 = arith.constant 0 : index
    %c0_234 = arith.constant 0 : index
    %549 = vector.load %arg12[%c2_232, %c0_233, %c0_234] : memref<4x32x32xf32, #tpu.memory_space<vmem>>, vector<1x32x32xf32>
    %550 = vector.shape_cast %549 : vector<1x32x32xf32> to vector<32x32xf32>
    %cst_235 = arith.constant dense<0.000000e+00> : vector<8x32xf32>
    %551 = tpu.matmul %548, %550, %cst_235 {dimension_numbers = #tpu.dot_dimension_numbers<[1], [0], [0], [1], [0, 0, 1, 1], [], []>} : vector<8x32xf32>, vector<32x32xf32>, vector<8x32xf32> -> vector<8x32xf32>
    %552 = arith.addf %413, %551 : vector<8x32xf32>
    %c2_236 = arith.constant 2 : index
    %c0_237 = arith.constant 0 : index
    %c0_238 = arith.constant 0 : index
    %553 = vector.load %arg13[%c2_236, %c0_237, %c0_238] : memref<4x1x32xf32, #tpu.memory_space<vmem>>, vector<1x1x32xf32>
    %554 = vector.shape_cast %553 : vector<1x1x32xf32> to vector<1x32xf32>
    %555 = vector.broadcast %554 : vector<1x32xf32> to vector<8x32xf32>
    %556 = arith.addf %552, %555 : vector<8x32xf32>
    %c2_239 = arith.constant 2 : index
    %c0_240 = arith.constant 0 : index
    %c0_241 = arith.constant 0 : index
    %557 = vector.load %arg14[%c2_239, %c0_240, %c0_241] : memref<4x1x32xf32, #tpu.memory_space<vmem>>, vector<1x1x32xf32>
    %558 = vector.shape_cast %557 : vector<1x1x32xf32> to vector<1x32xf32>
    %c2_242 = arith.constant 2 : index
    %c0_243 = arith.constant 0 : index
    %c0_244 = arith.constant 0 : index
    %559 = vector.load %arg15[%c2_242, %c0_243, %c0_244] : memref<4x1x32xf32, #tpu.memory_space<vmem>>, vector<1x1x32xf32>
    %560 = vector.shape_cast %559 : vector<1x1x32xf32> to vector<1x32xf32>
    %cst_245 = arith.constant dense<0.000000e+00> : vector<8xf32>
    %561 = vector.multi_reduction <add>, %556, %cst_245 [1] : vector<8x32xf32> to vector<8xf32>
    %562 = vector.shape_cast %561 : vector<8xf32> to vector<8x1xf32>
    %cst_246 = arith.constant 3.200000e+01 : f32
    %563 = vector.broadcast %cst_246 : f32 to vector<8x1xf32>
    %564 = arith.divf %562, %563 : vector<8x1xf32>
    %565 = vector.broadcast %564 : vector<8x1xf32> to vector<8x32xf32>
    %566 = arith.subf %556, %565 : vector<8x32xf32>
    %567 = arith.mulf %566, %566 : vector<8x32xf32>
    %cst_247 = arith.constant dense<0.000000e+00> : vector<8xf32>
    %568 = vector.multi_reduction <add>, %567, %cst_247 [1] : vector<8x32xf32> to vector<8xf32>
    %569 = vector.shape_cast %568 : vector<8xf32> to vector<8x1xf32>
    %cst_248 = arith.constant 3.200000e+01 : f32
    %570 = vector.broadcast %cst_248 : f32 to vector<8x1xf32>
    %571 = arith.divf %569, %570 : vector<8x1xf32>
    %572 = vector.broadcast %564 : vector<8x1xf32> to vector<8x32xf32>
    %573 = arith.subf %556, %572 : vector<8x32xf32>
    %cst_249 = arith.constant 9.99999974E-6 : f32
    %574 = vector.broadcast %cst_249 : f32 to vector<8x1xf32>
    %575 = arith.addf %571, %574 : vector<8x1xf32>
    %576 = math.rsqrt %575 : vector<8x1xf32>
    %577 = vector.broadcast %576 : vector<8x1xf32> to vector<8x32xf32>
    %578 = arith.mulf %573, %577 : vector<8x32xf32>
    %579 = vector.broadcast %558 : vector<1x32xf32> to vector<8x32xf32>
    %580 = arith.mulf %578, %579 : vector<8x32xf32>
    %581 = vector.broadcast %560 : vector<1x32xf32> to vector<8x32xf32>
    %582 = arith.addf %580, %581 : vector<8x32xf32>
    %c2_250 = arith.constant 2 : index
    %c0_251 = arith.constant 0 : index
    %c0_252 = arith.constant 0 : index
    %583 = vector.load %arg16[%c2_250, %c0_251, %c0_252] : memref<4x32x128xf32, #tpu.memory_space<vmem>>, vector<1x32x128xf32>
    %584 = vector.shape_cast %583 : vector<1x32x128xf32> to vector<32x128xf32>
    %cst_253 = arith.constant dense<0.000000e+00> : vector<8x128xf32>
    %585 = tpu.matmul %582, %584, %cst_253 {dimension_numbers = #tpu.dot_dimension_numbers<[1], [0], [0], [1], [0, 0, 1, 1], [], []>} : vector<8x32xf32>, vector<32x128xf32>, vector<8x128xf32> -> vector<8x128xf32>
    %c2_254 = arith.constant 2 : index
    %c0_255 = arith.constant 0 : index
    %c0_256 = arith.constant 0 : index
    %586 = vector.load %arg17[%c2_254, %c0_255, %c0_256] : memref<4x1x128xf32, #tpu.memory_space<vmem>>, vector<1x1x128xf32>
    %587 = vector.shape_cast %586 : vector<1x1x128xf32> to vector<1x128xf32>
    %588 = vector.broadcast %587 : vector<1x128xf32> to vector<8x128xf32>
    %589 = arith.addf %585, %588 : vector<8x128xf32>
    %cst_257 = arith.constant 5.000000e-01 : f32
    %590 = vector.broadcast %cst_257 : f32 to vector<8x128xf32>
    %591 = arith.mulf %590, %589 : vector<8x128xf32>
    %cst_258 = arith.constant 4.471500e-02 : f32
    %592 = vector.broadcast %cst_258 : f32 to vector<8x128xf32>
    %593 = arith.mulf %592, %589 : vector<8x128xf32>
    %594 = arith.mulf %593, %589 : vector<8x128xf32>
    %595 = arith.mulf %594, %589 : vector<8x128xf32>
    %596 = arith.addf %589, %595 : vector<8x128xf32>
    %cst_259 = arith.constant 0.797884583 : f32
    %597 = vector.broadcast %cst_259 : f32 to vector<8x128xf32>
    %598 = arith.mulf %597, %596 : vector<8x128xf32>
    %599 = math.tanh %598 : vector<8x128xf32>
    %cst_260 = arith.constant 1.000000e+00 : f32
    %600 = vector.broadcast %cst_260 : f32 to vector<8x128xf32>
    %601 = arith.addf %600, %599 : vector<8x128xf32>
    %602 = arith.mulf %591, %601 : vector<8x128xf32>
    %c2_261 = arith.constant 2 : index
    %c0_262 = arith.constant 0 : index
    %c0_263 = arith.constant 0 : index
    %603 = vector.load %arg18[%c2_261, %c0_262, %c0_263] : memref<4x128x32xf32, #tpu.memory_space<vmem>>, vector<1x128x32xf32>
    %604 = vector.shape_cast %603 : vector<1x128x32xf32> to vector<128x32xf32>
    %cst_264 = arith.constant dense<0.000000e+00> : vector<8x32xf32>
    %605 = tpu.matmul %602, %604, %cst_264 {dimension_numbers = #tpu.dot_dimension_numbers<[1], [0], [0], [1], [0, 0, 1, 1], [], []>} : vector<8x128xf32>, vector<128x32xf32>, vector<8x32xf32> -> vector<8x32xf32>
    %606 = arith.addf %556, %605 : vector<8x32xf32>
    %c2_265 = arith.constant 2 : index
    %c0_266 = arith.constant 0 : index
    %c0_267 = arith.constant 0 : index
    %607 = vector.load %arg19[%c2_265, %c0_266, %c0_267] : memref<4x1x32xf32, #tpu.memory_space<vmem>>, vector<1x1x32xf32>
    %608 = vector.shape_cast %607 : vector<1x1x32xf32> to vector<1x32xf32>
    %609 = vector.broadcast %608 : vector<1x32xf32> to vector<8x32xf32>
    %610 = arith.addf %606, %609 : vector<8x32xf32>
    %c3_268 = arith.constant 3 : index
    %c0_269 = arith.constant 0 : index
    %c0_270 = arith.constant 0 : index
    %611 = vector.load %arg8[%c3_268, %c0_269, %c0_270] : memref<4x1x32xf32, #tpu.memory_space<vmem>>, vector<1x1x32xf32>
    %612 = vector.shape_cast %611 : vector<1x1x32xf32> to vector<1x32xf32>
    %c3_271 = arith.constant 3 : index
    %c0_272 = arith.constant 0 : index
    %c0_273 = arith.constant 0 : index
    %613 = vector.load %arg9[%c3_271, %c0_272, %c0_273] : memref<4x1x32xf32, #tpu.memory_space<vmem>>, vector<1x1x32xf32>
    %614 = vector.shape_cast %613 : vector<1x1x32xf32> to vector<1x32xf32>
    %cst_274 = arith.constant dense<0.000000e+00> : vector<8xf32>
    %615 = vector.multi_reduction <add>, %610, %cst_274 [1] : vector<8x32xf32> to vector<8xf32>
    %616 = vector.shape_cast %615 : vector<8xf32> to vector<8x1xf32>
    %cst_275 = arith.constant 3.200000e+01 : f32
    %617 = vector.broadcast %cst_275 : f32 to vector<8x1xf32>
    %618 = arith.divf %616, %617 : vector<8x1xf32>
    %619 = vector.broadcast %618 : vector<8x1xf32> to vector<8x32xf32>
    %620 = arith.subf %610, %619 : vector<8x32xf32>
    %621 = arith.mulf %620, %620 : vector<8x32xf32>
    %cst_276 = arith.constant dense<0.000000e+00> : vector<8xf32>
    %622 = vector.multi_reduction <add>, %621, %cst_276 [1] : vector<8x32xf32> to vector<8xf32>
    %623 = vector.shape_cast %622 : vector<8xf32> to vector<8x1xf32>
    %cst_277 = arith.constant 3.200000e+01 : f32
    %624 = vector.broadcast %cst_277 : f32 to vector<8x1xf32>
    %625 = arith.divf %623, %624 : vector<8x1xf32>
    %626 = vector.broadcast %618 : vector<8x1xf32> to vector<8x32xf32>
    %627 = arith.subf %610, %626 : vector<8x32xf32>
    %cst_278 = arith.constant 9.99999974E-6 : f32
    %628 = vector.broadcast %cst_278 : f32 to vector<8x1xf32>
    %629 = arith.addf %625, %628 : vector<8x1xf32>
    %630 = math.rsqrt %629 : vector<8x1xf32>
    %631 = vector.broadcast %630 : vector<8x1xf32> to vector<8x32xf32>
    %632 = arith.mulf %627, %631 : vector<8x32xf32>
    %633 = vector.broadcast %612 : vector<1x32xf32> to vector<8x32xf32>
    %634 = arith.mulf %632, %633 : vector<8x32xf32>
    %635 = vector.broadcast %614 : vector<1x32xf32> to vector<8x32xf32>
    %636 = arith.addf %634, %635 : vector<8x32xf32>
    %c3_279 = arith.constant 3 : index
    %c0_280 = arith.constant 0 : index
    %c0_281 = arith.constant 0 : index
    %637 = vector.load %arg10[%c3_279, %c0_280, %c0_281] : memref<4x32x96xf32, #tpu.memory_space<vmem>>, vector<1x32x96xf32>
    %638 = vector.shape_cast %637 : vector<1x32x96xf32> to vector<32x96xf32>
    %cst_282 = arith.constant dense<0.000000e+00> : vector<8x96xf32>
    %639 = tpu.matmul %636, %638, %cst_282 {dimension_numbers = #tpu.dot_dimension_numbers<[1], [0], [0], [1], [0, 0, 1, 1], [], []>} : vector<8x32xf32>, vector<32x96xf32>, vector<8x96xf32> -> vector<8x96xf32>
    %c3_283 = arith.constant 3 : index
    %c0_284 = arith.constant 0 : index
    %c0_285 = arith.constant 0 : index
    %640 = vector.load %arg11[%c3_283, %c0_284, %c0_285] : memref<4x1x96xf32, #tpu.memory_space<vmem>>, vector<1x1x96xf32>
    %641 = vector.shape_cast %640 : vector<1x1x96xf32> to vector<1x96xf32>
    %642 = vector.broadcast %641 : vector<1x96xf32> to vector<8x96xf32>
    %643 = arith.addf %639, %642 : vector<8x96xf32>
    %644 = vector.extract_strided_slice %643 {offsets = [0, 0], sizes = [8, 32], strides = [1, 1]} : vector<8x96xf32> to vector<8x32xf32>
    %cst_286 = arith.constant 0.353553385 : f32
    %645 = vector.broadcast %cst_286 : f32 to vector<8x32xf32>
    %646 = arith.mulf %644, %645 : vector<8x32xf32>
    %647 = vector.extract_strided_slice %643 {offsets = [0, 32], sizes = [8, 32], strides = [1, 1]} : vector<8x96xf32> to vector<8x32xf32>
    %648 = vector.extract_strided_slice %643 {offsets = [0, 64], sizes = [8, 32], strides = [1, 1]} : vector<8x96xf32> to vector<8x32xf32>
    %649 = arith.mulf %646, %4 : vector<8x32xf32>
    %cst_287 = arith.constant dense<0.000000e+00> : vector<8x32xf32>
    %650 = tpu.matmul %646, %6, %cst_287 {dimension_numbers = #tpu.dot_dimension_numbers<[1], [0], [0], [1], [0, 0, 1, 1], [], []>} : vector<8x32xf32>, vector<32x32xf32>, vector<8x32xf32> -> vector<8x32xf32>
    %651 = arith.mulf %650, %5 : vector<8x32xf32>
    %652 = arith.addf %649, %651 : vector<8x32xf32>
    %653 = arith.mulf %647, %4 : vector<8x32xf32>
    %cst_288 = arith.constant dense<0.000000e+00> : vector<8x32xf32>
    %654 = tpu.matmul %647, %6, %cst_288 {dimension_numbers = #tpu.dot_dimension_numbers<[1], [0], [0], [1], [0, 0, 1, 1], [], []>} : vector<8x32xf32>, vector<32x32xf32>, vector<8x32xf32> -> vector<8x32xf32>
    %655 = arith.mulf %654, %5 : vector<8x32xf32>
    %656 = arith.addf %653, %655 : vector<8x32xf32>
    %cst_289 = arith.constant 0.000000e+00 : f32
    %657 = vector.broadcast %cst_289 : f32 to vector<8x32xf32>
    %c0_290 = arith.constant 0 : index
    %c0_291 = arith.constant 0 : index
    %c0_292 = arith.constant 0 : index
    %658 = vector.load %arg6[%c0_290, %c0_291, %c0_292] : memref<4x1x32xf32, #tpu.memory_space<vmem>>, vector<1x1x32xf32>
    %659 = vector.shape_cast %658 : vector<1x1x32xf32> to vector<1x32xf32>
    %660 = vector.broadcast %659 : vector<1x32xf32> to vector<8x32xf32>
    %661 = arith.mulf %652, %660 : vector<8x32xf32>
    %662 = tpu.transpose %656, [1, 0] : vector<8x32xf32> -> vector<32x8xf32>
    %cst_293 = arith.constant dense<0.000000e+00> : vector<8x8xf32>
    %663 = tpu.matmul %661, %662, %cst_293 {dimension_numbers = #tpu.dot_dimension_numbers<[1], [0], [0], [1], [0, 0, 1, 1], [], []>} : vector<8x32xf32>, vector<32x8xf32>, vector<8x8xf32> -> vector<8x8xf32>
    %664 = vector.broadcast %3 : vector<1x8xf32> to vector<8x8xf32>
    %665 = arith.addf %663, %664 : vector<8x8xf32>
    %cst_294 = arith.constant dense<0xFF800000> : vector<8xf32>
    %666 = vector.multi_reduction <maximumf>, %665, %cst_294 [1] : vector<8x8xf32> to vector<8xf32>
    %667 = vector.shape_cast %666 : vector<8xf32> to vector<8x1xf32>
    %668 = vector.broadcast %667 : vector<8x1xf32> to vector<8x8xf32>
    %669 = arith.subf %665, %668 : vector<8x8xf32>
    %670 = math.exp %669 : vector<8x8xf32>
    %cst_295 = arith.constant dense<0.000000e+00> : vector<8xf32>
    %671 = vector.multi_reduction <add>, %670, %cst_295 [1] : vector<8x8xf32> to vector<8xf32>
    %672 = vector.shape_cast %671 : vector<8xf32> to vector<8x1xf32>
    %673 = tpu.reciprocal %672 {approx = true} : vector<8x1xf32> -> vector<8x1xf32>
    %674 = vector.broadcast %673 : vector<8x1xf32> to vector<8x8xf32>
    %675 = arith.mulf %670, %674 : vector<8x8xf32>
    %676 = vector.broadcast %659 : vector<1x32xf32> to vector<8x32xf32>
    %677 = arith.mulf %648, %676 : vector<8x32xf32>
    %cst_296 = arith.constant dense<0.000000e+00> : vector<8x32xf32>
    %678 = tpu.matmul %675, %677, %cst_296 {dimension_numbers = #tpu.dot_dimension_numbers<[1], [0], [0], [1], [0, 0, 1, 1], [], []>} : vector<8x8xf32>, vector<8x32xf32>, vector<8x32xf32> -> vector<8x32xf32>
    %679 = arith.addf %657, %678 : vector<8x32xf32>
    %c1_297 = arith.constant 1 : index
    %c0_298 = arith.constant 0 : index
    %c0_299 = arith.constant 0 : index
    %680 = vector.load %arg6[%c1_297, %c0_298, %c0_299] : memref<4x1x32xf32, #tpu.memory_space<vmem>>, vector<1x1x32xf32>
    %681 = vector.shape_cast %680 : vector<1x1x32xf32> to vector<1x32xf32>
    %682 = vector.broadcast %681 : vector<1x32xf32> to vector<8x32xf32>
    %683 = arith.mulf %652, %682 : vector<8x32xf32>
    %684 = tpu.transpose %656, [1, 0] : vector<8x32xf32> -> vector<32x8xf32>
    %cst_300 = arith.constant dense<0.000000e+00> : vector<8x8xf32>
    %685 = tpu.matmul %683, %684, %cst_300 {dimension_numbers = #tpu.dot_dimension_numbers<[1], [0], [0], [1], [0, 0, 1, 1], [], []>} : vector<8x32xf32>, vector<32x8xf32>, vector<8x8xf32> -> vector<8x8xf32>
    %686 = vector.broadcast %3 : vector<1x8xf32> to vector<8x8xf32>
    %687 = arith.addf %685, %686 : vector<8x8xf32>
    %cst_301 = arith.constant dense<0xFF800000> : vector<8xf32>
    %688 = vector.multi_reduction <maximumf>, %687, %cst_301 [1] : vector<8x8xf32> to vector<8xf32>
    %689 = vector.shape_cast %688 : vector<8xf32> to vector<8x1xf32>
    %690 = vector.broadcast %689 : vector<8x1xf32> to vector<8x8xf32>
    %691 = arith.subf %687, %690 : vector<8x8xf32>
    %692 = math.exp %691 : vector<8x8xf32>
    %cst_302 = arith.constant dense<0.000000e+00> : vector<8xf32>
    %693 = vector.multi_reduction <add>, %692, %cst_302 [1] : vector<8x8xf32> to vector<8xf32>
    %694 = vector.shape_cast %693 : vector<8xf32> to vector<8x1xf32>
    %695 = tpu.reciprocal %694 {approx = true} : vector<8x1xf32> -> vector<8x1xf32>
    %696 = vector.broadcast %695 : vector<8x1xf32> to vector<8x8xf32>
    %697 = arith.mulf %692, %696 : vector<8x8xf32>
    %698 = vector.broadcast %681 : vector<1x32xf32> to vector<8x32xf32>
    %699 = arith.mulf %648, %698 : vector<8x32xf32>
    %cst_303 = arith.constant dense<0.000000e+00> : vector<8x32xf32>
    %700 = tpu.matmul %697, %699, %cst_303 {dimension_numbers = #tpu.dot_dimension_numbers<[1], [0], [0], [1], [0, 0, 1, 1], [], []>} : vector<8x8xf32>, vector<8x32xf32>, vector<8x32xf32> -> vector<8x32xf32>
    %701 = arith.addf %679, %700 : vector<8x32xf32>
    %c2_304 = arith.constant 2 : index
    %c0_305 = arith.constant 0 : index
    %c0_306 = arith.constant 0 : index
    %702 = vector.load %arg6[%c2_304, %c0_305, %c0_306] : memref<4x1x32xf32, #tpu.memory_space<vmem>>, vector<1x1x32xf32>
    %703 = vector.shape_cast %702 : vector<1x1x32xf32> to vector<1x32xf32>
    %704 = vector.broadcast %703 : vector<1x32xf32> to vector<8x32xf32>
    %705 = arith.mulf %652, %704 : vector<8x32xf32>
    %706 = tpu.transpose %656, [1, 0] : vector<8x32xf32> -> vector<32x8xf32>
    %cst_307 = arith.constant dense<0.000000e+00> : vector<8x8xf32>
    %707 = tpu.matmul %705, %706, %cst_307 {dimension_numbers = #tpu.dot_dimension_numbers<[1], [0], [0], [1], [0, 0, 1, 1], [], []>} : vector<8x32xf32>, vector<32x8xf32>, vector<8x8xf32> -> vector<8x8xf32>
    %708 = vector.broadcast %3 : vector<1x8xf32> to vector<8x8xf32>
    %709 = arith.addf %707, %708 : vector<8x8xf32>
    %cst_308 = arith.constant dense<0xFF800000> : vector<8xf32>
    %710 = vector.multi_reduction <maximumf>, %709, %cst_308 [1] : vector<8x8xf32> to vector<8xf32>
    %711 = vector.shape_cast %710 : vector<8xf32> to vector<8x1xf32>
    %712 = vector.broadcast %711 : vector<8x1xf32> to vector<8x8xf32>
    %713 = arith.subf %709, %712 : vector<8x8xf32>
    %714 = math.exp %713 : vector<8x8xf32>
    %cst_309 = arith.constant dense<0.000000e+00> : vector<8xf32>
    %715 = vector.multi_reduction <add>, %714, %cst_309 [1] : vector<8x8xf32> to vector<8xf32>
    %716 = vector.shape_cast %715 : vector<8xf32> to vector<8x1xf32>
    %717 = tpu.reciprocal %716 {approx = true} : vector<8x1xf32> -> vector<8x1xf32>
    %718 = vector.broadcast %717 : vector<8x1xf32> to vector<8x8xf32>
    %719 = arith.mulf %714, %718 : vector<8x8xf32>
    %720 = vector.broadcast %703 : vector<1x32xf32> to vector<8x32xf32>
    %721 = arith.mulf %648, %720 : vector<8x32xf32>
    %cst_310 = arith.constant dense<0.000000e+00> : vector<8x32xf32>
    %722 = tpu.matmul %719, %721, %cst_310 {dimension_numbers = #tpu.dot_dimension_numbers<[1], [0], [0], [1], [0, 0, 1, 1], [], []>} : vector<8x8xf32>, vector<8x32xf32>, vector<8x32xf32> -> vector<8x32xf32>
    %723 = arith.addf %701, %722 : vector<8x32xf32>
    %c3_311 = arith.constant 3 : index
    %c0_312 = arith.constant 0 : index
    %c0_313 = arith.constant 0 : index
    %724 = vector.load %arg6[%c3_311, %c0_312, %c0_313] : memref<4x1x32xf32, #tpu.memory_space<vmem>>, vector<1x1x32xf32>
    %725 = vector.shape_cast %724 : vector<1x1x32xf32> to vector<1x32xf32>
    %726 = vector.broadcast %725 : vector<1x32xf32> to vector<8x32xf32>
    %727 = arith.mulf %652, %726 : vector<8x32xf32>
    %728 = tpu.transpose %656, [1, 0] : vector<8x32xf32> -> vector<32x8xf32>
    %cst_314 = arith.constant dense<0.000000e+00> : vector<8x8xf32>
    %729 = tpu.matmul %727, %728, %cst_314 {dimension_numbers = #tpu.dot_dimension_numbers<[1], [0], [0], [1], [0, 0, 1, 1], [], []>} : vector<8x32xf32>, vector<32x8xf32>, vector<8x8xf32> -> vector<8x8xf32>
    %730 = vector.broadcast %3 : vector<1x8xf32> to vector<8x8xf32>
    %731 = arith.addf %729, %730 : vector<8x8xf32>
    %cst_315 = arith.constant dense<0xFF800000> : vector<8xf32>
    %732 = vector.multi_reduction <maximumf>, %731, %cst_315 [1] : vector<8x8xf32> to vector<8xf32>
    %733 = vector.shape_cast %732 : vector<8xf32> to vector<8x1xf32>
    %734 = vector.broadcast %733 : vector<8x1xf32> to vector<8x8xf32>
    %735 = arith.subf %731, %734 : vector<8x8xf32>
    %736 = math.exp %735 : vector<8x8xf32>
    %cst_316 = arith.constant dense<0.000000e+00> : vector<8xf32>
    %737 = vector.multi_reduction <add>, %736, %cst_316 [1] : vector<8x8xf32> to vector<8xf32>
    %738 = vector.shape_cast %737 : vector<8xf32> to vector<8x1xf32>
    %739 = tpu.reciprocal %738 {approx = true} : vector<8x1xf32> -> vector<8x1xf32>
    %740 = vector.broadcast %739 : vector<8x1xf32> to vector<8x8xf32>
    %741 = arith.mulf %736, %740 : vector<8x8xf32>
    %742 = vector.broadcast %725 : vector<1x32xf32> to vector<8x32xf32>
    %743 = arith.mulf %648, %742 : vector<8x32xf32>
    %cst_317 = arith.constant dense<0.000000e+00> : vector<8x32xf32>
    %744 = tpu.matmul %741, %743, %cst_317 {dimension_numbers = #tpu.dot_dimension_numbers<[1], [0], [0], [1], [0, 0, 1, 1], [], []>} : vector<8x8xf32>, vector<8x32xf32>, vector<8x32xf32> -> vector<8x32xf32>
    %745 = arith.addf %723, %744 : vector<8x32xf32>
    %c3_318 = arith.constant 3 : index
    %c0_319 = arith.constant 0 : index
    %c0_320 = arith.constant 0 : index
    %746 = vector.load %arg12[%c3_318, %c0_319, %c0_320] : memref<4x32x32xf32, #tpu.memory_space<vmem>>, vector<1x32x32xf32>
    %747 = vector.shape_cast %746 : vector<1x32x32xf32> to vector<32x32xf32>
    %cst_321 = arith.constant dense<0.000000e+00> : vector<8x32xf32>
    %748 = tpu.matmul %745, %747, %cst_321 {dimension_numbers = #tpu.dot_dimension_numbers<[1], [0], [0], [1], [0, 0, 1, 1], [], []>} : vector<8x32xf32>, vector<32x32xf32>, vector<8x32xf32> -> vector<8x32xf32>
    %749 = arith.addf %610, %748 : vector<8x32xf32>
    %c3_322 = arith.constant 3 : index
    %c0_323 = arith.constant 0 : index
    %c0_324 = arith.constant 0 : index
    %750 = vector.load %arg13[%c3_322, %c0_323, %c0_324] : memref<4x1x32xf32, #tpu.memory_space<vmem>>, vector<1x1x32xf32>
    %751 = vector.shape_cast %750 : vector<1x1x32xf32> to vector<1x32xf32>
    %752 = vector.broadcast %751 : vector<1x32xf32> to vector<8x32xf32>
    %753 = arith.addf %749, %752 : vector<8x32xf32>
    %c3_325 = arith.constant 3 : index
    %c0_326 = arith.constant 0 : index
    %c0_327 = arith.constant 0 : index
    %754 = vector.load %arg14[%c3_325, %c0_326, %c0_327] : memref<4x1x32xf32, #tpu.memory_space<vmem>>, vector<1x1x32xf32>
    %755 = vector.shape_cast %754 : vector<1x1x32xf32> to vector<1x32xf32>
    %c3_328 = arith.constant 3 : index
    %c0_329 = arith.constant 0 : index
    %c0_330 = arith.constant 0 : index
    %756 = vector.load %arg15[%c3_328, %c0_329, %c0_330] : memref<4x1x32xf32, #tpu.memory_space<vmem>>, vector<1x1x32xf32>
    %757 = vector.shape_cast %756 : vector<1x1x32xf32> to vector<1x32xf32>
    %cst_331 = arith.constant dense<0.000000e+00> : vector<8xf32>
    %758 = vector.multi_reduction <add>, %753, %cst_331 [1] : vector<8x32xf32> to vector<8xf32>
    %759 = vector.shape_cast %758 : vector<8xf32> to vector<8x1xf32>
    %cst_332 = arith.constant 3.200000e+01 : f32
    %760 = vector.broadcast %cst_332 : f32 to vector<8x1xf32>
    %761 = arith.divf %759, %760 : vector<8x1xf32>
    %762 = vector.broadcast %761 : vector<8x1xf32> to vector<8x32xf32>
    %763 = arith.subf %753, %762 : vector<8x32xf32>
    %764 = arith.mulf %763, %763 : vector<8x32xf32>
    %cst_333 = arith.constant dense<0.000000e+00> : vector<8xf32>
    %765 = vector.multi_reduction <add>, %764, %cst_333 [1] : vector<8x32xf32> to vector<8xf32>
    %766 = vector.shape_cast %765 : vector<8xf32> to vector<8x1xf32>
    %cst_334 = arith.constant 3.200000e+01 : f32
    %767 = vector.broadcast %cst_334 : f32 to vector<8x1xf32>
    %768 = arith.divf %766, %767 : vector<8x1xf32>
    %769 = vector.broadcast %761 : vector<8x1xf32> to vector<8x32xf32>
    %770 = arith.subf %753, %769 : vector<8x32xf32>
    %cst_335 = arith.constant 9.99999974E-6 : f32
    %771 = vector.broadcast %cst_335 : f32 to vector<8x1xf32>
    %772 = arith.addf %768, %771 : vector<8x1xf32>
    %773 = math.rsqrt %772 : vector<8x1xf32>
    %774 = vector.broadcast %773 : vector<8x1xf32> to vector<8x32xf32>
    %775 = arith.mulf %770, %774 : vector<8x32xf32>
    %776 = vector.broadcast %755 : vector<1x32xf32> to vector<8x32xf32>
    %777 = arith.mulf %775, %776 : vector<8x32xf32>
    %778 = vector.broadcast %757 : vector<1x32xf32> to vector<8x32xf32>
    %779 = arith.addf %777, %778 : vector<8x32xf32>
    %c3_336 = arith.constant 3 : index
    %c0_337 = arith.constant 0 : index
    %c0_338 = arith.constant 0 : index
    %780 = vector.load %arg16[%c3_336, %c0_337, %c0_338] : memref<4x32x128xf32, #tpu.memory_space<vmem>>, vector<1x32x128xf32>
    %781 = vector.shape_cast %780 : vector<1x32x128xf32> to vector<32x128xf32>
    %cst_339 = arith.constant dense<0.000000e+00> : vector<8x128xf32>
    %782 = tpu.matmul %779, %781, %cst_339 {dimension_numbers = #tpu.dot_dimension_numbers<[1], [0], [0], [1], [0, 0, 1, 1], [], []>} : vector<8x32xf32>, vector<32x128xf32>, vector<8x128xf32> -> vector<8x128xf32>
    %c3_340 = arith.constant 3 : index
    %c0_341 = arith.constant 0 : index
    %c0_342 = arith.constant 0 : index
    %783 = vector.load %arg17[%c3_340, %c0_341, %c0_342] : memref<4x1x128xf32, #tpu.memory_space<vmem>>, vector<1x1x128xf32>
    %784 = vector.shape_cast %783 : vector<1x1x128xf32> to vector<1x128xf32>
    %785 = vector.broadcast %784 : vector<1x128xf32> to vector<8x128xf32>
    %786 = arith.addf %782, %785 : vector<8x128xf32>
    %cst_343 = arith.constant 5.000000e-01 : f32
    %787 = vector.broadcast %cst_343 : f32 to vector<8x128xf32>
    %788 = arith.mulf %787, %786 : vector<8x128xf32>
    %cst_344 = arith.constant 4.471500e-02 : f32
    %789 = vector.broadcast %cst_344 : f32 to vector<8x128xf32>
    %790 = arith.mulf %789, %786 : vector<8x128xf32>
    %791 = arith.mulf %790, %786 : vector<8x128xf32>
    %792 = arith.mulf %791, %786 : vector<8x128xf32>
    %793 = arith.addf %786, %792 : vector<8x128xf32>
    %cst_345 = arith.constant 0.797884583 : f32
    %794 = vector.broadcast %cst_345 : f32 to vector<8x128xf32>
    %795 = arith.mulf %794, %793 : vector<8x128xf32>
    %796 = math.tanh %795 : vector<8x128xf32>
    %cst_346 = arith.constant 1.000000e+00 : f32
    %797 = vector.broadcast %cst_346 : f32 to vector<8x128xf32>
    %798 = arith.addf %797, %796 : vector<8x128xf32>
    %799 = arith.mulf %788, %798 : vector<8x128xf32>
    %c3_347 = arith.constant 3 : index
    %c0_348 = arith.constant 0 : index
    %c0_349 = arith.constant 0 : index
    %800 = vector.load %arg18[%c3_347, %c0_348, %c0_349] : memref<4x128x32xf32, #tpu.memory_space<vmem>>, vector<1x128x32xf32>
    %801 = vector.shape_cast %800 : vector<1x128x32xf32> to vector<128x32xf32>
    %cst_350 = arith.constant dense<0.000000e+00> : vector<8x32xf32>
    %802 = tpu.matmul %799, %801, %cst_350 {dimension_numbers = #tpu.dot_dimension_numbers<[1], [0], [0], [1], [0, 0, 1, 1], [], []>} : vector<8x128xf32>, vector<128x32xf32>, vector<8x32xf32> -> vector<8x32xf32>
    %803 = arith.addf %753, %802 : vector<8x32xf32>
    %c3_351 = arith.constant 3 : index
    %c0_352 = arith.constant 0 : index
    %c0_353 = arith.constant 0 : index
    %804 = vector.load %arg19[%c3_351, %c0_352, %c0_353] : memref<4x1x32xf32, #tpu.memory_space<vmem>>, vector<1x1x32xf32>
    %805 = vector.shape_cast %804 : vector<1x1x32xf32> to vector<1x32xf32>
    %806 = vector.broadcast %805 : vector<1x32xf32> to vector<8x32xf32>
    %807 = arith.addf %803, %806 : vector<8x32xf32>
    %c0_354 = arith.constant 0 : index
    %c0_355 = arith.constant 0 : index
    %808 = vector.load %arg20[%c0_354, %c0_355] : memref<1x32xf32, #tpu.memory_space<vmem>>, vector<1x32xf32>
    %c0_356 = arith.constant 0 : index
    %c0_357 = arith.constant 0 : index
    %809 = vector.load %arg21[%c0_356, %c0_357] : memref<1x32xf32, #tpu.memory_space<vmem>>, vector<1x32xf32>
    %cst_358 = arith.constant dense<0.000000e+00> : vector<8xf32>
    %810 = vector.multi_reduction <add>, %807, %cst_358 [1] : vector<8x32xf32> to vector<8xf32>
    %811 = vector.shape_cast %810 : vector<8xf32> to vector<8x1xf32>
    %cst_359 = arith.constant 3.200000e+01 : f32
    %812 = vector.broadcast %cst_359 : f32 to vector<8x1xf32>
    %813 = arith.divf %811, %812 : vector<8x1xf32>
    %814 = vector.broadcast %813 : vector<8x1xf32> to vector<8x32xf32>
    %815 = arith.subf %807, %814 : vector<8x32xf32>
    %816 = arith.mulf %815, %815 : vector<8x32xf32>
    %cst_360 = arith.constant dense<0.000000e+00> : vector<8xf32>
    %817 = vector.multi_reduction <add>, %816, %cst_360 [1] : vector<8x32xf32> to vector<8xf32>
    %818 = vector.shape_cast %817 : vector<8xf32> to vector<8x1xf32>
    %cst_361 = arith.constant 3.200000e+01 : f32
    %819 = vector.broadcast %cst_361 : f32 to vector<8x1xf32>
    %820 = arith.divf %818, %819 : vector<8x1xf32>
    %821 = vector.broadcast %813 : vector<8x1xf32> to vector<8x32xf32>
    %822 = arith.subf %807, %821 : vector<8x32xf32>
    %cst_362 = arith.constant 9.99999974E-6 : f32
    %823 = vector.broadcast %cst_362 : f32 to vector<8x1xf32>
    %824 = arith.addf %820, %823 : vector<8x1xf32>
    %825 = math.rsqrt %824 : vector<8x1xf32>
    %826 = vector.broadcast %825 : vector<8x1xf32> to vector<8x32xf32>
    %827 = arith.mulf %822, %826 : vector<8x32xf32>
    %828 = vector.broadcast %808 : vector<1x32xf32> to vector<8x32xf32>
    %829 = arith.mulf %827, %828 : vector<8x32xf32>
    %830 = vector.broadcast %809 : vector<1x32xf32> to vector<8x32xf32>
    %831 = arith.addf %829, %830 : vector<8x32xf32>
    %c0_363 = arith.constant 0 : index
    %c0_364 = arith.constant 0 : index
    %c0_365 = arith.constant 0 : index
    %832 = vector.load %arg22[%c0_363, %c0_364, %c0_365] : memref<1x8x32xf32, #tpu.memory_space<vmem>>, vector<1x8x32xf32>
    %833 = vector.shape_cast %832 : vector<1x8x32xf32> to vector<8x32xf32>
    %834 = vector.shape_cast %831 : vector<8x32xf32> to vector<1x8x32xf32>
    tpu.vector_store %arg22[%c0_363, %c0_364, %c0_365], %834 {strides = array<i32>} : memref<1x8x32xf32, #tpu.memory_space<vmem>>, vector<1x8x32xf32>,
    return
  }
  func.func @transform_0(%arg0: i32) -> (i32, i32, i32) {
    %c0_i32 = arith.constant 0 : i32
    %c0_i32_0 = arith.constant 0 : i32
    %c0_i32_1 = arith.constant 0 : i32
    return %arg0, %c0_i32, %c0_i32_0 : i32, i32, i32
  }
  func.func @transform_1(%arg0: i32) -> (i32, i32, i32) {
    %c0_i32 = arith.constant 0 : i32
    %c0_i32_0 = arith.constant 0 : i32
    %c0_i32_1 = arith.constant 0 : i32
    return %arg0, %c0_i32, %c0_i32_0 : i32, i32, i32
  }
  func.func @transform_2(%arg0: i32) -> (i32, i32) {
    %c0_i32 = arith.constant 0 : i32
    %c0_i32_0 = arith.constant 0 : i32
    %c0_i32_1 = arith.constant 0 : i32
    return %c0_i32, %c0_i32_0 : i32, i32
  }
  func.func @transform_3(%arg0: i32) -> (i32, i32) {
    %c0_i32 = arith.constant 0 : i32
    %c0_i32_0 = arith.constant 0 : i32
    %c0_i32_1 = arith.constant 0 : i32
    return %c0_i32, %c0_i32_0 : i32, i32
  }
  func.func @transform_4(%arg0: i32) -> (i32, i32) {
    %c0_i32 = arith.constant 0 : i32
    %c0_i32_0 = arith.constant 0 : i32
    %c0_i32_1 = arith.constant 0 : i32
    return %c0_i32, %c0_i32_0 : i32, i32
  }
  func.func @transform_5(%arg0: i32) -> (i32, i32, i32) {
    %c0_i32 = arith.constant 0 : i32
    %c0_i32_0 = arith.constant 0 : i32
    %c0_i32_1 = arith.constant 0 : i32
    %c0_i32_2 = arith.constant 0 : i32
    return %c0_i32, %c0_i32_0, %c0_i32_1 : i32, i32, i32
  }
  func.func @transform_6(%arg0: i32) -> (i32, i32) {
    %c0_i32 = arith.constant 0 : i32
    %c0_i32_0 = arith.constant 0 : i32
    %c0_i32_1 = arith.constant 0 : i32
    return %c0_i32, %c0_i32_0 : i32, i32
  }
  func.func @transform_7(%arg0: i32) -> (i32, i32, i32) {
    %c0_i32 = arith.constant 0 : i32
    %c0_i32_0 = arith.constant 0 : i32
    %c0_i32_1 = arith.constant 0 : i32
    %c0_i32_2 = arith.constant 0 : i32
    return %c0_i32, %c0_i32_0, %c0_i32_1 : i32, i32, i32
  }
  func.func @transform_8(%arg0: i32) -> (i32, i32, i32) {
    %c0_i32 = arith.constant 0 : i32
    %c0_i32_0 = arith.constant 0 : i32
    %c0_i32_1 = arith.constant 0 : i32
    %c0_i32_2 = arith.constant 0 : i32
    return %c0_i32, %c0_i32_0, %c0_i32_1 : i32, i32, i32
  }
  func.func @transform_9(%arg0: i32) -> (i32, i32, i32) {
    %c0_i32 = arith.constant 0 : i32
    %c0_i32_0 = arith.constant 0 : i32
    %c0_i32_1 = arith.constant 0 : i32
    %c0_i32_2 = arith.constant 0 : i32
    return %c0_i32, %c0_i32_0, %c0_i32_1 : i32, i32, i32
  }
  func.func @transform_10(%arg0: i32) -> (i32, i32, i32) {
    %c0_i32 = arith.constant 0 : i32
    %c0_i32_0 = arith.constant 0 : i32
    %c0_i32_1 = arith.constant 0 : i32
    %c0_i32_2 = arith.constant 0 : i32
    return %c0_i32, %c0_i32_0, %c0_i32_1 : i32, i32, i32
  }
  func.func @transform_11(%arg0: i32) -> (i32, i32, i32) {
    %c0_i32 = arith.constant 0 : i32
    %c0_i32_0 = arith.constant 0 : i32
    %c0_i32_1 = arith.constant 0 : i32
    %c0_i32_2 = arith.constant 0 : i32
    return %c0_i32, %c0_i32_0, %c0_i32_1 : i32, i32, i32
  }
  func.func @transform_12(%arg0: i32) -> (i32, i32, i32) {
    %c0_i32 = arith.constant 0 : i32
    %c0_i32_0 = arith.constant 0 : i32
    %c0_i32_1 = arith.constant 0 : i32
    %c0_i32_2 = arith.constant 0 : i32
    return %c0_i32, %c0_i32_0, %c0_i32_1 : i32, i32, i32
  }
  func.func @transform_13(%arg0: i32) -> (i32, i32, i32) {
    %c0_i32 = arith.constant 0 : i32
    %c0_i32_0 = arith.constant 0 : i32
    %c0_i32_1 = arith.constant 0 : i32
    %c0_i32_2 = arith.constant 0 : i32
    return %c0_i32, %c0_i32_0, %c0_i32_1 : i32, i32, i32
  }
  func.func @transform_14(%arg0: i32) -> (i32, i32, i32) {
    %c0_i32 = arith.constant 0 : i32
    %c0_i32_0 = arith.constant 0 : i32
    %c0_i32_1 = arith.constant 0 : i32
    %c0_i32_2 = arith.constant 0 : i32
    return %c0_i32, %c0_i32_0, %c0_i32_1 : i32, i32, i32
  }
  func.func @transform_15(%arg0: i32) -> (i32, i32, i32) {
    %c0_i32 = arith.constant 0 : i32
    %c0_i32_0 = arith.constant 0 : i32
    %c0_i32_1 = arith.constant 0 : i32
    %c0_i32_2 = arith.constant 0 : i32
    return %c0_i32, %c0_i32_0, %c0_i32_1 : i32, i32, i32
  }
  func.func @transform_16(%arg0: i32) -> (i32, i32, i32) {
    %c0_i32 = arith.constant 0 : i32
    %c0_i32_0 = arith.constant 0 : i32
    %c0_i32_1 = arith.constant 0 : i32
    %c0_i32_2 = arith.constant 0 : i32
    return %c0_i32, %c0_i32_0, %c0_i32_1 : i32, i32, i32
  }
  func.func @transform_17(%arg0: i32) -> (i32, i32, i32) {
    %c0_i32 = arith.constant 0 : i32
    %c0_i32_0 = arith.constant 0 : i32
    %c0_i32_1 = arith.constant 0 : i32
    %c0_i32_2 = arith.constant 0 : i32
    return %c0_i32, %c0_i32_0, %c0_i32_1 : i32, i32, i32
  }
  func.func @transform_18(%arg0: i32) -> (i32, i32, i32) {
    %c0_i32 = arith.constant 0 : i32
    %c0_i32_0 = arith.constant 0 : i32
    %c0_i32_1 = arith.constant 0 : i32
    %c0_i32_2 = arith.constant 0 : i32
    return %c0_i32, %c0_i32_0, %c0_i32_1 : i32, i32, i32
  }
  func.func @transform_19(%arg0: i32) -> (i32, i32) {
    %c0_i32 = arith.constant 0 : i32
    %c0_i32_0 = arith.constant 0 : i32
    %c0_i32_1 = arith.constant 0 : i32
    return %c0_i32, %c0_i32_0 : i32, i32
  }
  func.func @transform_20(%arg0: i32) -> (i32, i32) {
    %c0_i32 = arith.constant 0 : i32
    %c0_i32_0 = arith.constant 0 : i32
    %c0_i32_1 = arith.constant 0 : i32
    return %c0_i32, %c0_i32_0 : i32, i32
  }
  func.func @transform_21(%arg0: i32) -> (i32, i32, i32) {
    %c0_i32 = arith.constant 0 : i32
    %c0_i32_0 = arith.constant 0 : i32
    %c0_i32_1 = arith.constant 0 : i32
    return %arg0, %c0_i32, %c0_i32_0 : i32, i32, i32
  }
}

</mosaic_0001>

<llo_original>
// kernel: tpu_custom_call.1
$region0: #{tpu_custom_call.1}
  #allocation0 [shape = 'u32[]', space=smem, size = 0x4, offset = 0x4, fixed_abs, tag = 'smem constant byte address 0x4 - core index']
  #allocation1 [shape = 'u32[72,128]{1,0:T(1,128)}', space=vmem, size = 0x9000, scoped, tag = 'internal scratch']
  %s0 = inlined_call_operand.vmem [shape: s32[2,8,1], index: 0, kind: input, shape index: {}]
  %s1 = inlined_call_operand.vmem [shape: f32[2,1,8], index: 1, kind: input, shape index: {}]
  %s2 = inlined_call_operand.vmem [shape: f32[8,32], index: 2, kind: input, shape index: {}]
  %s3 = inlined_call_operand.vmem [shape: f32[8,32], index: 3, kind: input, shape index: {}]
  %s4 = inlined_call_operand.vmem [shape: f32[32,32], index: 4, kind: input, shape index: {}]
  %s5 = inlined_call_operand.vmem [shape: f32[4,1,32], index: 5, kind: input, shape index: {}]
  %s6 = inlined_call_operand.vmem [shape: f32[33,32], index: 6, kind: input, shape index: {}]
  %s7 = inlined_call_operand.vmem [shape: f32[4,1,32], index: 7, kind: input, shape index: {}]
  %s8 = inlined_call_operand.vmem [shape: f32[4,1,32], index: 8, kind: input, shape index: {}]
  %s9 = inlined_call_operand.vmem [shape: f32[4,32,96], index: 9, kind: input, shape index: {}]
  %s10 = inlined_call_operand.vmem [shape: f32[4,1,96], index: 10, kind: input, shape index: {}]
  %s11 = inlined_call_operand.vmem [shape: f32[4,32,32], index: 11, kind: input, shape index: {}]
  %s12 = inlined_call_operand.vmem [shape: f32[4,1,32], index: 12, kind: input, shape index: {}]
  %s13 = inlined_call_operand.vmem [shape: f32[4,1,32], index: 13, kind: input, shape index: {}]
  %s14 = inlined_call_operand.vmem [shape: f32[4,1,32], index: 14, kind: input, shape index: {}]
  %s15 = inlined_call_operand.vmem [shape: f32[4,32,128], index: 15, kind: input, shape index: {}]
  %s16 = inlined_call_operand.vmem [shape: f32[4,1,128], index: 16, kind: input, shape index: {}]
  %s17 = inlined_call_operand.vmem [shape: f32[4,128,32], index: 17, kind: input, shape index: {}]
  %s18 = inlined_call_operand.vmem [shape: f32[4,1,32], index: 18, kind: input, shape index: {}]
  %s19 = inlined_call_operand.vmem [shape: f32[1,32], index: 19, kind: input, shape index: {}]
  %s20 = inlined_call_operand.vmem [shape: f32[1,32], index: 20, kind: input, shape index: {}]
  %s21 = inlined_call_operand.hbm [shape: f32[2,8,32], index: 21, kind: output, shape index: {}]
  %s22 = sld [smem:[#allocation0]]
  $region117: #{tpu_custom_call.1} parent=0
    _
  %s24 = ssub.s32 1, %s22
  %s25 = scalar_select 0, %s24, %s22
  $region1: #{tpu_custom_call.1} parent=0
    #allocation2 [shape = 'u8[8192]{0}', space=vmem, size = 0x2000, scoped, tag = 'output window, operand 0']
    #allocation3 [shape = 's32[2]{0}', space=sflag, size = 0x8, scoped, tag = 'scoped memory for tpu_custom_call.1']
    %26 = vsyncpa [#allocation3], 0
    %s27 = scalar_lea.sflag [#allocation3], 1
    %28 = vsyncpa %s27, 0
    loop: start=0, step=1, limit=4
    $region2: #{tpu_custom_call.1} parent=1 // loop_pre_header
      _
    $region3: #{tpu_custom_call.1} parent=1 // loop_header
      %s30 = sphi 0, %s34
      %p31 = scmp.ge.s32.totalorder %s30, 4
      %s40 = sphi 0, %s42
      %s43 = sphi 0, %s40
      %s44 = sphi 0, %s43
      %s60 = sphi 0, %s44
      %s66 = sphi 0, %s68
      %s69 = sphi 0, %s66
      %s70 = sphi 0, %s69
      %s86 = sphi 0, %s70
      %s90 = sphi 0, %s90
      %s92 = sphi 0, %s90
      %s93 = sphi 0, %s92
      %s107 = sphi 0, %s93
      %s111 = sphi 0, %s111
      %s113 = sphi 0, %s111
      %s114 = sphi 0, %s113
      %s128 = sphi 0, %s114
      %s132 = sphi 0, %s132
      %s134 = sphi 0, %s132
      %s135 = sphi 0, %s134
      %s149 = sphi 0, %s135
      %s153 = sphi 0, %s153
      %s155 = sphi 0, %s153
      %s156 = sphi 0, %s155
      %s170 = sphi 0, %s156
      %s174 = sphi 0, %s174
      %s176 = sphi 0, %s174
      %s177 = sphi 0, %s176
      %s191 = sphi 0, %s177
      %s195 = sphi 0, %s195
      %s197 = sphi 0, %s195
      %s198 = sphi 0, %s197
      %s212 = sphi 0, %s198
      %s216 = sphi 0, %s216
      %s218 = sphi 0, %s216
      %s219 = sphi 0, %s218
      %s233 = sphi 0, %s219
      %s237 = sphi 0, %s237
      %s239 = sphi 0, %s237
      %s240 = sphi 0, %s239
      %s254 = sphi 0, %s240
      %s258 = sphi 0, %s258
      %s260 = sphi 0, %s258
      %s261 = sphi 0, %s260
      %s275 = sphi 0, %s261
      %s279 = sphi 0, %s279
      %s281 = sphi 0, %s279
      %s282 = sphi 0, %s281
      %s296 = sphi 0, %s282
      %s300 = sphi 0, %s300
      %s302 = sphi 0, %s300
      %s303 = sphi 0, %s302
      %s317 = sphi 0, %s303
      %s321 = sphi 0, %s321
      %s323 = sphi 0, %s321
      %s324 = sphi 0, %s323
      %s338 = sphi 0, %s324
      %s342 = sphi 0, %s342
      %s344 = sphi 0, %s342
      %s345 = sphi 0, %s344
      %s359 = sphi 0, %s345
      %s363 = sphi 0, %s363
      %s365 = sphi 0, %s363
      %s366 = sphi 0, %s365
      %s380 = sphi 0, %s366
      %s384 = sphi 0, %s384
      %s386 = sphi 0, %s384
      %s387 = sphi 0, %s386
      %s401 = sphi 0, %s387
      %s405 = sphi 0, %s405
      %s407 = sphi 0, %s405
      %s408 = sphi 0, %s407
      %s422 = sphi 0, %s408
      %s426 = sphi 0, %s426
      %s428 = sphi 0, %s426
      %s429 = sphi 0, %s428
      %s443 = sphi 0, %s429
      %s447 = sphi 0, %s447
      %s449 = sphi 0, %s447
      %s450 = sphi 0, %s449
      %s464 = sphi 0, %s450
      %s468 = sphi 0, %s468
      %s470 = sphi 0, %s468
      %s471 = sphi 0, %s470
      %s485 = sphi 0, %s471
      %s491 = sphi 0, %s493
      %s494 = sphi 0, %s491
      %s495 = sphi 0, %s494
      %s511 = sphi 0, %s495
    $region4: #{tpu_custom_call.1} parent=1 // loop_header_branch
      %33 = sbr.rel (%p31) target = $region8
    $region5: #{tpu_custom_call.1} parent=1 // loop_body
      %s35 = ssub.s32 %s30, 1
      %s36 = ssub.s32 %s30, 2
      %s37 = sadd.s32 %s30, 1
      %s38 = ssub.s32 %s30, %s37
      %p39 = scmp.eq.s32.totalorder %s38, 0
      %s41 = sadd.s32 %s40, 1
      %s42 = scalar_select %p39, %s40, %s41
      %p45 = pneg %p39
      %p46 = scmp.eq.s32.totalorder %s30, 1
      %p47 = por %p45, %p46
      %p48 = scmp.ne.s32.totalorder %s40, %s43
      %p49 = scmp.eq.s32.totalorder %s30, 0
      %p50 = por %p48, %p49
      %p51 = scmp.ne.s32.totalorder %s40, %s43
      %p52 = scmp.eq.s32.totalorder %s35, 1
      %p53 = por %p51, %p52
      %p54 = scmp.ne.s32.totalorder %s43, %s44
      %p55 = scmp.eq.s32.totalorder %s35, 0
      %p56 = por %p54, %p55
      %p57 = scmp.ne.s32.totalorder %s43, %s44
      %p58 = scmp.eq.s32.totalorder %s36, 1
      %p59 = por %p57, %p58
      %p61 = scmp.ne.s32.totalorder %s44, %s60
      %p62 = scmp.eq.s32.totalorder %s36, 0
      %p63 = por %p61, %p62
      %s64 = ssub.s32 %s30, %s37
      %p65 = scmp.eq.s32.totalorder %s64, 0
      %s67 = sadd.s32 %s66, 1
      %s68 = scalar_select %p65, %s66, %s67
      %p71 = pneg %p65
      %p72 = scmp.eq.s32.totalorder %s30, 1
      %p73 = por %p71, %p72
      %p74 = scmp.ne.s32.totalorder %s66, %s69
      %p75 = scmp.eq.s32.totalorder %s30, 0
      %p76 = por %p74, %p75
      %p77 = scmp.ne.s32.totalorder %s66, %s69
      %p78 = scmp.eq.s32.totalorder %s35, 1
      %p79 = por %p77, %p78
      %p80 = scmp.ne.s32.totalorder %s69, %s70
      %p81 = scmp.eq.s32.totalorder %s35, 0
      %p82 = por %p80, %p81
      %p83 = scmp.ne.s32.totalorder %s69, %s70
      %p84 = scmp.eq.s32.totalorder %s36, 1
      %p85 = por %p83, %p84
      %p87 = scmp.ne.s32.totalorder %s70, %s86
      %p88 = scmp.eq.s32.totalorder %s36, 0
      %p89 = por %p87, %p88
      %s91 = sadd.s32 %s90, 1
      %p94 = scmp.eq.s32.totalorder %s30, 1
      %p95 = scmp.ne.s32.totalorder %s90, %s92
      %p96 = scmp.eq.s32.totalorder %s30, 0
      %p97 = por %p95, %p96
      %p98 = scmp.ne.s32.totalorder %s90, %s92
      %p99 = scmp.eq.s32.totalorder %s35, 1
      %p100 = por %p98, %p99
      %p101 = scmp.ne.s32.totalorder %s92, %s93
      %p102 = scmp.eq.s32.totalorder %s35, 0
      %p103 = por %p101, %p102
      %p104 = scmp.ne.s32.totalorder %s92, %s93
      %p105 = scmp.eq.s32.totalorder %s36, 1
      %p106 = por %p104, %p105
      %p108 = scmp.ne.s32.totalorder %s93, %s107
      %p109 = scmp.eq.s32.totalorder %s36, 0
      %p110 = por %p108, %p109
      %s112 = sadd.s32 %s111, 1
      %p115 = scmp.eq.s32.totalorder %s30, 1
      %p116 = scmp.ne.s32.totalorder %s111, %s113
      %p117 = scmp.eq.s32.totalorder %s30, 0
      %p118 = por %p116, %p117
      %p119 = scmp.ne.s32.totalorder %s111, %s113
      %p120 = scmp.eq.s32.totalorder %s35, 1
      %p121 = por %p119, %p120
      %p122 = scmp.ne.s32.totalorder %s113, %s114
      %p123 = scmp.eq.s32.totalorder %s35, 0
      %p124 = por %p122, %p123
      %p125 = scmp.ne.s32.totalorder %s113, %s114
      %p126 = scmp.eq.s32.totalorder %s36, 1
      %p127 = por %p125, %p126
      %p129 = scmp.ne.s32.totalorder %s114, %s128
      %p130 = scmp.eq.s32.totalorder %s36, 0
      %p131 = por %p129, %p130
      %s133 = sadd.s32 %s132, 1
      %p136 = scmp.eq.s32.totalorder %s30, 1
      %p137 = scmp.ne.s32.totalorder %s132, %s134
      %p138 = scmp.eq.s32.totalorder %s30, 0
      %p139 = por %p137, %p138
      %p140 = scmp.ne.s32.totalorder %s132, %s134
      %p141 = scmp.eq.s32.totalorder %s35, 1
      %p142 = por %p140, %p141
      %p143 = scmp.ne.s32.totalorder %s134, %s135
      %p144 = scmp.eq.s32.totalorder %s35, 0
      %p145 = por %p143, %p144
      %p146 = scmp.ne.s32.totalorder %s134, %s135
      %p147 = scmp.eq.s32.totalorder %s36, 1
      %p148 = por %p146, %p147
      %p150 = scmp.ne.s32.totalorder %s135, %s149
      %p151 = scmp.eq.s32.totalorder %s36, 0
      %p152 = por %p150, %p151
      %s154 = sadd.s32 %s153, 1
      %p157 = scmp.eq.s32.totalorder %s30, 1
      %p158 = scmp.ne.s32.totalorder %s153, %s155
      %p159 = scmp.eq.s32.totalorder %s30, 0
      %p160 = por %p158, %p159
      %p161 = scmp.ne.s32.totalorder %s153, %s155
      %p162 = scmp.eq.s32.totalorder %s35, 1
      %p163 = por %p161, %p162
      %p164 = scmp.ne.s32.totalorder %s155, %s156
      %p165 = scmp.eq.s32.totalorder %s35, 0
      %p166 = por %p164, %p165
      %p167 = scmp.ne.s32.totalorder %s155, %s156
      %p168 = scmp.eq.s32.totalorder %s36, 1
      %p169 = por %p167, %p168
      %p171 = scmp.ne.s32.totalorder %s156, %s170
      %p172 = scmp.eq.s32.totalorder %s36, 0
      %p173 = por %p171, %p172
      %s175 = sadd.s32 %s174, 1
      %p178 = scmp.eq.s32.totalorder %s30, 1
      %p179 = scmp.ne.s32.totalorder %s174, %s176
      %p180 = scmp.eq.s32.totalorder %s30, 0
      %p181 = por %p179, %p180
      %p182 = scmp.ne.s32.totalorder %s174, %s176
      %p183 = scmp.eq.s32.totalorder %s35, 1
      %p184 = por %p182, %p183
      %p185 = scmp.ne.s32.totalorder %s176, %s177
      %p186 = scmp.eq.s32.totalorder %s35, 0
      %p187 = por %p185, %p186
      %p188 = scmp.ne.s32.totalorder %s176, %s177
      %p189 = scmp.eq.s32.totalorder %s36, 1
      %p190 = por %p188, %p189
      %p192 = scmp.ne.s32.totalorder %s177, %s191
      %p193 = scmp.eq.s32.totalorder %s36, 0
      %p194 = por %p192, %p193
      %s196 = sadd.s32 %s195, 1
      %p199 = scmp.eq.s32.totalorder %s30, 1
      %p200 = scmp.ne.s32.totalorder %s195, %s197
      %p201 = scmp.eq.s32.totalorder %s30, 0
      %p202 = por %p200, %p201
      %p203 = scmp.ne.s32.totalorder %s195, %s197
      %p204 = scmp.eq.s32.totalorder %s35, 1
      %p205 = por %p203, %p204
      %p206 = scmp.ne.s32.totalorder %s197, %s198
      %p207 = scmp.eq.s32.totalorder %s35, 0
      %p208 = por %p206, %p207
      %p209 = scmp.ne.s32.totalorder %s197, %s198
      %p210 = scmp.eq.s32.totalorder %s36, 1
      %p211 = por %p209, %p210
      %p213 = scmp.ne.s32.totalorder %s198, %s212
      %p214 = scmp.eq.s32.totalorder %s36, 0
      %p215 = por %p213, %p214
      %s217 = sadd.s32 %s216, 1
      %p220 = scmp.eq.s32.totalorder %s30, 1
      %p221 = scmp.ne.s32.totalorder %s216, %s218
      %p222 = scmp.eq.s32.totalorder %s30, 0
      %p223 = por %p221, %p222
      %p224 = scmp.ne.s32.totalorder %s216, %s218
      %p225 = scmp.eq.s32.totalorder %s35, 1
      %p226 = por %p224, %p225
      %p227 = scmp.ne.s32.totalorder %s218, %s219
      %p228 = scmp.eq.s32.totalorder %s35, 0
      %p229 = por %p227, %p228
      %p230 = scmp.ne.s32.totalorder %s218, %s219
      %p231 = scmp.eq.s32.totalorder %s36, 1
      %p232 = por %p230, %p231
      %p234 = scmp.ne.s32.totalorder %s219, %s233
      %p235 = scmp.eq.s32.totalorder %s36, 0
      %p236 = por %p234, %p235
      %s238 = sadd.s32 %s237, 1
      %p241 = scmp.eq.s32.totalorder %s30, 1
      %p242 = scmp.ne.s32.totalorder %s237, %s239
      %p243 = scmp.eq.s32.totalorder %s30, 0
      %p244 = por %p242, %p243
      %p245 = scmp.ne.s32.totalorder %s237, %s239
      %p246 = scmp.eq.s32.totalorder %s35, 1
      %p247 = por %p245, %p246
      %p248 = scmp.ne.s32.totalorder %s239, %s240
      %p249 = scmp.eq.s32.totalorder %s35, 0
      %p250 = por %p248, %p249
      %p251 = scmp.ne.s32.totalorder %s239, %s240
      %p252 = scmp.eq.s32.totalorder %s36, 1
      %p253 = por %p251, %p252
      %p255 = scmp.ne.s32.totalorder %s240, %s254
      %p256 = scmp.eq.s32.totalorder %s36, 0
      %p257 = por %p255, %p256
      %s259 = sadd.s32 %s258, 1
      %p262 = scmp.eq.s32.totalorder %s30, 1
      %p263 = scmp.ne.s32.totalorder %s258, %s260
      %p264 = scmp.eq.s32.totalorder %s30, 0
      %p265 = por %p263, %p264
      %p266 = scmp.ne.s32.totalorder %s258, %s260
      %p267 = scmp.eq.s32.totalorder %s35, 1
      %p268 = por %p266, %p267
      %p269 = scmp.ne.s32.totalorder %s260, %s261
      %p270 = scmp.eq.s32.totalorder %s35, 0
      %p271 = por %p269, %p270
      %p272 = scmp.ne.s32.totalorder %s260, %s261
      %p273 = scmp.eq.s32.totalorder %s36, 1
      %p274 = por %p272, %p273
      %p276 = scmp.ne.s32.totalorder %s261, %s275
      %p277 = scmp.eq.s32.totalorder %s36, 0
      %p278 = por %p276, %p277
      %s280 = sadd.s32 %s279, 1
      %p283 = scmp.eq.s32.totalorder %s30, 1
      %p284 = scmp.ne.s32.totalorder %s279, %s281
      %p285 = scmp.eq.s32.totalorder %s30, 0
      %p286 = por %p284, %p285
      %p287 = scmp.ne.s32.totalorder %s279, %s281
      %p288 = scmp.eq.s32.totalorder %s35, 1
      %p289 = por %p287, %p288
      %p290 = scmp.ne.s32.totalorder %s281, %s282
      %p291 = scmp.eq.s32.totalorder %s35, 0
      %p292 = por %p290, %p291
      %p293 = scmp.ne.s32.totalorder %s281, %s282
      %p294 = scmp.eq.s32.totalorder %s36, 1
      %p295 = por %p293, %p294
      %p297 = scmp.ne.s32.totalorder %s282, %s296
      %p298 = scmp.eq.s32.totalorder %s36, 0
      %p299 = por %p297, %p298
      %s301 = sadd.s32 %s300, 1
      %p304 = scmp.eq.s32.totalorder %s30, 1
      %p305 = scmp.ne.s32.totalorder %s300, %s302
      %p306 = scmp.eq.s32.totalorder %s30, 0
      %p307 = por %p305, %p306
      %p308 = scmp.ne.s32.totalorder %s300, %s302
      %p309 = scmp.eq.s32.totalorder %s35, 1
      %p310 = por %p308, %p309
      %p311 = scmp.ne.s32.totalorder %s302, %s303
      %p312 = scmp.eq.s32.totalorder %s35, 0
      %p313 = por %p311, %p312
      %p314 = scmp.ne.s32.totalorder %s302, %s303
      %p315 = scmp.eq.s32.totalorder %s36, 1
      %p316 = por %p314, %p315
      %p318 = scmp.ne.s32.totalorder %s303, %s317
      %p319 = scmp.eq.s32.totalorder %s36, 0
      %p320 = por %p318, %p319
      %s322 = sadd.s32 %s321, 1
      %p325 = scmp.eq.s32.totalorder %s30, 1
      %p326 = scmp.ne.s32.totalorder %s321, %s323
      %p327 = scmp.eq.s32.totalorder %s30, 0
      %p328 = por %p326, %p327
      %p329 = scmp.ne.s32.totalorder %s321, %s323
      %p330 = scmp.eq.s32.totalorder %s35, 1
      %p331 = por %p329, %p330
      %p332 = scmp.ne.s32.totalorder %s323, %s324
      %p333 = scmp.eq.s32.totalorder %s35, 0
      %p334 = por %p332, %p333
      %p335 = scmp.ne.s32.totalorder %s323, %s324
      %p336 = scmp.eq.s32.totalorder %s36, 1
      %p337 = por %p335, %p336
      %p339 = scmp.ne.s32.totalorder %s324, %s338
      %p340 = scmp.eq.s32.totalorder %s36, 0
      %p341 = por %p339, %p340
      %s343 = sadd.s32 %s342, 1
      %p346 = scmp.eq.s32.totalorder %s30, 1
      %p347 = scmp.ne.s32.totalorder %s342, %s344
      %p348 = scmp.eq.s32.totalorder %s30, 0
      %p349 = por %p347, %p348
      %p350 = scmp.ne.s32.totalorder %s342, %s344
      %p351 = scmp.eq.s32.totalorder %s35, 1
      %p352 = por %p350, %p351
      %p353 = scmp.ne.s32.totalorder %s344, %s345
      %p354 = scmp.eq.s32.totalorder %s35, 0
      %p355 = por %p353, %p354
      %p356 = scmp.ne.s32.totalorder %s344, %s345
      %p357 = scmp.eq.s32.totalorder %s36, 1
      %p358 = por %p356, %p357
      %p360 = scmp.ne.s32.totalorder %s345, %s359
      %p361 = scmp.eq.s32.totalorder %s36, 0
      %p362 = por %p360, %p361
      %s364 = sadd.s32 %s363, 1
      %p367 = scmp.eq.s32.totalorder %s30, 1
      %p368 = scmp.ne.s32.totalorder %s363, %s365
      %p369 = scmp.eq.s32.totalorder %s30, 0
      %p370 = por %p368, %p369
      %p371 = scmp.ne.s32.totalorder %s363, %s365
      %p372 = scmp.eq.s32.totalorder %s35, 1
      %p373 = por %p371, %p372
      %p374 = scmp.ne.s32.totalorder %s365, %s366
      %p375 = scmp.eq.s32.totalorder %s35, 0
      %p376 = por %p374, %p375
      %p377 = scmp.ne.s32.totalorder %s365, %s366
      %p378 = scmp.eq.s32.totalorder %s36, 1
      %p379 = por %p377, %p378
      %p381 = scmp.ne.s32.totalorder %s366, %s380
      %p382 = scmp.eq.s32.totalorder %s36, 0
      %p383 = por %p381, %p382
      %s385 = sadd.s32 %s384, 1
      %p388 = scmp.eq.s32.totalorder %s30, 1
      %p389 = scmp.ne.s32.totalorder %s384, %s386
      %p390 = scmp.eq.s32.totalorder %s30, 0
      %p391 = por %p389, %p390
      %p392 = scmp.ne.s32.totalorder %s384, %s386
      %p393 = scmp.eq.s32.totalorder %s35, 1
      %p394 = por %p392, %p393
      %p395 = scmp.ne.s32.totalorder %s386, %s387
      %p396 = scmp.eq.s32.totalorder %s35, 0
      %p397 = por %p395, %p396
      %p398 = scmp.ne.s32.totalorder %s386, %s387
      %p399 = scmp.eq.s32.totalorder %s36, 1
      %p400 = por %p398, %p399
      %p402 = scmp.ne.s32.totalorder %s387, %s401
      %p403 = scmp.eq.s32.totalorder %s36, 0
      %p404 = por %p402, %p403
      %s406 = sadd.s32 %s405, 1
      %p409 = scmp.eq.s32.totalorder %s30, 1
      %p410 = scmp.ne.s32.totalorder %s405, %s407
      %p411 = scmp.eq.s32.totalorder %s30, 0
      %p412 = por %p410, %p411
      %p413 = scmp.ne.s32.totalorder %s405, %s407
      %p414 = scmp.eq.s32.totalorder %s35, 1
      %p415 = por %p413, %p414
      %p416 = scmp.ne.s32.totalorder %s407, %s408
      %p417 = scmp.eq.s32.totalorder %s35, 0
      %p418 = por %p416, %p417
      %p419 = scmp.ne.s32.totalorder %s407, %s408
      %p420 = scmp.eq.s32.totalorder %s36, 1
      %p421 = por %p419, %p420
      %p423 = scmp.ne.s32.totalorder %s408, %s422
      %p424 = scmp.eq.s32.totalorder %s36, 0
      %p425 = por %p423, %p424
      %s427 = sadd.s32 %s426, 1
      %p430 = scmp.eq.s32.totalorder %s30, 1
      %p431 = scmp.ne.s32.totalorder %s426, %s428
      %p432 = scmp.eq.s32.totalorder %s30, 0
      %p433 = por %p431, %p432
      %p434 = scmp.ne.s32.totalorder %s426, %s428
      %p435 = scmp.eq.s32.totalorder %s35, 1
      %p436 = por %p434, %p435
      %p437 = scmp.ne.s32.totalorder %s428, %s429
      %p438 = scmp.eq.s32.totalorder %s35, 0
      %p439 = por %p437, %p438
      %p440 = scmp.ne.s32.totalorder %s428, %s429
      %p441 = scmp.eq.s32.totalorder %s36, 1
      %p442 = por %p440, %p441
      %p444 = scmp.ne.s32.totalorder %s429, %s443
      %p445 = scmp.eq.s32.totalorder %s36, 0
      %p446 = por %p444, %p445
      %s448 = sadd.s32 %s447, 1
      %p451 = scmp.eq.s32.totalorder %s30, 1
      %p452 = scmp.ne.s32.totalorder %s447, %s449
      %p453 = scmp.eq.s32.totalorder %s30, 0
      %p454 = por %p452, %p453
      %p455 = scmp.ne.s32.totalorder %s447, %s449
      %p456 = scmp.eq.s32.totalorder %s35, 1
      %p457 = por %p455, %p456
      %p458 = scmp.ne.s32.totalorder %s449, %s450
      %p459 = scmp.eq.s32.totalorder %s35, 0
      %p460 = por %p458, %p459
      %p461 = scmp.ne.s32.totalorder %s449, %s450
      %p462 = scmp.eq.s32.totalorder %s36, 1
      %p463 = por %p461, %p462
      %p465 = scmp.ne.s32.totalorder %s450, %s464
      %p466 = scmp.eq.s32.totalorder %s36, 0
      %p467 = por %p465, %p466
      %s469 = sadd.s32 %s468, 1
      %p472 = scmp.eq.s32.totalorder %s30, 1
      %p473 = scmp.ne.s32.totalorder %s468, %s470
      %p474 = scmp.eq.s32.totalorder %s30, 0
      %p475 = por %p473, %p474
      %p476 = scmp.ne.s32.totalorder %s468, %s470
      %p477 = scmp.eq.s32.totalorder %s35, 1
      %p478 = por %p476, %p477
      %p479 = scmp.ne.s32.totalorder %s470, %s471
      %p480 = scmp.eq.s32.totalorder %s35, 0
      %p481 = por %p479, %p480
      %p482 = scmp.ne.s32.totalorder %s470, %s471
      %p483 = scmp.eq.s32.totalorder %s36, 1
      %p484 = por %p482, %p483
      %p486 = scmp.ne.s32.totalorder %s471, %s485
      %p487 = scmp.eq.s32.totalorder %s36, 0
      %p488 = por %p486, %p487
      %s489 = ssub.s32 %s30, %s37
      %p490 = scmp.eq.s32.totalorder %s489, 0
      %s492 = sadd.s32 %s491, 1
      %s493 = scalar_select %p490, %s491, %s492
      %p496 = pneg %p490
      %p497 = scmp.eq.s32.totalorder %s30, 1
      %p498 = por %p496, %p497
      %p499 = scmp.ne.s32.totalorder %s491, %s494
      %p500 = scmp.eq.s32.totalorder %s30, 0
      %p501 = por %p499, %p500
      %p502 = scmp.ne.s32.totalorder %s491, %s494
      %p503 = scmp.eq.s32.totalorder %s35, 1
      %p504 = por %p502, %p503
      %p505 = scmp.ne.s32.totalorder %s494, %s495
      %p506 = scmp.eq.s32.totalorder %s35, 0
      %p507 = por %p505, %p506
      %p508 = scmp.ne.s32.totalorder %s494, %s495
      %p509 = scmp.eq.s32.totalorder %s36, 1
      %p510 = por %p508, %p509
      %p512 = scmp.ne.s32.totalorder %s495, %s511
      %p513 = scmp.eq.s32.totalorder %s36, 0
      %p514 = por %p512, %p513
      %p515 = scmp.le.s32.totalorder 1, %s30
      %p516 = scmp.lt.s32.totalorder %s30, 3
      %p517 = pnand %p515, %p516
      %p518 = pneg %p517
      // Predicated region
      $region9: #{tpu_custom_call.1} parent=5 // pred_check
        _
      $region10: #{tpu_custom_call.1} parent=5 // pred_check_branch
        %520 = sbr.rel (%p517) target = $region12
      $region11: #{tpu_custom_call.1} parent=5 // pred_region
        %s521 = ssub.s32 %s30, 1
        // Predicated region
        $region13: #{tpu_custom_call.1} parent=11 // pred_check
          %p522 = pneg %p103
        $region14: #{tpu_custom_call.1} parent=11 // pred_check_branch
          %524 = sbr.rel (%p522) target = $region16
        $region15: #{tpu_custom_call.1} parent=11 // pred_region
          _
        $region16: #{tpu_custom_call.1} parent=11 // pred_fallthru
          _
        // Predicated region
        $region17: #{tpu_custom_call.1} parent=11 // pred_check
          %p525 = pneg %p124
        $region18: #{tpu_custom_call.1} parent=11 // pred_check_branch
          %527 = sbr.rel (%p525) target = $region20
        $region19: #{tpu_custom_call.1} parent=11 // pred_region
          _
        $region20: #{tpu_custom_call.1} parent=11 // pred_fallthru
          _
        // Predicated region
        $region21: #{tpu_custom_call.1} parent=11 // pred_check
          %p528 = pneg %p145
        $region22: #{tpu_custom_call.1} parent=11 // pred_check_branch
          %530 = sbr.rel (%p528) target = $region24
        $region23: #{tpu_custom_call.1} parent=11 // pred_region
          _
        $region24: #{tpu_custom_call.1} parent=11 // pred_fallthru
          _
        // Predicated region
        $region25: #{tpu_custom_call.1} parent=11 // pred_check
          %p531 = pneg %p166
        $region26: #{tpu_custom_call.1} parent=11 // pred_check_branch
          %533 = sbr.rel (%p531) target = $region28
        $region27: #{tpu_custom_call.1} parent=11 // pred_region
          _
        $region28: #{tpu_custom_call.1} parent=11 // pred_fallthru
          _
        // Predicated region
        $region29: #{tpu_custom_call.1} parent=11 // pred_check
          %p534 = pneg %p187
        $region30: #{tpu_custom_call.1} parent=11 // pred_check_branch
          %536 = sbr.rel (%p534) target = $region32
        $region31: #{tpu_custom_call.1} parent=11 // pred_region
          _
        $region32: #{tpu_custom_call.1} parent=11 // pred_fallthru
          _
        // Predicated region
        $region33: #{tpu_custom_call.1} parent=11 // pred_check
          %p537 = pneg %p208
        $region34: #{tpu_custom_call.1} parent=11 // pred_check_branch
          %539 = sbr.rel (%p537) target = $region36
        $region35: #{tpu_custom_call.1} parent=11 // pred_region
          _
        $region36: #{tpu_custom_call.1} parent=11 // pred_fallthru
          _
        // Predicated region
        $region37: #{tpu_custom_call.1} parent=11 // pred_check
          %p540 = pneg %p229
        $region38: #{tpu_custom_call.1} parent=11 // pred_check_branch
          %542 = sbr.rel (%p540) target = $region40
        $region39: #{tpu_custom_call.1} parent=11 // pred_region
          _
        $region40: #{tpu_custom_call.1} parent=11 // pred_fallthru
          _
        // Predicated region
        $region41: #{tpu_custom_call.1} parent=11 // pred_check
          %p543 = pneg %p250
        $region42: #{tpu_custom_call.1} parent=11 // pred_check_branch
          %545 = sbr.rel (%p543) target = $region44
        $region43: #{tpu_custom_call.1} parent=11 // pred_region
          _
        $region44: #{tpu_custom_call.1} parent=11 // pred_fallthru
          _
        // Predicated region
        $region45: #{tpu_custom_call.1} parent=11 // pred_check
          %p546 = pneg %p271
        $region46: #{tpu_custom_call.1} parent=11 // pred_check_branch
          %548 = sbr.rel (%p546) target = $region48
        $region47: #{tpu_custom_call.1} parent=11 // pred_region
          _
        $region48: #{tpu_custom_call.1} parent=11 // pred_fallthru
          _
        // Predicated region
        $region49: #{tpu_custom_call.1} parent=11 // pred_check
          %p549 = pneg %p292
        $region50: #{tpu_custom_call.1} parent=11 // pred_check_branch
          %551 = sbr.rel (%p549) target = $region52
        $region51: #{tpu_custom_call.1} parent=11 // pred_region
          _
        $region52: #{tpu_custom_call.1} parent=11 // pred_fallthru
          _
        // Predicated region
        $region53: #{tpu_custom_call.1} parent=11 // pred_check
          %p552 = pneg %p313
        $region54: #{tpu_custom_call.1} parent=11 // pred_check_branch
          %554 = sbr.rel (%p552) target = $region56
        $region55: #{tpu_custom_call.1} parent=11 // pred_region
          _
        $region56: #{tpu_custom_call.1} parent=11 // pred_fallthru
          _
        // Predicated region
        $region57: #{tpu_custom_call.1} parent=11 // pred_check
          %p555 = pneg %p334
        $region58: #{tpu_custom_call.1} parent=11 // pred_check_branch
          %557 = sbr.rel (%p555) target = $region60
        $region59: #{tpu_custom_call.1} parent=11 // pred_region
          _
        $region60: #{tpu_custom_call.1} parent=11 // pred_fallthru
          _
        // Predicated region
        $region61: #{tpu_custom_call.1} parent=11 // pred_check
          %p558 = pneg %p355
        $region62: #{tpu_custom_call.1} parent=11 // pred_check_branch
          %560 = sbr.rel (%p558) target = $region64
        $region63: #{tpu_custom_call.1} parent=11 // pred_region
          _
        $region64: #{tpu_custom_call.1} parent=11 // pred_fallthru
          _
        // Predicated region
        $region65: #{tpu_custom_call.1} parent=11 // pred_check
          %p561 = pneg %p376
        $region66: #{tpu_custom_call.1} parent=11 // pred_check_branch
          %563 = sbr.rel (%p561) target = $region68
        $region67: #{tpu_custom_call.1} parent=11 // pred_region
          _
        $region68: #{tpu_custom_call.1} parent=11 // pred_fallthru
          _
        // Predicated region
        $region69: #{tpu_custom_call.1} parent=11 // pred_check
          %p564 = pneg %p397
        $region70: #{tpu_custom_call.1} parent=11 // pred_check_branch
          %566 = sbr.rel (%p564) target = $region72
        $region71: #{tpu_custom_call.1} parent=11 // pred_region
          _
        $region72: #{tpu_custom_call.1} parent=11 // pred_fallthru
          _
        // Predicated region
        $region73: #{tpu_custom_call.1} parent=11 // pred_check
          %p567 = pneg %p418
        $region74: #{tpu_custom_call.1} parent=11 // pred_check_branch
          %569 = sbr.rel (%p567) target = $region76
        $region75: #{tpu_custom_call.1} parent=11 // pred_region
          _
        $region76: #{tpu_custom_call.1} parent=11 // pred_fallthru
          _
        // Predicated region
        $region77: #{tpu_custom_call.1} parent=11 // pred_check
          %p570 = pneg %p439
        $region78: #{tpu_custom_call.1} parent=11 // pred_check_branch
          %572 = sbr.rel (%p570) target = $region80
        $region79: #{tpu_custom_call.1} parent=11 // pred_region
          _
        $region80: #{tpu_custom_call.1} parent=11 // pred_fallthru
          _
        // Predicated region
        $region81: #{tpu_custom_call.1} parent=11 // pred_check
          %p573 = pneg %p460
        $region82: #{tpu_custom_call.1} parent=11 // pred_check_branch
          %575 = sbr.rel (%p573) target = $region84
        $region83: #{tpu_custom_call.1} parent=11 // pred_region
          _
        $region84: #{tpu_custom_call.1} parent=11 // pred_fallthru
          _
        // Predicated region
        $region85: #{tpu_custom_call.1} parent=11 // pred_check
          %p576 = pneg %p481
        $region86: #{tpu_custom_call.1} parent=11 // pred_check_branch
          %578 = sbr.rel (%p576) target = $region88
        $region87: #{tpu_custom_call.1} parent=11 // pred_region
          _
        $region88: #{tpu_custom_call.1} parent=11 // pred_fallthru
          _
      $region12: #{tpu_custom_call.1} parent=5 // pred_fallthru
        _
      %p579 = scmp.lt.s32.totalorder %s30, 2
      // Predicated region
      $region89: #{tpu_custom_call.1} parent=5 // pred_check
        %p580 = pneg %p579
      $region90: #{tpu_custom_call.1} parent=5 // pred_check_branch
        %582 = sbr.rel (%p580) target = $region92
      $region91: #{tpu_custom_call.1} parent=5 // pred_region
        // Predicated region
        $region93: #{tpu_custom_call.1} parent=91 // pred_check
          %p583 = pneg %p50
        $region94: #{tpu_custom_call.1} parent=91 // pred_check_branch
          %585 = sbr.rel (%p583) target = $region96
        $region95: #{tpu_custom_call.1} parent=91 // pred_region
          %p586 = scmp.lt.s32.totalorder %s30, 1
          %s587 = scalar_select %p586, %s30, 1
          %s588 = smul.addr %s587, 8
          %s589 = scalar_lea.vmem %s0, %s588
        $region96: #{tpu_custom_call.1} parent=91 // pred_fallthru
          _
        // Predicated region
        $region97: #{tpu_custom_call.1} parent=91 // pred_check
          %p590 = pneg %p76
        $region98: #{tpu_custom_call.1} parent=91 // pred_check_branch
          %592 = sbr.rel (%p590) target = $region100
        $region99: #{tpu_custom_call.1} parent=91 // pred_region
          %p593 = scmp.lt.s32.totalorder %s30, 1
          %s594 = scalar_select %p593, %s30, 1
          %s595 = scalar_lea.vmem %s1, %s594
        $region100: #{tpu_custom_call.1} parent=91 // pred_fallthru
          _
      $region92: #{tpu_custom_call.1} parent=5 // pred_fallthru
        _
      %p596 = scmp.le.s32.totalorder 1, %s30
      %p597 = scmp.lt.s32.totalorder %s30, 3
      %p598 = pnand %p596, %p597
      %p599 = pneg %p598
      // Predicated region
      $region101: #{tpu_custom_call.1} parent=5 // pred_check
        _
      $region102: #{tpu_custom_call.1} parent=5 // pred_check_branch
        %601 = sbr.rel (%p598) target = $region104
      $region103: #{tpu_custom_call.1} parent=5 // pred_region
        %s602 = ssub.s32 %s30, 1
        %p603 = scmp.lt.s32.totalorder %s35, 1
        %s604 = scalar_select %p603, %s35, 1
        %s605 = smul.addr %s604, 8
        %s606 = scalar_lea.vmem %s0, %s605
        %p607 = pneg %p56
        %p608 = pneg %p53
        %p609 = scmp.lt.s32.totalorder %s35, 1
        %s610 = scalar_select %p609, %s35, 1
        %s611 = scalar_lea.vmem %s1, %s610
        %p612 = pneg %p82
        %p613 = pneg %p79
        %p614 = pneg %p103
        %p615 = pneg %p100
        %p616 = pneg %p124
        %p617 = pneg %p121
        %p618 = pneg %p145
        %p619 = pneg %p142
        %p620 = pneg %p166
        %p621 = pneg %p163
        %p622 = pneg %p187
        %p623 = pneg %p184
        %p624 = pneg %p208
        %p625 = pneg %p205
        %p626 = pneg %p229
        %p627 = pneg %p226
        %p628 = pneg %p250
        %p629 = pneg %p247
        %p630 = pneg %p271
        %p631 = pneg %p268
        %p632 = pneg %p292
        %p633 = pneg %p289
        %p634 = pneg %p313
        %p635 = pneg %p310
        %p636 = pneg %p334
        %p637 = pneg %p331
        %p638 = pneg %p355
        %p639 = pneg %p352
        %p640 = pneg %p376
        %p641 = pneg %p373
        %p642 = pneg %p397
        %p643 = pneg %p394
        %p644 = pneg %p418
        %p645 = pneg %p415
        %p646 = pneg %p439
        %p647 = pneg %p436
        %p648 = pneg %p460
        %p649 = pneg %p457
        %p650 = pneg %p481
        %p651 = pneg %p478
        %p652 = pneg %p507
        %p653 = pneg %p504
        %s654 = sand.u32 %s494, 1
        %s655 = scalar_lea.sflag [#allocation3], %s654
        %s656 = sand.u32 %s494, 1
        %s657 = smul.addr %s656, 8
        %s658 = scalar_lea.vmem [#allocation2], %s657
        %p659 = scmp.lt.s32.totalorder %s35, 1
        %s660 = scalar_select %p659, %s35, 1
        %s661 = smul.addr %s660, 8
        %s662 = scalar_lea.vmem %s0, %s661
        %p663 = scmp.lt.s32.totalorder %s35, 1
        %s664 = scalar_select %p663, %s35, 1
        %s665 = scalar_lea.vmem %s1, %s664
        %v666 = vld [vmem:[%s662] sm:$0xff]
        %v667 = vld [vmem:[%s665] sm:$0x1]
        %v668 = vld [vmem:[%s2] sm:$0xff]
        %v669 = vld [vmem:[%s3] sm:$0xff]
        %v670 = vld [vmem:[%s4] sm:$0xff]
        %v671 = vld [vmem:[%s4 + $0x8] sm:$0xff]
        %v672 = vld [vmem:[%s4 + $0x10] sm:$0xff]
        %v673 = vld [vmem:[%s4 + $0x18] sm:$0xff]
        %v674 = vlaneseq
        %v675 = vand.u32 %v674, 127
        %676 = vset.pattern.permute.xlu0 0
        %677 = vperm.xlu0 %676, %v666
        %v678 = vpop.permute.xlu0 %677
        %vm679 = vcmp.eq.s32.totalorder %v678, %v675
        %v680 = vsel %vm679, 1, 0
        %v681 = vcvt.s32.f32 %v680
        %v682 = vld [vmem:[%s6] sm:$0xff]
        %v683 = vld [vmem:[%s6 + $0x8] sm:$0xff]
        %v684 = vld [vmem:[%s6 + $0x10] sm:$0xff]
        %v685 = vld [vmem:[%s6 + $0x18] sm:$0xff]
        %v686 = vld [vmem:[%s6 + $0x20] sm:$0x1]
        %vm687 = vcmask 269312
        %v689 = vsel %vm687, %v681, 0
        %vm691 = vcmask 1040384
        %v693 = vsel %vm691, %v686, 0
        %695 = vmatpush.msra.mxu0 0.0
        %696 = vmatpush.msra.mxu0 0.0
        %697 = vmatpush.msra.mxu0 0.0
        %698 = vmatpush.msra.mxu0 0.0
        %699 = vmatpush.msra.mxu0 0.0
        %700 = vmatpush.msra.mxu0 0.0
        %701 = vmatpush.msra.mxu0 0.0
        %702 = vmatpush.msra.mxu0 0.0
        %703 = vmatpush.msra.mxu0 0.0
        %704 = vmatpush.msra.mxu0 0.0
        %705 = vmatpush.msra.mxu0 0.0
        %706 = vmatpush.msra.mxu0 %v693
        %707 = vmatpush.msra.mxu0 %v685
        %708 = vmatpush.msra.mxu0 %v684
        %709 = vmatpush.msra.mxu0 %v683
        %710 = vmatpush.msra.mxu0 %v682
        %711 = vmatmul.f32.gmra.mxu0 %v689
        %v712 = vpop.f32.mrf.mxu0
        %v713 = vadd.f32 0.0, %v712
        %714 = vdwg.mxu0
        %vm715 = vcmp.ne.s32.totalorder %v666, 1
        %v716 = vsel %vm715, 1, 0
        %v717 = vcvt.s32.f32 %v716
        %719 = vset.pattern.permute.xlu0 0
        %720 = vperm.xlu0 %719, %v717
        %v721 = vpop.permute.xlu0 %720
        %v723 = vmul.f32 %v713, %v721
        %v724 = vld [vmem:[%s7] sm:$0x1]
        %v725 = vld [vmem:[%s8] sm:$0x1]
        %vm726 = vcmask 261120
        %v727 = vsel %vm726, %v723, 0.0
        %728 = vadd.xlane.f32.xlu0 %v727
        %v729 = vpop.xlane.xlu0 %728
        %v730 = vrcp.pop 32.0
        %v731 = vmul.f32 32.0, %v730
        %v732 = vsub.f32 1.0, %v731
        %v733 = vmul.f32 %v730, %v732
        %v734 = vadd.f32 %v730, %v733
        %vm735 = vweird.f32 %v730
        %v736 = vsel %vm735, %v730, %v734
        %v737 = vmul.f32 %v729, %v736
        %v738 = vsub.f32 %v723, %v737
        %v739 = vmul.f32 %v738, %v738
        %v740 = vsel %vm726, %v739, 0.0
        %741 = vadd.xlane.f32.xlu0 %v740
        %v742 = vpop.xlane.xlu0 %741
        %v743 = vmul.f32 %v742, %v736
        %v744 = vadd.f32 %v743, 1e-05
        %v745 = vrsqrt.pop %v744
        %v746 = vmul.f32 %v745, %v744
        %v747 = vmul.f32 %v746, %v745
        %v748 = vmul.f32 0.5, %v747
        %v749 = vsub.f32 1.5, %v748
        %v750 = vmul.f32 %v745, %v749
        %vm751 = vweird.f32 %v744
        %vm752 = vweird.f32 %v745
        %vm753 = vmor %vm751, %vm752
        %v754 = vsel %vm753, %v745, %v750
        %v755 = vmul.f32 %v738, %v754
        %v757 = vperm.slane %v724, 0
        %v759 = vmul.f32 %v755, %v757
        %v761 = vperm.slane %v725, 0
        %v763 = vadd.f32 %v759, %v761
        %v764 = vld [vmem:[%s9] sm:$0xff]
        %v765 = vld [vmem:[%s9 + $0x8] sm:$0xff]
        %v766 = vld [vmem:[%s9 + $0x10] sm:$0xff]
        %v767 = vld [vmem:[%s9 + $0x18] sm:$0xff]
        %v768 = vld [vmem:[%s10] sm:$0x1]
        %v770 = vperm.slane %v768, 0
        %v773 = vsel %vm726, %v763, 0
        %775 = vmatpush.msra.mxu0 0.0
        %776 = vmatpush.msra.mxu0 0.0
        %777 = vmatpush.msra.mxu0 0.0
        %778 = vmatpush.msra.mxu0 0.0
        %779 = vmatpush.msra.mxu0 0.0
        %780 = vmatpush.msra.mxu0 0.0
        %781 = vmatpush.msra.mxu0 0.0
        %782 = vmatpush.msra.mxu0 0.0
        %783 = vmatpush.msra.mxu0 0.0
        %784 = vmatpush.msra.mxu0 0.0
        %785 = vmatpush.msra.mxu0 0.0
        %786 = vmatpush.msra.mxu0 0.0
        %787 = vmatpush.msra.mxu0 %v767
        %788 = vmatpush.msra.mxu0 %v766
        %789 = vmatpush.msra.mxu0 %v765
        %790 = vmatpush.msra.mxu0 %v764
        %791 = vmatmul.f32.gmra.mxu0 %v773
        %v792 = vpop.f32.mrf.mxu0
        %v793 = vadd.f32 %v770, %v792
        %794 = vdwg.mxu0
        %v795 = vmul.f32 %v793, 0.35355338
        %v796 = vmul.f32 %v795, %v668
        %v798 = vsel %vm726, %v795, 0
        %800 = vmatpush.msra.mxu0 0.0
        %801 = vmatpush.msra.mxu0 0.0
        %802 = vmatpush.msra.mxu0 0.0
        %803 = vmatpush.msra.mxu0 0.0
        %804 = vmatpush.msra.mxu0 0.0
        %805 = vmatpush.msra.mxu0 0.0
        %806 = vmatpush.msra.mxu0 0.0
        %807 = vmatpush.msra.mxu0 0.0
        %808 = vmatpush.msra.mxu0 0.0
        %809 = vmatpush.msra.mxu0 0.0
        %810 = vmatpush.msra.mxu0 0.0
        %811 = vmatpush.msra.mxu0 0.0
        %812 = vmatpush.msra.mxu0 %v673
        %813 = vmatpush.msra.mxu0 %v672
        %814 = vmatpush.msra.mxu0 %v671
        %815 = vmatpush.msra.mxu0 %v670
        %816 = vmatmul.f32.gmra.mxu0 %v798
        %v817 = vpop.f32.mrf.mxu0
        %v818 = vadd.f32 0.0, %v817
        %819 = vdwg.mxu0
        %v820 = vmul.f32 %v818, %v669
        %v821 = vadd.f32 %v796, %v820
        %823 = vrot.lane.b32.xlu0 %v668, 32
        %v824 = vpop.permute.xlu0 %823
        %v826 = vmul.f32 %v793, %v824
        %828 = vrot.lane.b32.xlu0 %v793, 96
        %v829 = vpop.permute.xlu0 %828
        %v830 = vsel %vm726, %v829, 0
        %832 = vmatpush.msra.mxu0 0.0
        %833 = vmatpush.msra.mxu0 0.0
        %834 = vmatpush.msra.mxu0 0.0
        %835 = vmatpush.msra.mxu0 0.0
        %836 = vmatpush.msra.mxu0 0.0
        %837 = vmatpush.msra.mxu0 0.0
        %838 = vmatpush.msra.mxu0 0.0
        %839 = vmatpush.msra.mxu0 0.0
        %840 = vmatpush.msra.mxu0 0.0
        %841 = vmatpush.msra.mxu0 0.0
        %842 = vmatpush.msra.mxu0 0.0
        %843 = vmatpush.msra.mxu0 0.0
        %844 = vmatpush.msra.mxu0 %v673
        %845 = vmatpush.msra.mxu0 %v672
        %846 = vmatpush.msra.mxu0 %v671
        %847 = vmatpush.msra.mxu0 %v670
        %848 = vmatmul.f32.gmra.mxu0 %v830
        %v849 = vpop.f32.mrf.mxu0
        %v850 = vadd.f32 0.0, %v849
        %851 = vdwg.mxu0
        %v852 = vmul.f32 %v850, %v669
        %854 = vrot.lane.b32.xlu0 %v852, 32
        %v855 = vpop.permute.xlu0 %854
        %v857 = vadd.f32 %v826, %v855
        %v858 = vld [vmem:[%s5] sm:$0x1]
        %v860 = vperm.slane %v858, 0
        %v862 = vmul.f32 %v821, %v860
        %v864 = vperm.slane %v667, 0
        %867 = vrot.lane.b32.xlu0 %v857, 96
        %v868 = vpop.permute.xlu0 %867
        %v870 = vsel %vm726, %v862, 0
        %v872 = vsel %vm726, %v868, 0
        %874 = vmatpush.xpose.msra.mxu0 0.0
        %875 = vmatpush.xpose.msra.mxu0 0.0
        %876 = vmatpush.xpose.msra.mxu0 0.0
        %877 = vmatpush.xpose.msra.mxu0 0.0
        %878 = vmatpush.xpose.msra.mxu0 0.0
        %879 = vmatpush.xpose.msra.mxu0 0.0
        %880 = vmatpush.xpose.msra.mxu0 0.0
        %881 = vmatpush.xpose.msra.mxu0 0.0
        %882 = vmatpush.xpose.msra.mxu0 0.0
        %883 = vmatpush.xpose.msra.mxu0 0.0
        %884 = vmatpush.xpose.msra.mxu0 0.0
        %885 = vmatpush.xpose.msra.mxu0 0.0
        %886 = vmatpush.xpose.msra.mxu0 0.0
        %887 = vmatpush.xpose.msra.mxu0 0.0
        %888 = vmatpush.xpose.msra.mxu0 0.0
        %889 = vmatpush.xpose.msra.mxu0 %v872
        %890 = vmatmul.f32.gmra.mxu0 %v870
        %v891 = vpop.f32.mrf.mxu0
        %v892 = vadd.f32 %v864, %v891
        %893 = vdwg.mxu0
        %vm894 = vcmask 64512
        %v895 = vsel %vm894, %v892, -inf
        %896 = vmax.xlane.f32.xlu0 %v895
        %v897 = vpop.xlane.xlu0 %896
        %v898 = vsub.f32 %v892, %v897
        %v899 = vmul.f32 %v898, 1.442695
        %v900 = vpow.pop %v899
        %v901 = vsel %vm894, %v900, 0.0
        %902 = vadd.xlane.f32.xlu0 %v901
        %v903 = vpop.xlane.xlu0 %902
        %v904 = vrcp.pop %v903
        %v905 = vmul.f32 %v900, %v904
        %906 = vrot.lane.b32.xlu0 %v860, 64
        %v907 = vpop.permute.xlu0 %906
        %v909 = vmul.f32 %v793, %v907
        %s910 = scalar_lea.vmem %s5, 1
        %v911 = vld [vmem:[%s910] sm:$0x1]
        %v913 = vperm.slane %v911, 0
        %v915 = vmul.f32 %v821, %v913
        %v917 = vsel %vm726, %v915, 0
        %919 = vmatpush.xpose.msra.mxu0 0.0
        %920 = vmatpush.xpose.msra.mxu0 0.0
        %921 = vmatpush.xpose.msra.mxu0 0.0
        %922 = vmatpush.xpose.msra.mxu0 0.0
        %923 = vmatpush.xpose.msra.mxu0 0.0
        %924 = vmatpush.xpose.msra.mxu0 0.0
        %925 = vmatpush.xpose.msra.mxu0 0.0
        %926 = vmatpush.xpose.msra.mxu0 0.0
        %927 = vmatpush.xpose.msra.mxu0 0.0
        %928 = vmatpush.xpose.msra.mxu0 0.0
        %929 = vmatpush.xpose.msra.mxu0 0.0
        %930 = vmatpush.xpose.msra.mxu0 0.0
        %931 = vmatpush.xpose.msra.mxu0 0.0
        %932 = vmatpush.xpose.msra.mxu0 0.0
        %933 = vmatpush.xpose.msra.mxu0 0.0
        %934 = vmatpush.xpose.msra.mxu0 %v872
        %935 = vmatmul.f32.gmra.mxu0 %v917
        %v936 = vpop.f32.mrf.mxu0
        %v937 = vadd.f32 %v864, %v936
        %938 = vdwg.mxu0
        %v939 = vsel %vm894, %v937, -inf
        %940 = vmax.xlane.f32.xlu0 %v939
        %v941 = vpop.xlane.xlu0 %940
        %v942 = vsub.f32 %v937, %v941
        %v943 = vmul.f32 %v942, 1.442695
        %v944 = vpow.pop %v943
        %v945 = vsel %vm894, %v944, 0.0
        %946 = vadd.xlane.f32.xlu0 %v945
        %v947 = vpop.xlane.xlu0 %946
        %v948 = vrcp.pop %v947
        %v949 = vmul.f32 %v944, %v948
        %950 = vrot.lane.b32.xlu0 %v913, 64
        %v951 = vpop.permute.xlu0 %950
        %v953 = vmul.f32 %v793, %v951
        %955 = vrot.lane.b32.xlu0 %v953, 64
        %v956 = vpop.permute.xlu0 %955
        %v959 = vsel %vm894, %v949, 0
        %961 = vmatpush.msra.mxu0 0.0
        %962 = vmatpush.msra.mxu0 0.0
        %963 = vmatpush.msra.mxu0 0.0
        %964 = vmatpush.msra.mxu0 0.0
        %965 = vmatpush.msra.mxu0 0.0
        %966 = vmatpush.msra.mxu0 0.0
        %967 = vmatpush.msra.mxu0 0.0
        %968 = vmatpush.msra.mxu0 0.0
        %969 = vmatpush.msra.mxu0 0.0
        %970 = vmatpush.msra.mxu0 0.0
        %971 = vmatpush.msra.mxu0 0.0
        %972 = vmatpush.msra.mxu0 0.0
        %973 = vmatpush.msra.mxu0 0.0
        %974 = vmatpush.msra.mxu0 0.0
        %975 = vmatpush.msra.mxu0 0.0
        %976 = vmatpush.msra.mxu0 %v956
        %977 = vmatmul.f32.gmra.mxu0 %v959
        %v978 = vpop.f32.mrf.mxu0
        %v979 = vadd.f32 0.0, %v978
        %980 = vdwg.mxu0
        %982 = vrot.lane.b32.xlu0 %v909, 64
        %v983 = vpop.permute.xlu0 %982
        %v986 = vsel %vm894, %v905, 0
        %988 = vmatpush.msra.mxu0 0.0
        %989 = vmatpush.msra.mxu0 0.0
        %990 = vmatpush.msra.mxu0 0.0
        %991 = vmatpush.msra.mxu0 0.0
        %992 = vmatpush.msra.mxu0 0.0
        %993 = vmatpush.msra.mxu0 0.0
        %994 = vmatpush.msra.mxu0 0.0
        %995 = vmatpush.msra.mxu0 0.0
        %996 = vmatpush.msra.mxu0 0.0
        %997 = vmatpush.msra.mxu0 0.0
        %998 = vmatpush.msra.mxu0 0.0
        %999 = vmatpush.msra.mxu0 0.0
        %1000 = vmatpush.msra.mxu0 0.0
        %1001 = vmatpush.msra.mxu0 0.0
        %1002 = vmatpush.msra.mxu0 0.0
        %1003 = vmatpush.msra.mxu0 %v983
        %1004 = vmatmul.f32.gmra.mxu0 %v986
        %v1005 = vpop.f32.mrf.mxu0
        %v1006 = vadd.f32 %v979, %v1005
        %1007 = vdwg.mxu0
        %s1008 = scalar_lea.vmem %s5, 2
        %v1009 = vld [vmem:[%s1008] sm:$0x1]
        %v1011 = vperm.slane %v1009, 0
        %v1013 = vmul.f32 %v821, %v1011
        %v1015 = vsel %vm726, %v1013, 0
        %1017 = vmatpush.xpose.msra.mxu0 0.0
        %1018 = vmatpush.xpose.msra.mxu0 0.0
        %1019 = vmatpush.xpose.msra.mxu0 0.0
        %1020 = vmatpush.xpose.msra.mxu0 0.0
        %1021 = vmatpush.xpose.msra.mxu0 0.0
        %1022 = vmatpush.xpose.msra.mxu0 0.0
        %1023 = vmatpush.xpose.msra.mxu0 0.0
        %1024 = vmatpush.xpose.msra.mxu0 0.0
        %1025 = vmatpush.xpose.msra.mxu0 0.0
        %1026 = vmatpush.xpose.msra.mxu0 0.0
        %1027 = vmatpush.xpose.msra.mxu0 0.0
        %1028 = vmatpush.xpose.msra.mxu0 0.0
        %1029 = vmatpush.xpose.msra.mxu0 0.0
        %1030 = vmatpush.xpose.msra.mxu0 0.0
        %1031 = vmatpush.xpose.msra.mxu0 0.0
        %1032 = vmatpush.xpose.msra.mxu0 %v872
        %1033 = vmatmul.f32.gmra.mxu0 %v1015
        %v1034 = vpop.f32.mrf.mxu0
        %v1035 = vadd.f32 %v864, %v1034
        %1036 = vdwg.mxu0
        %v1037 = vsel %vm894, %v1035, -inf
        %1038 = vmax.xlane.f32.xlu0 %v1037
        %v1039 = vpop.xlane.xlu0 %1038
        %v1040 = vsub.f32 %v1035, %v1039
        %v1041 = vmul.f32 %v1040, 1.442695
        %v1042 = vpow.pop %v1041
        %v1043 = vsel %vm894, %v1042, 0.0
        %1044 = vadd.xlane.f32.xlu0 %v1043
        %v1045 = vpop.xlane.xlu0 %1044
        %v1046 = vrcp.pop %v1045
        %v1047 = vmul.f32 %v1042, %v1046
        %1048 = vrot.lane.b32.xlu0 %v1011, 64
        %v1049 = vpop.permute.xlu0 %1048
        %v1051 = vmul.f32 %v793, %v1049
        %1053 = vrot.lane.b32.xlu0 %v1051, 64
        %v1054 = vpop.permute.xlu0 %1053
        %v1057 = vsel %vm894, %v1047, 0
        %1059 = vmatpush.msra.mxu0 0.0
        %1060 = vmatpush.msra.mxu0 0.0
        %1061 = vmatpush.msra.mxu0 0.0
        %1062 = vmatpush.msra.mxu0 0.0
        %1063 = vmatpush.msra.mxu0 0.0
        %1064 = vmatpush.msra.mxu0 0.0
        %1065 = vmatpush.msra.mxu0 0.0
        %1066 = vmatpush.msra.mxu0 0.0
        %1067 = vmatpush.msra.mxu0 0.0
        %1068 = vmatpush.msra.mxu0 0.0
        %1069 = vmatpush.msra.mxu0 0.0
        %1070 = vmatpush.msra.mxu0 0.0
        %1071 = vmatpush.msra.mxu0 0.0
        %1072 = vmatpush.msra.mxu0 0.0
        %1073 = vmatpush.msra.mxu0 0.0
        %1074 = vmatpush.msra.mxu0 %v1054
        %1075 = vmatmul.f32.gmra.mxu0 %v1057
        %v1076 = vpop.f32.mrf.mxu0
        %v1077 = vadd.f32 0.0, %v1076
        %1078 = vdwg.mxu0
        %v1079 = vadd.f32 %v1006, %v1077
        %s1080 = scalar_lea.vmem %s5, 3
        %v1081 = vld [vmem:[%s1080] sm:$0x1]
        %v1083 = vperm.slane %v1081, 0
        %v1085 = vmul.f32 %v821, %v1083
        %v1087 = vsel %vm726, %v1085, 0
        %1089 = vmatpush.xpose.msra.mxu0 0.0
        %1090 = vmatpush.xpose.msra.mxu0 0.0
        %1091 = vmatpush.xpose.msra.mxu0 0.0
        %1092 = vmatpush.xpose.msra.mxu0 0.0
        %1093 = vmatpush.xpose.msra.mxu0 0.0
        %1094 = vmatpush.xpose.msra.mxu0 0.0
        %1095 = vmatpush.xpose.msra.mxu0 0.0
        %1096 = vmatpush.xpose.msra.mxu0 0.0
        %1097 = vmatpush.xpose.msra.mxu0 0.0
        %1098 = vmatpush.xpose.msra.mxu0 0.0
        %1099 = vmatpush.xpose.msra.mxu0 0.0
        %1100 = vmatpush.xpose.msra.mxu0 0.0
        %1101 = vmatpush.xpose.msra.mxu0 0.0
        %1102 = vmatpush.xpose.msra.mxu0 0.0
        %1103 = vmatpush.xpose.msra.mxu0 0.0
        %1104 = vmatpush.xpose.msra.mxu0 %v872
        %1105 = vmatmul.f32.gmra.mxu0 %v1087
        %v1106 = vpop.f32.mrf.mxu0
        %v1107 = vadd.f32 %v864, %v1106
        %1108 = vdwg.mxu0
        %v1109 = vsel %vm894, %v1107, -inf
        %1110 = vmax.xlane.f32.xlu0 %v1109
        %v1111 = vpop.xlane.xlu0 %1110
        %v1112 = vsub.f32 %v1107, %v1111
        %v1113 = vmul.f32 %v1112, 1.442695
        %v1114 = vpow.pop %v1113
        %v1115 = vsel %vm894, %v1114, 0.0
        %1116 = vadd.xlane.f32.xlu0 %v1115
        %v1117 = vpop.xlane.xlu0 %1116
        %v1118 = vrcp.pop %v1117
        %v1119 = vmul.f32 %v1114, %v1118
        %1120 = vrot.lane.b32.xlu0 %v1083, 64
        %v1121 = vpop.permute.xlu0 %1120
        %v1123 = vmul.f32 %v793, %v1121
        %1125 = vrot.lane.b32.xlu0 %v1123, 64
        %v1126 = vpop.permute.xlu0 %1125
        %v1129 = vsel %vm894, %v1119, 0
        %1131 = vmatpush.msra.mxu0 0.0
        %1132 = vmatpush.msra.mxu0 0.0
        %1133 = vmatpush.msra.mxu0 0.0
        %1134 = vmatpush.msra.mxu0 0.0
        %1135 = vmatpush.msra.mxu0 0.0
        %1136 = vmatpush.msra.mxu0 0.0
        %1137 = vmatpush.msra.mxu0 0.0
        %1138 = vmatpush.msra.mxu0 0.0
        %1139 = vmatpush.msra.mxu0 0.0
        %1140 = vmatpush.msra.mxu0 0.0
        %1141 = vmatpush.msra.mxu0 0.0
        %1142 = vmatpush.msra.mxu0 0.0
        %1143 = vmatpush.msra.mxu0 0.0
        %1144 = vmatpush.msra.mxu0 0.0
        %1145 = vmatpush.msra.mxu0 0.0
        %1146 = vmatpush.msra.mxu0 %v1126
        %1147 = vmatmul.f32.gmra.mxu0 %v1129
        %v1148 = vpop.f32.mrf.mxu0
        %v1149 = vadd.f32 0.0, %v1148
        %1150 = vdwg.mxu0
        %v1151 = vadd.f32 %v1079, %v1149
        %v1152 = vld [vmem:[%s11] sm:$0xff]
        %v1153 = vld [vmem:[%s11 + $0x8] sm:$0xff]
        %v1154 = vld [vmem:[%s11 + $0x10] sm:$0xff]
        %v1155 = vld [vmem:[%s11 + $0x18] sm:$0xff]
        %v1157 = vsel %vm726, %v1151, 0
        %1159 = vmatpush.msra.mxu0 0.0
        %1160 = vmatpush.msra.mxu0 0.0
        %1161 = vmatpush.msra.mxu0 0.0
        %1162 = vmatpush.msra.mxu0 0.0
        %1163 = vmatpush.msra.mxu0 0.0
        %1164 = vmatpush.msra.mxu0 0.0
        %1165 = vmatpush.msra.mxu0 0.0
        %1166 = vmatpush.msra.mxu0 0.0
        %1167 = vmatpush.msra.mxu0 0.0
        %1168 = vmatpush.msra.mxu0 0.0
        %1169 = vmatpush.msra.mxu0 0.0
        %1170 = vmatpush.msra.mxu0 0.0
        %1171 = vmatpush.msra.mxu0 %v1155
        %1172 = vmatpush.msra.mxu0 %v1154
        %1173 = vmatpush.msra.mxu0 %v1153
        %1174 = vmatpush.msra.mxu0 %v1152
        %1175 = vmatmul.f32.gmra.mxu0 %v1157
        %v1176 = vpop.f32.mrf.mxu0
        %v1177 = vadd.f32 0.0, %v1176
        %1178 = vdwg.mxu0
        %v1179 = vadd.f32 %v723, %v1177
        %v1180 = vld [vmem:[%s12] sm:$0x1]
        %v1182 = vperm.slane %v1180, 0
        %v1184 = vadd.f32 %v1179, %v1182
        %v1185 = vld [vmem:[%s13] sm:$0x1]
        %v1186 = vld [vmem:[%s14] sm:$0x1]
        %v1187 = vsel %vm726, %v1184, 0.0
        %1188 = vadd.xlane.f32.xlu0 %v1187
        %v1189 = vpop.xlane.xlu0 %1188
        %v1190 = vmul.f32 %v1189, %v736
        %v1191 = vsub.f32 %v1184, %v1190
        %v1192 = vmul.f32 %v1191, %v1191
        %v1193 = vsel %vm726, %v1192, 0.0
        %1194 = vadd.xlane.f32.xlu0 %v1193
        %v1195 = vpop.xlane.xlu0 %1194
        %v1196 = vmul.f32 %v1195, %v736
        %v1197 = vadd.f32 %v1196, 1e-05
        %v1198 = vrsqrt.pop %v1197
        %v1199 = vmul.f32 %v1198, %v1197
        %v1200 = vmul.f32 %v1199, %v1198
        %v1201 = vmul.f32 0.5, %v1200
        %v1202 = vsub.f32 1.5, %v1201
        %v1203 = vmul.f32 %v1198, %v1202
        %vm1204 = vweird.f32 %v1197
        %vm1205 = vweird.f32 %v1198
        %vm1206 = vmor %vm1204, %vm1205
        %v1207 = vsel %vm1206, %v1198, %v1203
        %v1208 = vmul.f32 %v1191, %v1207
        %v1210 = vperm.slane %v1185, 0
        %v1212 = vmul.f32 %v1208, %v1210
        %v1214 = vperm.slane %v1186, 0
        %v1216 = vadd.f32 %v1212, %v1214
        %v1217 = vld [vmem:[%s15] sm:$0xff]
        %v1218 = vld [vmem:[%s15 + $0x8] sm:$0xff]
        %v1219 = vld [vmem:[%s15 + $0x10] sm:$0xff]
        %v1220 = vld [vmem:[%s15 + $0x18] sm:$0xff]
        %v1221 = vld [vmem:[%s16] sm:$0x1]
        %v1223 = vperm.slane %v1221, 0
        %v1226 = vsel %vm726, %v1216, 0
        %1228 = vmatpush.msra.mxu0 0.0
        %1229 = vmatpush.msra.mxu0 0.0
        %1230 = vmatpush.msra.mxu0 0.0
        %1231 = vmatpush.msra.mxu0 0.0
        %1232 = vmatpush.msra.mxu0 0.0
        %1233 = vmatpush.msra.mxu0 0.0
        %1234 = vmatpush.msra.mxu0 0.0
        %1235 = vmatpush.msra.mxu0 0.0
        %1236 = vmatpush.msra.mxu0 0.0
        %1237 = vmatpush.msra.mxu0 0.0
        %1238 = vmatpush.msra.mxu0 0.0
        %1239 = vmatpush.msra.mxu0 0.0
        %1240 = vmatpush.msra.mxu0 %v1220
        %1241 = vmatpush.msra.mxu0 %v1219
        %1242 = vmatpush.msra.mxu0 %v1218
        %1243 = vmatpush.msra.mxu0 %v1217
        %1244 = vmatmul.f32.gmra.mxu0 %v1226
        %v1245 = vpop.f32.mrf.mxu0
        %v1246 = vadd.f32 %v1223, %v1245
        %1247 = vdwg.mxu0
        %v1248 = vmul.f32 %v1246, 0.5
        %v1249 = vmul.f32 %v1246, 0.044715
        %v1250 = vmul.f32 %v1249, %v1246
        %v1251 = vmul.f32 %v1250, %v1246
        %v1252 = vadd.f32 %v1246, %v1251
        %v1253 = vmul.f32 %v1252, 0.7978846
        %v1254 = vtanh.pop %v1253
        %v1255 = vadd.f32 %v1254, 1.0
        %v1256 = vmul.f32 %v1248, %v1255
        %v1257 = vld [vmem:[%s17] sm:$0xff]
        %v1258 = vld [vmem:[%s17 + $0x8] sm:$0xff]
        %v1259 = vld [vmem:[%s17 + $0x10] sm:$0xff]
        %v1260 = vld [vmem:[%s17 + $0x18] sm:$0xff]
        %v1261 = vld [vmem:[%s17 + $0x20] sm:$0xff]
        %v1262 = vld [vmem:[%s17 + $0x28] sm:$0xff]
        %v1263 = vld [vmem:[%s17 + $0x30] sm:$0xff]
        %v1264 = vld [vmem:[%s17 + $0x38] sm:$0xff]
        %v1265 = vld [vmem:[%s17 + $0x40] sm:$0xff]
        %v1266 = vld [vmem:[%s17 + $0x48] sm:$0xff]
        %v1267 = vld [vmem:[%s17 + $0x50] sm:$0xff]
        %v1268 = vld [vmem:[%s17 + $0x58] sm:$0xff]
        %v1269 = vld [vmem:[%s17 + $0x60] sm:$0xff]
        %v1270 = vld [vmem:[%s17 + $0x68] sm:$0xff]
        %v1271 = vld [vmem:[%s17 + $0x70] sm:$0xff]
        %v1272 = vld [vmem:[%s17 + $0x78] sm:$0xff]
        %1273 = vmatpush.msra.mxu0 %v1272
        %1274 = vmatpush.msra.mxu0 %v1271
        %1275 = vmatpush.msra.mxu0 %v1270
        %1276 = vmatpush.msra.mxu0 %v1269
        %1277 = vmatpush.msra.mxu0 %v1268
        %1278 = vmatpush.msra.mxu0 %v1267
        %1279 = vmatpush.msra.mxu0 %v1266
        %1280 = vmatpush.msra.mxu0 %v1265
        %1281 = vmatpush.msra.mxu0 %v1264
        %1282 = vmatpush.msra.mxu0 %v1263
        %1283 = vmatpush.msra.mxu0 %v1262
        %1284 = vmatpush.msra.mxu0 %v1261
        %1285 = vmatpush.msra.mxu0 %v1260
        %1286 = vmatpush.msra.mxu0 %v1259
        %1287 = vmatpush.msra.mxu0 %v1258
        %1288 = vmatpush.msra.mxu0 %v1257
        %1289 = vmatmul.f32.gmra.mxu0 %v1256
        %v1290 = vpop.f32.mrf.mxu0
        %v1291 = vadd.f32 0.0, %v1290
        %1292 = vdwg.mxu0
        %v1293 = vadd.f32 %v1184, %v1291
        %v1294 = vld [vmem:[%s18] sm:$0x1]
        %v1296 = vperm.slane %v1294, 0
        %v1298 = vadd.f32 %v1293, %v1296
        %s1299 = scalar_lea.vmem %s7, 1
        %v1300 = vld [vmem:[%s1299] sm:$0x1]
        %s1301 = scalar_lea.vmem %s8, 1
        %v1302 = vld [vmem:[%s1301] sm:$0x1]
        %v1303 = vsel %vm726, %v1298, 0.0
        %1304 = vadd.xlane.f32.xlu0 %v1303
        %v1305 = vpop.xlane.xlu0 %1304
        %v1306 = vmul.f32 %v1305, %v736
        %v1307 = vsub.f32 %v1298, %v1306
        %v1308 = vmul.f32 %v1307, %v1307
        %v1309 = vsel %vm726, %v1308, 0.0
        %1310 = vadd.xlane.f32.xlu0 %v1309
        %v1311 = vpop.xlane.xlu0 %1310
        %v1312 = vmul.f32 %v1311, %v736
        %v1313 = vadd.f32 %v1312, 1e-05
        %v1314 = vrsqrt.pop %v1313
        %v1315 = vmul.f32 %v1314, %v1313
        %v1316 = vmul.f32 %v1315, %v1314
        %v1317 = vmul.f32 0.5, %v1316
        %v1318 = vsub.f32 1.5, %v1317
        %v1319 = vmul.f32 %v1314, %v1318
        %vm1320 = vweird.f32 %v1313
        %vm1321 = vweird.f32 %v1314
        %vm1322 = vmor %vm1320, %vm1321
        %v1323 = vsel %vm1322, %v1314, %v1319
        %v1324 = vmul.f32 %v1307, %v1323
        %v1326 = vperm.slane %v1300, 0
        %v1328 = vmul.f32 %v1324, %v1326
        %v1330 = vperm.slane %v1302, 0
        %v1332 = vadd.f32 %v1328, %v1330
        %s1333 = scalar_lea.vmem %s9, 32
        %v1334 = vld [vmem:[%s1333] sm:$0xff]
        %v1335 = vld [vmem:[%s1333 + $0x8] sm:$0xff]
        %v1336 = vld [vmem:[%s1333 + $0x10] sm:$0xff]
        %v1337 = vld [vmem:[%s1333 + $0x18] sm:$0xff]
        %s1338 = scalar_lea.vmem %s10, 1
        %v1339 = vld [vmem:[%s1338] sm:$0x1]
        %v1341 = vperm.slane %v1339, 0
        %v1344 = vsel %vm726, %v1332, 0
        %1346 = vmatpush.msra.mxu0 0.0
        %1347 = vmatpush.msra.mxu0 0.0
        %1348 = vmatpush.msra.mxu0 0.0
        %1349 = vmatpush.msra.mxu0 0.0
        %1350 = vmatpush.msra.mxu0 0.0
        %1351 = vmatpush.msra.mxu0 0.0
        %1352 = vmatpush.msra.mxu0 0.0
        %1353 = vmatpush.msra.mxu0 0.0
        %1354 = vmatpush.msra.mxu0 0.0
        %1355 = vmatpush.msra.mxu0 0.0
        %1356 = vmatpush.msra.mxu0 0.0
        %1357 = vmatpush.msra.mxu0 0.0
        %1358 = vmatpush.msra.mxu0 %v1337
        %1359 = vmatpush.msra.mxu0 %v1336
        %1360 = vmatpush.msra.mxu0 %v1335
        %1361 = vmatpush.msra.mxu0 %v1334
        %1362 = vmatmul.f32.gmra.mxu0 %v1344
        %v1363 = vpop.f32.mrf.mxu0
        %v1364 = vadd.f32 %v1341, %v1363
        %1365 = vdwg.mxu0
        %v1366 = vmul.f32 %v1364, 0.35355338
        %v1367 = vmul.f32 %v1366, %v668
        %v1369 = vsel %vm726, %v1366, 0
        %1371 = vmatpush.msra.mxu0 0.0
        %1372 = vmatpush.msra.mxu0 0.0
        %1373 = vmatpush.msra.mxu0 0.0
        %1374 = vmatpush.msra.mxu0 0.0
        %1375 = vmatpush.msra.mxu0 0.0
        %1376 = vmatpush.msra.mxu0 0.0
        %1377 = vmatpush.msra.mxu0 0.0
        %1378 = vmatpush.msra.mxu0 0.0
        %1379 = vmatpush.msra.mxu0 0.0
        %1380 = vmatpush.msra.mxu0 0.0
        %1381 = vmatpush.msra.mxu0 0.0
        %1382 = vmatpush.msra.mxu0 0.0
        %1383 = vmatpush.msra.mxu0 %v673
        %1384 = vmatpush.msra.mxu0 %v672
        %1385 = vmatpush.msra.mxu0 %v671
        %1386 = vmatpush.msra.mxu0 %v670
        %1387 = vmatmul.f32.gmra.mxu0 %v1369
        %v1388 = vpop.f32.mrf.mxu0
        %v1389 = vadd.f32 0.0, %v1388
        %1390 = vdwg.mxu0
        %v1391 = vmul.f32 %v1389, %v669
        %v1392 = vadd.f32 %v1367, %v1391
        %v1393 = vmul.f32 %v1364, %v824
        %1395 = vrot.lane.b32.xlu0 %v1364, 96
        %v1396 = vpop.permute.xlu0 %1395
        %v1397 = vsel %vm726, %v1396, 0
        %1399 = vmatpush.msra.mxu0 0.0
        %1400 = vmatpush.msra.mxu0 0.0
        %1401 = vmatpush.msra.mxu0 0.0
        %1402 = vmatpush.msra.mxu0 0.0
        %1403 = vmatpush.msra.mxu0 0.0
        %1404 = vmatpush.msra.mxu0 0.0
        %1405 = vmatpush.msra.mxu0 0.0
        %1406 = vmatpush.msra.mxu0 0.0
        %1407 = vmatpush.msra.mxu0 0.0
        %1408 = vmatpush.msra.mxu0 0.0
        %1409 = vmatpush.msra.mxu0 0.0
        %1410 = vmatpush.msra.mxu0 0.0
        %1411 = vmatpush.msra.mxu0 %v673
        %1412 = vmatpush.msra.mxu0 %v672
        %1413 = vmatpush.msra.mxu0 %v671
        %1414 = vmatpush.msra.mxu0 %v670
        %1415 = vmatmul.f32.gmra.mxu0 %v1397
        %v1416 = vpop.f32.mrf.mxu0
        %v1417 = vadd.f32 0.0, %v1416
        %1418 = vdwg.mxu0
        %v1419 = vmul.f32 %v1417, %v669
        %1421 = vrot.lane.b32.xlu0 %v1419, 32
        %v1422 = vpop.permute.xlu0 %1421
        %v1424 = vadd.f32 %v1393, %v1422
        %v1425 = vmul.f32 %v1392, %v860
        %1427 = vrot.lane.b32.xlu0 %v1424, 96
        %v1428 = vpop.permute.xlu0 %1427
        %v1430 = vsel %vm726, %v1425, 0
        %v1432 = vsel %vm726, %v1428, 0
        %1434 = vmatpush.xpose.msra.mxu0 0.0
        %1435 = vmatpush.xpose.msra.mxu0 0.0
        %1436 = vmatpush.xpose.msra.mxu0 0.0
        %1437 = vmatpush.xpose.msra.mxu0 0.0
        %1438 = vmatpush.xpose.msra.mxu0 0.0
        %1439 = vmatpush.xpose.msra.mxu0 0.0
        %1440 = vmatpush.xpose.msra.mxu0 0.0
        %1441 = vmatpush.xpose.msra.mxu0 0.0
        %1442 = vmatpush.xpose.msra.mxu0 0.0
        %1443 = vmatpush.xpose.msra.mxu0 0.0
        %1444 = vmatpush.xpose.msra.mxu0 0.0
        %1445 = vmatpush.xpose.msra.mxu0 0.0
        %1446 = vmatpush.xpose.msra.mxu0 0.0
        %1447 = vmatpush.xpose.msra.mxu0 0.0
        %1448 = vmatpush.xpose.msra.mxu0 0.0
        %1449 = vmatpush.xpose.msra.mxu0 %v1432
        %1450 = vmatmul.f32.gmra.mxu0 %v1430
        %v1451 = vpop.f32.mrf.mxu0
        %v1452 = vadd.f32 %v864, %v1451
        %1453 = vdwg.mxu0
        %v1454 = vsel %vm894, %v1452, -inf
        %1455 = vmax.xlane.f32.xlu0 %v1454
        %v1456 = vpop.xlane.xlu0 %1455
        %v1457 = vsub.f32 %v1452, %v1456
        %v1458 = vmul.f32 %v1457, 1.442695
        %v1459 = vpow.pop %v1458
        %v1460 = vsel %vm894, %v1459, 0.0
        %1461 = vadd.xlane.f32.xlu0 %v1460
        %v1462 = vpop.xlane.xlu0 %1461
        %v1463 = vrcp.pop %v1462
        %v1464 = vmul.f32 %v1459, %v1463
        %v1465 = vmul.f32 %v1364, %v907
        %v1466 = vmul.f32 %v1392, %v913
        %v1468 = vsel %vm726, %v1466, 0
        %1470 = vmatpush.xpose.msra.mxu0 0.0
        %1471 = vmatpush.xpose.msra.mxu0 0.0
        %1472 = vmatpush.xpose.msra.mxu0 0.0
        %1473 = vmatpush.xpose.msra.mxu0 0.0
        %1474 = vmatpush.xpose.msra.mxu0 0.0
        %1475 = vmatpush.xpose.msra.mxu0 0.0
        %1476 = vmatpush.xpose.msra.mxu0 0.0
        %1477 = vmatpush.xpose.msra.mxu0 0.0
        %1478 = vmatpush.xpose.msra.mxu0 0.0
        %1479 = vmatpush.xpose.msra.mxu0 0.0
        %1480 = vmatpush.xpose.msra.mxu0 0.0
        %1481 = vmatpush.xpose.msra.mxu0 0.0
        %1482 = vmatpush.xpose.msra.mxu0 0.0
        %1483 = vmatpush.xpose.msra.mxu0 0.0
        %1484 = vmatpush.xpose.msra.mxu0 0.0
        %1485 = vmatpush.xpose.msra.mxu0 %v1432
        %1486 = vmatmul.f32.gmra.mxu0 %v1468
        %v1487 = vpop.f32.mrf.mxu0
        %v1488 = vadd.f32 %v864, %v1487
        %1489 = vdwg.mxu0
        %v1490 = vsel %vm894, %v1488, -inf
        %1491 = vmax.xlane.f32.xlu0 %v1490
        %v1492 = vpop.xlane.xlu0 %1491
        %v1493 = vsub.f32 %v1488, %v1492
        %v1494 = vmul.f32 %v1493, 1.442695
        %v1495 = vpow.pop %v1494
        %v1496 = vsel %vm894, %v1495, 0.0
        %1497 = vadd.xlane.f32.xlu0 %v1496
        %v1498 = vpop.xlane.xlu0 %1497
        %v1499 = vrcp.pop %v1498
        %v1500 = vmul.f32 %v1495, %v1499
        %v1501 = vmul.f32 %v1364, %v951
        %1503 = vrot.lane.b32.xlu0 %v1501, 64
        %v1504 = vpop.permute.xlu0 %1503
        %v1507 = vsel %vm894, %v1500, 0
        %1509 = vmatpush.msra.mxu0 0.0
        %1510 = vmatpush.msra.mxu0 0.0
        %1511 = vmatpush.msra.mxu0 0.0
        %1512 = vmatpush.msra.mxu0 0.0
        %1513 = vmatpush.msra.mxu0 0.0
        %1514 = vmatpush.msra.mxu0 0.0
        %1515 = vmatpush.msra.mxu0 0.0
        %1516 = vmatpush.msra.mxu0 0.0
        %1517 = vmatpush.msra.mxu0 0.0
        %1518 = vmatpush.msra.mxu0 0.0
        %1519 = vmatpush.msra.mxu0 0.0
        %1520 = vmatpush.msra.mxu0 0.0
        %1521 = vmatpush.msra.mxu0 0.0
        %1522 = vmatpush.msra.mxu0 0.0
        %1523 = vmatpush.msra.mxu0 0.0
        %1524 = vmatpush.msra.mxu0 %v1504
        %1525 = vmatmul.f32.gmra.mxu0 %v1507
        %v1526 = vpop.f32.mrf.mxu0
        %v1527 = vadd.f32 0.0, %v1526
        %1528 = vdwg.mxu0
        %1530 = vrot.lane.b32.xlu0 %v1465, 64
        %v1531 = vpop.permute.xlu0 %1530
        %v1534 = vsel %vm894, %v1464, 0
        %1536 = vmatpush.msra.mxu0 0.0
        %1537 = vmatpush.msra.mxu0 0.0
        %1538 = vmatpush.msra.mxu0 0.0
        %1539 = vmatpush.msra.mxu0 0.0
        %1540 = vmatpush.msra.mxu0 0.0
        %1541 = vmatpush.msra.mxu0 0.0
        %1542 = vmatpush.msra.mxu0 0.0
        %1543 = vmatpush.msra.mxu0 0.0
        %1544 = vmatpush.msra.mxu0 0.0
        %1545 = vmatpush.msra.mxu0 0.0
        %1546 = vmatpush.msra.mxu0 0.0
        %1547 = vmatpush.msra.mxu0 0.0
        %1548 = vmatpush.msra.mxu0 0.0
        %1549 = vmatpush.msra.mxu0 0.0
        %1550 = vmatpush.msra.mxu0 0.0
        %1551 = vmatpush.msra.mxu0 %v1531
        %1552 = vmatmul.f32.gmra.mxu0 %v1534
        %v1553 = vpop.f32.mrf.mxu0
        %v1554 = vadd.f32 %v1527, %v1553
        %1555 = vdwg.mxu0
        %v1556 = vmul.f32 %v1392, %v1011
        %v1558 = vsel %vm726, %v1556, 0
        %1560 = vmatpush.xpose.msra.mxu0 0.0
        %1561 = vmatpush.xpose.msra.mxu0 0.0
        %1562 = vmatpush.xpose.msra.mxu0 0.0
        %1563 = vmatpush.xpose.msra.mxu0 0.0
        %1564 = vmatpush.xpose.msra.mxu0 0.0
        %1565 = vmatpush.xpose.msra.mxu0 0.0
        %1566 = vmatpush.xpose.msra.mxu0 0.0
        %1567 = vmatpush.xpose.msra.mxu0 0.0
        %1568 = vmatpush.xpose.msra.mxu0 0.0
        %1569 = vmatpush.xpose.msra.mxu0 0.0
        %1570 = vmatpush.xpose.msra.mxu0 0.0
        %1571 = vmatpush.xpose.msra.mxu0 0.0
        %1572 = vmatpush.xpose.msra.mxu0 0.0
        %1573 = vmatpush.xpose.msra.mxu0 0.0
        %1574 = vmatpush.xpose.msra.mxu0 0.0
        %1575 = vmatpush.xpose.msra.mxu0 %v1432
        %1576 = vmatmul.f32.gmra.mxu0 %v1558
        %v1577 = vpop.f32.mrf.mxu0
        %v1578 = vadd.f32 %v864, %v1577
        %1579 = vdwg.mxu0
        %v1580 = vsel %vm894, %v1578, -inf
        %1581 = vmax.xlane.f32.xlu0 %v1580
        %v1582 = vpop.xlane.xlu0 %1581
        %v1583 = vsub.f32 %v1578, %v1582
        %v1584 = vmul.f32 %v1583, 1.442695
        %v1585 = vpow.pop %v1584
        %v1586 = vsel %vm894, %v1585, 0.0
        %1587 = vadd.xlane.f32.xlu0 %v1586
        %v1588 = vpop.xlane.xlu0 %1587
        %v1589 = vrcp.pop %v1588
        %v1590 = vmul.f32 %v1585, %v1589
        %v1591 = vmul.f32 %v1364, %v1049
        %1593 = vrot.lane.b32.xlu0 %v1591, 64
        %v1594 = vpop.permute.xlu0 %1593
        %v1597 = vsel %vm894, %v1590, 0
        %1599 = vmatpush.msra.mxu0 0.0
        %1600 = vmatpush.msra.mxu0 0.0
        %1601 = vmatpush.msra.mxu0 0.0
        %1602 = vmatpush.msra.mxu0 0.0
        %1603 = vmatpush.msra.mxu0 0.0
        %1604 = vmatpush.msra.mxu0 0.0
        %1605 = vmatpush.msra.mxu0 0.0
        %1606 = vmatpush.msra.mxu0 0.0
        %1607 = vmatpush.msra.mxu0 0.0
        %1608 = vmatpush.msra.mxu0 0.0
        %1609 = vmatpush.msra.mxu0 0.0
        %1610 = vmatpush.msra.mxu0 0.0
        %1611 = vmatpush.msra.mxu0 0.0
        %1612 = vmatpush.msra.mxu0 0.0
        %1613 = vmatpush.msra.mxu0 0.0
        %1614 = vmatpush.msra.mxu0 %v1594
        %1615 = vmatmul.f32.gmra.mxu0 %v1597
        %v1616 = vpop.f32.mrf.mxu0
        %v1617 = vadd.f32 0.0, %v1616
        %1618 = vdwg.mxu0
        %v1619 = vadd.f32 %v1554, %v1617
        %v1620 = vmul.f32 %v1392, %v1083
        %v1622 = vsel %vm726, %v1620, 0
        %1624 = vmatpush.xpose.msra.mxu0 0.0
        %1625 = vmatpush.xpose.msra.mxu0 0.0
        %1626 = vmatpush.xpose.msra.mxu0 0.0
        %1627 = vmatpush.xpose.msra.mxu0 0.0
        %1628 = vmatpush.xpose.msra.mxu0 0.0
        %1629 = vmatpush.xpose.msra.mxu0 0.0
        %1630 = vmatpush.xpose.msra.mxu0 0.0
        %1631 = vmatpush.xpose.msra.mxu0 0.0
        %1632 = vmatpush.xpose.msra.mxu0 0.0
        %1633 = vmatpush.xpose.msra.mxu0 0.0
        %1634 = vmatpush.xpose.msra.mxu0 0.0
        %1635 = vmatpush.xpose.msra.mxu0 0.0
        %1636 = vmatpush.xpose.msra.mxu0 0.0
        %1637 = vmatpush.xpose.msra.mxu0 0.0
        %1638 = vmatpush.xpose.msra.mxu0 0.0
        %1639 = vmatpush.xpose.msra.mxu0 %v1432
        %1640 = vmatmul.f32.gmra.mxu0 %v1622
        %v1641 = vpop.f32.mrf.mxu0
        %v1642 = vadd.f32 %v864, %v1641
        %1643 = vdwg.mxu0
        %v1644 = vsel %vm894, %v1642, -inf
        %1645 = vmax.xlane.f32.xlu0 %v1644
        %v1646 = vpop.xlane.xlu0 %1645
        %v1647 = vsub.f32 %v1642, %v1646
        %v1648 = vmul.f32 %v1647, 1.442695
        %v1649 = vpow.pop %v1648
        %v1650 = vsel %vm894, %v1649, 0.0
        %1651 = vadd.xlane.f32.xlu0 %v1650
        %v1652 = vpop.xlane.xlu0 %1651
        %v1653 = vrcp.pop %v1652
        %v1654 = vmul.f32 %v1649, %v1653
        %v1655 = vmul.f32 %v1364, %v1121
        %1657 = vrot.lane.b32.xlu0 %v1655, 64
        %v1658 = vpop.permute.xlu0 %1657
        %v1661 = vsel %vm894, %v1654, 0
        %1663 = vmatpush.msra.mxu0 0.0
        %1664 = vmatpush.msra.mxu0 0.0
        %1665 = vmatpush.msra.mxu0 0.0
        %1666 = vmatpush.msra.mxu0 0.0
        %1667 = vmatpush.msra.mxu0 0.0
        %1668 = vmatpush.msra.mxu0 0.0
        %1669 = vmatpush.msra.mxu0 0.0
        %1670 = vmatpush.msra.mxu0 0.0
        %1671 = vmatpush.msra.mxu0 0.0
        %1672 = vmatpush.msra.mxu0 0.0
        %1673 = vmatpush.msra.mxu0 0.0
        %1674 = vmatpush.msra.mxu0 0.0
        %1675 = vmatpush.msra.mxu0 0.0
        %1676 = vmatpush.msra.mxu0 0.0
        %1677 = vmatpush.msra.mxu0 0.0
        %1678 = vmatpush.msra.mxu0 %v1658
        %1679 = vmatmul.f32.gmra.mxu0 %v1661
        %v1680 = vpop.f32.mrf.mxu0
        %v1681 = vadd.f32 0.0, %v1680
        %1682 = vdwg.mxu0
        %v1683 = vadd.f32 %v1619, %v1681
        %s1684 = scalar_lea.vmem %s11, 32
        %v1685 = vld [vmem:[%s1684] sm:$0xff]
        %v1686 = vld [vmem:[%s1684 + $0x8] sm:$0xff]
        %v1687 = vld [vmem:[%s1684 + $0x10] sm:$0xff]
        %v1688 = vld [vmem:[%s1684 + $0x18] sm:$0xff]
        %v1690 = vsel %vm726, %v1683, 0
        %1692 = vmatpush.msra.mxu0 0.0
        %1693 = vmatpush.msra.mxu0 0.0
        %1694 = vmatpush.msra.mxu0 0.0
        %1695 = vmatpush.msra.mxu0 0.0
        %1696 = vmatpush.msra.mxu0 0.0
        %1697 = vmatpush.msra.mxu0 0.0
        %1698 = vmatpush.msra.mxu0 0.0
        %1699 = vmatpush.msra.mxu0 0.0
        %1700 = vmatpush.msra.mxu0 0.0
        %1701 = vmatpush.msra.mxu0 0.0
        %1702 = vmatpush.msra.mxu0 0.0
        %1703 = vmatpush.msra.mxu0 0.0
        %1704 = vmatpush.msra.mxu0 %v1688
        %1705 = vmatpush.msra.mxu0 %v1687
        %1706 = vmatpush.msra.mxu0 %v1686
        %1707 = vmatpush.msra.mxu0 %v1685
        %1708 = vmatmul.f32.gmra.mxu0 %v1690
        %v1709 = vpop.f32.mrf.mxu0
        %v1710 = vadd.f32 0.0, %v1709
        %1711 = vdwg.mxu0
        %v1712 = vadd.f32 %v1298, %v1710
        %s1713 = scalar_lea.vmem %s12, 1
        %v1714 = vld [vmem:[%s1713] sm:$0x1]
        %v1716 = vperm.slane %v1714, 0
        %v1718 = vadd.f32 %v1712, %v1716
        %s1719 = scalar_lea.vmem %s13, 1
        %v1720 = vld [vmem:[%s1719] sm:$0x1]
        %s1721 = scalar_lea.vmem %s14, 1
        %v1722 = vld [vmem:[%s1721] sm:$0x1]
        %v1723 = vsel %vm726, %v1718, 0.0
        %1724 = vadd.xlane.f32.xlu0 %v1723
        %v1725 = vpop.xlane.xlu0 %1724
        %v1726 = vmul.f32 %v1725, %v736
        %v1727 = vsub.f32 %v1718, %v1726
        %v1728 = vmul.f32 %v1727, %v1727
        %v1729 = vsel %vm726, %v1728, 0.0
        %1730 = vadd.xlane.f32.xlu0 %v1729
        %v1731 = vpop.xlane.xlu0 %1730
        %v1732 = vmul.f32 %v1731, %v736
        %v1733 = vadd.f32 %v1732, 1e-05
        %v1734 = vrsqrt.pop %v1733
        %v1735 = vmul.f32 %v1734, %v1733
        %v1736 = vmul.f32 %v1735, %v1734
        %v1737 = vmul.f32 0.5, %v1736
        %v1738 = vsub.f32 1.5, %v1737
        %v1739 = vmul.f32 %v1734, %v1738
        %vm1740 = vweird.f32 %v1733
        %vm1741 = vweird.f32 %v1734
        %vm1742 = vmor %vm1740, %vm1741
        %v1743 = vsel %vm1742, %v1734, %v1739
        %v1744 = vmul.f32 %v1727, %v1743
        %v1746 = vperm.slane %v1720, 0
        %v1748 = vmul.f32 %v1744, %v1746
        %v1750 = vperm.slane %v1722, 0
        %v1752 = vadd.f32 %v1748, %v1750
        %s1753 = scalar_lea.vmem %s15, 32
        %v1754 = vld [vmem:[%s1753] sm:$0xff]
        %v1755 = vld [vmem:[%s1753 + $0x8] sm:$0xff]
        %v1756 = vld [vmem:[%s1753 + $0x10] sm:$0xff]
        %v1757 = vld [vmem:[%s1753 + $0x18] sm:$0xff]
        %s1758 = scalar_lea.vmem %s16, 1
        %v1759 = vld [vmem:[%s1758] sm:$0x1]
        %v1761 = vperm.slane %v1759, 0
        %v1764 = vsel %vm726, %v1752, 0
        %1766 = vmatpush.msra.mxu0 0.0
        %1767 = vmatpush.msra.mxu0 0.0
        %1768 = vmatpush.msra.mxu0 0.0
        %1769 = vmatpush.msra.mxu0 0.0
        %1770 = vmatpush.msra.mxu0 0.0
        %1771 = vmatpush.msra.mxu0 0.0
        %1772 = vmatpush.msra.mxu0 0.0
        %1773 = vmatpush.msra.mxu0 0.0
        %1774 = vmatpush.msra.mxu0 0.0
        %1775 = vmatpush.msra.mxu0 0.0
        %1776 = vmatpush.msra.mxu0 0.0
        %1777 = vmatpush.msra.mxu0 0.0
        %1778 = vmatpush.msra.mxu0 %v1757
        %1779 = vmatpush.msra.mxu0 %v1756
        %1780 = vmatpush.msra.mxu0 %v1755
        %1781 = vmatpush.msra.mxu0 %v1754
        %1782 = vmatmul.f32.gmra.mxu0 %v1764
        %v1783 = vpop.f32.mrf.mxu0
        %v1784 = vadd.f32 %v1761, %v1783
        %1785 = vdwg.mxu0
        %v1786 = vmul.f32 %v1784, 0.5
        %v1787 = vmul.f32 %v1784, 0.044715
        %v1788 = vmul.f32 %v1787, %v1784
        %v1789 = vmul.f32 %v1788, %v1784
        %v1790 = vadd.f32 %v1784, %v1789
        %v1791 = vmul.f32 %v1790, 0.7978846
        %v1792 = vtanh.pop %v1791
        %v1793 = vadd.f32 %v1792, 1.0
        %v1794 = vmul.f32 %v1786, %v1793
        %s1795 = scalar_lea.vmem %s17, 128
        %v1796 = vld [vmem:[%s1795] sm:$0xff]
        %v1797 = vld [vmem:[%s1795 + $0x8] sm:$0xff]
        %v1798 = vld [vmem:[%s1795 + $0x10] sm:$0xff]
        %v1799 = vld [vmem:[%s1795 + $0x18] sm:$0xff]
        %v1800 = vld [vmem:[%s1795 + $0x20] sm:$0xff]
        %v1801 = vld [vmem:[%s1795 + $0x28] sm:$0xff]
        %v1802 = vld [vmem:[%s1795 + $0x30] sm:$0xff]
        %v1803 = vld [vmem:[%s1795 + $0x38] sm:$0xff]
        %v1804 = vld [vmem:[%s1795 + $0x40] sm:$0xff]
        %v1805 = vld [vmem:[%s1795 + $0x48] sm:$0xff]
        %v1806 = vld [vmem:[%s1795 + $0x50] sm:$0xff]
        %v1807 = vld [vmem:[%s1795 + $0x58] sm:$0xff]
        %v1808 = vld [vmem:[%s1795 + $0x60] sm:$0xff]
        %v1809 = vld [vmem:[%s1795 + $0x68] sm:$0xff]
        %v1810 = vld [vmem:[%s1795 + $0x70] sm:$0xff]
        %v1811 = vld [vmem:[%s1795 + $0x78] sm:$0xff]
        %1812 = vmatpush.msra.mxu0 %v1811
        %1813 = vmatpush.msra.mxu0 %v1810
        %1814 = vmatpush.msra.mxu0 %v1809
        %1815 = vmatpush.msra.mxu0 %v1808
        %1816 = vmatpush.msra.mxu0 %v1807
        %1817 = vmatpush.msra.mxu0 %v1806
        %1818 = vmatpush.msra.mxu0 %v1805
        %1819 = vmatpush.msra.mxu0 %v1804
        %1820 = vmatpush.msra.mxu0 %v1803
        %1821 = vmatpush.msra.mxu0 %v1802
        %1822 = vmatpush.msra.mxu0 %v1801
        %1823 = vmatpush.msra.mxu0 %v1800
        %1824 = vmatpush.msra.mxu0 %v1799
        %1825 = vmatpush.msra.mxu0 %v1798
        %1826 = vmatpush.msra.mxu0 %v1797
        %1827 = vmatpush.msra.mxu0 %v1796
        %1828 = vmatmul.f32.gmra.mxu0 %v1794
        %v1829 = vpop.f32.mrf.mxu0
        %v1830 = vadd.f32 0.0, %v1829
        %1831 = vdwg.mxu0
        %v1832 = vadd.f32 %v1718, %v1830
        %s1833 = scalar_lea.vmem %s18, 1
        %v1834 = vld [vmem:[%s1833] sm:$0x1]
        %v1836 = vperm.slane %v1834, 0
        %v1838 = vadd.f32 %v1832, %v1836
        %s1839 = scalar_lea.vmem %s7, 2
        %v1840 = vld [vmem:[%s1839] sm:$0x1]
        %s1841 = scalar_lea.vmem %s8, 2
        %v1842 = vld [vmem:[%s1841] sm:$0x1]
        %v1843 = vsel %vm726, %v1838, 0.0
        %1844 = vadd.xlane.f32.xlu0 %v1843
        %v1845 = vpop.xlane.xlu0 %1844
        %v1846 = vmul.f32 %v1845, %v736
        %v1847 = vsub.f32 %v1838, %v1846
        %v1848 = vmul.f32 %v1847, %v1847
        %v1849 = vsel %vm726, %v1848, 0.0
        %1850 = vadd.xlane.f32.xlu0 %v1849
        %v1851 = vpop.xlane.xlu0 %1850
        %v1852 = vmul.f32 %v1851, %v736
        %v1853 = vadd.f32 %v1852, 1e-05
        %v1854 = vrsqrt.pop %v1853
        %v1855 = vmul.f32 %v1854, %v1853
        %v1856 = vmul.f32 %v1855, %v1854
        %v1857 = vmul.f32 0.5, %v1856
        %v1858 = vsub.f32 1.5, %v1857
        %v1859 = vmul.f32 %v1854, %v1858
        %vm1860 = vweird.f32 %v1853
        %vm1861 = vweird.f32 %v1854
        %vm1862 = vmor %vm1860, %vm1861
        %v1863 = vsel %vm1862, %v1854, %v1859
        %v1864 = vmul.f32 %v1847, %v1863
        %v1866 = vperm.slane %v1840, 0
        %v1868 = vmul.f32 %v1864, %v1866
        %v1870 = vperm.slane %v1842, 0
        %v1872 = vadd.f32 %v1868, %v1870
        %s1873 = scalar_lea.vmem %s9, 64
        %v1874 = vld [vmem:[%s1873] sm:$0xff]
        %v1875 = vld [vmem:[%s1873 + $0x8] sm:$0xff]
        %v1876 = vld [vmem:[%s1873 + $0x10] sm:$0xff]
        %v1877 = vld [vmem:[%s1873 + $0x18] sm:$0xff]
        %s1878 = scalar_lea.vmem %s10, 2
        %v1879 = vld [vmem:[%s1878] sm:$0x1]
        %v1881 = vperm.slane %v1879, 0
        %v1884 = vsel %vm726, %v1872, 0
        %1886 = vmatpush.msra.mxu0 0.0
        %1887 = vmatpush.msra.mxu0 0.0
        %1888 = vmatpush.msra.mxu0 0.0
        %1889 = vmatpush.msra.mxu0 0.0
        %1890 = vmatpush.msra.mxu0 0.0
        %1891 = vmatpush.msra.mxu0 0.0
        %1892 = vmatpush.msra.mxu0 0.0
        %1893 = vmatpush.msra.mxu0 0.0
        %1894 = vmatpush.msra.mxu0 0.0
        %1895 = vmatpush.msra.mxu0 0.0
        %1896 = vmatpush.msra.mxu0 0.0
        %1897 = vmatpush.msra.mxu0 0.0
        %1898 = vmatpush.msra.mxu0 %v1877
        %1899 = vmatpush.msra.mxu0 %v1876
        %1900 = vmatpush.msra.mxu0 %v1875
        %1901 = vmatpush.msra.mxu0 %v1874
        %1902 = vmatmul.f32.gmra.mxu0 %v1884
        %v1903 = vpop.f32.mrf.mxu0
        %v1904 = vadd.f32 %v1881, %v1903
        %1905 = vdwg.mxu0
        %v1906 = vmul.f32 %v1904, 0.35355338
        %v1907 = vmul.f32 %v1906, %v668
        %v1909 = vsel %vm726, %v1906, 0
        %1911 = vmatpush.msra.mxu0 0.0
        %1912 = vmatpush.msra.mxu0 0.0
        %1913 = vmatpush.msra.mxu0 0.0
        %1914 = vmatpush.msra.mxu0 0.0
        %1915 = vmatpush.msra.mxu0 0.0
        %1916 = vmatpush.msra.mxu0 0.0
        %1917 = vmatpush.msra.mxu0 0.0
        %1918 = vmatpush.msra.mxu0 0.0
        %1919 = vmatpush.msra.mxu0 0.0
        %1920 = vmatpush.msra.mxu0 0.0
        %1921 = vmatpush.msra.mxu0 0.0
        %1922 = vmatpush.msra.mxu0 0.0
        %1923 = vmatpush.msra.mxu0 %v673
        %1924 = vmatpush.msra.mxu0 %v672
        %1925 = vmatpush.msra.mxu0 %v671
        %1926 = vmatpush.msra.mxu0 %v670
        %1927 = vmatmul.f32.gmra.mxu0 %v1909
        %v1928 = vpop.f32.mrf.mxu0
        %v1929 = vadd.f32 0.0, %v1928
        %1930 = vdwg.mxu0
        %v1931 = vmul.f32 %v1929, %v669
        %v1932 = vadd.f32 %v1907, %v1931
        %v1933 = vmul.f32 %v1904, %v824
        %1935 = vrot.lane.b32.xlu0 %v1904, 96
        %v1936 = vpop.permute.xlu0 %1935
        %v1937 = vsel %vm726, %v1936, 0
        %1939 = vmatpush.msra.mxu0 0.0
        %1940 = vmatpush.msra.mxu0 0.0
        %1941 = vmatpush.msra.mxu0 0.0
        %1942 = vmatpush.msra.mxu0 0.0
        %1943 = vmatpush.msra.mxu0 0.0
        %1944 = vmatpush.msra.mxu0 0.0
        %1945 = vmatpush.msra.mxu0 0.0
        %1946 = vmatpush.msra.mxu0 0.0
        %1947 = vmatpush.msra.mxu0 0.0
        %1948 = vmatpush.msra.mxu0 0.0
        %1949 = vmatpush.msra.mxu0 0.0
        %1950 = vmatpush.msra.mxu0 0.0
        %1951 = vmatpush.msra.mxu0 %v673
        %1952 = vmatpush.msra.mxu0 %v672
        %1953 = vmatpush.msra.mxu0 %v671
        %1954 = vmatpush.msra.mxu0 %v670
        %1955 = vmatmul.f32.gmra.mxu0 %v1937
        %v1956 = vpop.f32.mrf.mxu0
        %v1957 = vadd.f32 0.0, %v1956
        %1958 = vdwg.mxu0
        %v1959 = vmul.f32 %v1957, %v669
        %1961 = vrot.lane.b32.xlu0 %v1959, 32
        %v1962 = vpop.permute.xlu0 %1961
        %v1964 = vadd.f32 %v1933, %v1962
        %v1965 = vmul.f32 %v1932, %v860
        %1967 = vrot.lane.b32.xlu0 %v1964, 96
        %v1968 = vpop.permute.xlu0 %1967
        %v1970 = vsel %vm726, %v1965, 0
        %v1972 = vsel %vm726, %v1968, 0
        %1974 = vmatpush.xpose.msra.mxu0 0.0
        %1975 = vmatpush.xpose.msra.mxu0 0.0
        %1976 = vmatpush.xpose.msra.mxu0 0.0
        %1977 = vmatpush.xpose.msra.mxu0 0.0
        %1978 = vmatpush.xpose.msra.mxu0 0.0
        %1979 = vmatpush.xpose.msra.mxu0 0.0
        %1980 = vmatpush.xpose.msra.mxu0 0.0
        %1981 = vmatpush.xpose.msra.mxu0 0.0
        %1982 = vmatpush.xpose.msra.mxu0 0.0
        %1983 = vmatpush.xpose.msra.mxu0 0.0
        %1984 = vmatpush.xpose.msra.mxu0 0.0
        %1985 = vmatpush.xpose.msra.mxu0 0.0
        %1986 = vmatpush.xpose.msra.mxu0 0.0
        %1987 = vmatpush.xpose.msra.mxu0 0.0
        %1988 = vmatpush.xpose.msra.mxu0 0.0
        %1989 = vmatpush.xpose.msra.mxu0 %v1972
        %1990 = vmatmul.f32.gmra.mxu0 %v1970
        %v1991 = vpop.f32.mrf.mxu0
        %v1992 = vadd.f32 %v864, %v1991
        %1993 = vdwg.mxu0
        %v1994 = vsel %vm894, %v1992, -inf
        %1995 = vmax.xlane.f32.xlu0 %v1994
        %v1996 = vpop.xlane.xlu0 %1995
        %v1997 = vsub.f32 %v1992, %v1996
        %v1998 = vmul.f32 %v1997, 1.442695
        %v1999 = vpow.pop %v1998
        %v2000 = vsel %vm894, %v1999, 0.0
        %2001 = vadd.xlane.f32.xlu0 %v2000
        %v2002 = vpop.xlane.xlu0 %2001
        %v2003 = vrcp.pop %v2002
        %v2004 = vmul.f32 %v1999, %v2003
        %v2005 = vmul.f32 %v1904, %v907
        %v2006 = vmul.f32 %v1932, %v913
        %v2008 = vsel %vm726, %v2006, 0
        %2010 = vmatpush.xpose.msra.mxu0 0.0
        %2011 = vmatpush.xpose.msra.mxu0 0.0
        %2012 = vmatpush.xpose.msra.mxu0 0.0
        %2013 = vmatpush.xpose.msra.mxu0 0.0
        %2014 = vmatpush.xpose.msra.mxu0 0.0
        %2015 = vmatpush.xpose.msra.mxu0 0.0
        %2016 = vmatpush.xpose.msra.mxu0 0.0
        %2017 = vmatpush.xpose.msra.mxu0 0.0
        %2018 = vmatpush.xpose.msra.mxu0 0.0
        %2019 = vmatpush.xpose.msra.mxu0 0.0
        %2020 = vmatpush.xpose.msra.mxu0 0.0
        %2021 = vmatpush.xpose.msra.mxu0 0.0
        %2022 = vmatpush.xpose.msra.mxu0 0.0
        %2023 = vmatpush.xpose.msra.mxu0 0.0
        %2024 = vmatpush.xpose.msra.mxu0 0.0
        %2025 = vmatpush.xpose.msra.mxu0 %v1972
        %2026 = vmatmul.f32.gmra.mxu0 %v2008
        %v2027 = vpop.f32.mrf.mxu0
        %v2028 = vadd.f32 %v864, %v2027
        %2029 = vdwg.mxu0
        %v2030 = vsel %vm894, %v2028, -inf
        %2031 = vmax.xlane.f32.xlu0 %v2030
        %v2032 = vpop.xlane.xlu0 %2031
        %v2033 = vsub.f32 %v2028, %v2032
        %v2034 = vmul.f32 %v2033, 1.442695
        %v2035 = vpow.pop %v2034
        %v2036 = vsel %vm894, %v2035, 0.0
        %2037 = vadd.xlane.f32.xlu0 %v2036
        %v2038 = vpop.xlane.xlu0 %2037
        %v2039 = vrcp.pop %v2038
        %v2040 = vmul.f32 %v2035, %v2039
        %v2041 = vmul.f32 %v1904, %v951
        %2043 = vrot.lane.b32.xlu0 %v2041, 64
        %v2044 = vpop.permute.xlu0 %2043
        %v2047 = vsel %vm894, %v2040, 0
        %2049 = vmatpush.msra.mxu0 0.0
        %2050 = vmatpush.msra.mxu0 0.0
        %2051 = vmatpush.msra.mxu0 0.0
        %2052 = vmatpush.msra.mxu0 0.0
        %2053 = vmatpush.msra.mxu0 0.0
        %2054 = vmatpush.msra.mxu0 0.0
        %2055 = vmatpush.msra.mxu0 0.0
        %2056 = vmatpush.msra.mxu0 0.0
        %2057 = vmatpush.msra.mxu0 0.0
        %2058 = vmatpush.msra.mxu0 0.0
        %2059 = vmatpush.msra.mxu0 0.0
        %2060 = vmatpush.msra.mxu0 0.0
        %2061 = vmatpush.msra.mxu0 0.0
        %2062 = vmatpush.msra.mxu0 0.0
        %2063 = vmatpush.msra.mxu0 0.0
        %2064 = vmatpush.msra.mxu0 %v2044
        %2065 = vmatmul.f32.gmra.mxu0 %v2047
        %v2066 = vpop.f32.mrf.mxu0
        %v2067 = vadd.f32 0.0, %v2066
        %2068 = vdwg.mxu0
        %2070 = vrot.lane.b32.xlu0 %v2005, 64
        %v2071 = vpop.permute.xlu0 %2070
        %v2074 = vsel %vm894, %v2004, 0
        %2076 = vmatpush.msra.mxu0 0.0
        %2077 = vmatpush.msra.mxu0 0.0
        %2078 = vmatpush.msra.mxu0 0.0
        %2079 = vmatpush.msra.mxu0 0.0
        %2080 = vmatpush.msra.mxu0 0.0
        %2081 = vmatpush.msra.mxu0 0.0
        %2082 = vmatpush.msra.mxu0 0.0
        %2083 = vmatpush.msra.mxu0 0.0
        %2084 = vmatpush.msra.mxu0 0.0
        %2085 = vmatpush.msra.mxu0 0.0
        %2086 = vmatpush.msra.mxu0 0.0
        %2087 = vmatpush.msra.mxu0 0.0
        %2088 = vmatpush.msra.mxu0 0.0
        %2089 = vmatpush.msra.mxu0 0.0
        %2090 = vmatpush.msra.mxu0 0.0
        %2091 = vmatpush.msra.mxu0 %v2071
        %2092 = vmatmul.f32.gmra.mxu0 %v2074
        %v2093 = vpop.f32.mrf.mxu0
        %v2094 = vadd.f32 %v2067, %v2093
        %2095 = vdwg.mxu0
        %v2096 = vmul.f32 %v1932, %v1011
        %v2098 = vsel %vm726, %v2096, 0
        %2100 = vmatpush.xpose.msra.mxu0 0.0
        %2101 = vmatpush.xpose.msra.mxu0 0.0
        %2102 = vmatpush.xpose.msra.mxu0 0.0
        %2103 = vmatpush.xpose.msra.mxu0 0.0
        %2104 = vmatpush.xpose.msra.mxu0 0.0
        %2105 = vmatpush.xpose.msra.mxu0 0.0
        %2106 = vmatpush.xpose.msra.mxu0 0.0
        %2107 = vmatpush.xpose.msra.mxu0 0.0
        %2108 = vmatpush.xpose.msra.mxu0 0.0
        %2109 = vmatpush.xpose.msra.mxu0 0.0
        %2110 = vmatpush.xpose.msra.mxu0 0.0
        %2111 = vmatpush.xpose.msra.mxu0 0.0
        %2112 = vmatpush.xpose.msra.mxu0 0.0
        %2113 = vmatpush.xpose.msra.mxu0 0.0
        %2114 = vmatpush.xpose.msra.mxu0 0.0
        %2115 = vmatpush.xpose.msra.mxu0 %v1972
        %2116 = vmatmul.f32.gmra.mxu0 %v2098
        %v2117 = vpop.f32.mrf.mxu0
        %v2118 = vadd.f32 %v864, %v2117
        %2119 = vdwg.mxu0
        %v2120 = vsel %vm894, %v2118, -inf
        %2121 = vmax.xlane.f32.xlu0 %v2120
        %v2122 = vpop.xlane.xlu0 %2121
        %v2123 = vsub.f32 %v2118, %v2122
        %v2124 = vmul.f32 %v2123, 1.442695
        %v2125 = vpow.pop %v2124
        %v2126 = vsel %vm894, %v2125, 0.0
        %2127 = vadd.xlane.f32.xlu0 %v2126
        %v2128 = vpop.xlane.xlu0 %2127
        %v2129 = vrcp.pop %v2128
        %v2130 = vmul.f32 %v2125, %v2129
        %v2131 = vmul.f32 %v1904, %v1049
        %2133 = vrot.lane.b32.xlu0 %v2131, 64
        %v2134 = vpop.permute.xlu0 %2133
        %v2137 = vsel %vm894, %v2130, 0
        %2139 = vmatpush.msra.mxu0 0.0
        %2140 = vmatpush.msra.mxu0 0.0
        %2141 = vmatpush.msra.mxu0 0.0
        %2142 = vmatpush.msra.mxu0 0.0
        %2143 = vmatpush.msra.mxu0 0.0
        %2144 = vmatpush.msra.mxu0 0.0
        %2145 = vmatpush.msra.mxu0 0.0
        %2146 = vmatpush.msra.mxu0 0.0
        %2147 = vmatpush.msra.mxu0 0.0
        %2148 = vmatpush.msra.mxu0 0.0
        %2149 = vmatpush.msra.mxu0 0.0
        %2150 = vmatpush.msra.mxu0 0.0
        %2151 = vmatpush.msra.mxu0 0.0
        %2152 = vmatpush.msra.mxu0 0.0
        %2153 = vmatpush.msra.mxu0 0.0
        %2154 = vmatpush.msra.mxu0 %v2134
        %2155 = vmatmul.f32.gmra.mxu0 %v2137
        %v2156 = vpop.f32.mrf.mxu0
        %v2157 = vadd.f32 0.0, %v2156
        %2158 = vdwg.mxu0
        %v2159 = vadd.f32 %v2094, %v2157
        %v2160 = vmul.f32 %v1932, %v1083
        %v2162 = vsel %vm726, %v2160, 0
        %2164 = vmatpush.xpose.msra.mxu0 0.0
        %2165 = vmatpush.xpose.msra.mxu0 0.0
        %2166 = vmatpush.xpose.msra.mxu0 0.0
        %2167 = vmatpush.xpose.msra.mxu0 0.0
        %2168 = vmatpush.xpose.msra.mxu0 0.0
        %2169 = vmatpush.xpose.msra.mxu0 0.0
        %2170 = vmatpush.xpose.msra.mxu0 0.0
        %2171 = vmatpush.xpose.msra.mxu0 0.0
        %2172 = vmatpush.xpose.msra.mxu0 0.0
        %2173 = vmatpush.xpose.msra.mxu0 0.0
        %2174 = vmatpush.xpose.msra.mxu0 0.0
        %2175 = vmatpush.xpose.msra.mxu0 0.0
        %2176 = vmatpush.xpose.msra.mxu0 0.0
        %2177 = vmatpush.xpose.msra.mxu0 0.0
        %2178 = vmatpush.xpose.msra.mxu0 0.0
        %2179 = vmatpush.xpose.msra.mxu0 %v1972
        %2180 = vmatmul.f32.gmra.mxu0 %v2162
        %v2181 = vpop.f32.mrf.mxu0
        %v2182 = vadd.f32 %v864, %v2181
        %2183 = vdwg.mxu0
        %v2184 = vsel %vm894, %v2182, -inf
        %2185 = vmax.xlane.f32.xlu0 %v2184
        %v2186 = vpop.xlane.xlu0 %2185
        %v2187 = vsub.f32 %v2182, %v2186
        %v2188 = vmul.f32 %v2187, 1.442695
        %v2189 = vpow.pop %v2188
        %v2190 = vsel %vm894, %v2189, 0.0
        %2191 = vadd.xlane.f32.xlu0 %v2190
        %v2192 = vpop.xlane.xlu0 %2191
        %v2193 = vrcp.pop %v2192
        %v2194 = vmul.f32 %v2189, %v2193
        %v2195 = vmul.f32 %v1904, %v1121
        %2197 = vrot.lane.b32.xlu0 %v2195, 64
        %v2198 = vpop.permute.xlu0 %2197
        %v2201 = vsel %vm894, %v2194, 0
        %2203 = vmatpush.msra.mxu0 0.0
        %2204 = vmatpush.msra.mxu0 0.0
        %2205 = vmatpush.msra.mxu0 0.0
        %2206 = vmatpush.msra.mxu0 0.0
        %2207 = vmatpush.msra.mxu0 0.0
        %2208 = vmatpush.msra.mxu0 0.0
        %2209 = vmatpush.msra.mxu0 0.0
        %2210 = vmatpush.msra.mxu0 0.0
        %2211 = vmatpush.msra.mxu0 0.0
        %2212 = vmatpush.msra.mxu0 0.0
        %2213 = vmatpush.msra.mxu0 0.0
        %2214 = vmatpush.msra.mxu0 0.0
        %2215 = vmatpush.msra.mxu0 0.0
        %2216 = vmatpush.msra.mxu0 0.0
        %2217 = vmatpush.msra.mxu0 0.0
        %2218 = vmatpush.msra.mxu0 %v2198
        %2219 = vmatmul.f32.gmra.mxu0 %v2201
        %v2220 = vpop.f32.mrf.mxu0
        %v2221 = vadd.f32 0.0, %v2220
        %2222 = vdwg.mxu0
        %v2223 = vadd.f32 %v2159, %v2221
        %s2224 = scalar_lea.vmem %s11, 64
        %v2225 = vld [vmem:[%s2224] sm:$0xff]
        %v2226 = vld [vmem:[%s2224 + $0x8] sm:$0xff]
        %v2227 = vld [vmem:[%s2224 + $0x10] sm:$0xff]
        %v2228 = vld [vmem:[%s2224 + $0x18] sm:$0xff]
        %v2230 = vsel %vm726, %v2223, 0
        %2232 = vmatpush.msra.mxu0 0.0
        %2233 = vmatpush.msra.mxu0 0.0
        %2234 = vmatpush.msra.mxu0 0.0
        %2235 = vmatpush.msra.mxu0 0.0
        %2236 = vmatpush.msra.mxu0 0.0
        %2237 = vmatpush.msra.mxu0 0.0
        %2238 = vmatpush.msra.mxu0 0.0
        %2239 = vmatpush.msra.mxu0 0.0
        %2240 = vmatpush.msra.mxu0 0.0
        %2241 = vmatpush.msra.mxu0 0.0
        %2242 = vmatpush.msra.mxu0 0.0
        %2243 = vmatpush.msra.mxu0 0.0
        %2244 = vmatpush.msra.mxu0 %v2228
        %2245 = vmatpush.msra.mxu0 %v2227
        %2246 = vmatpush.msra.mxu0 %v2226
        %2247 = vmatpush.msra.mxu0 %v2225
        %2248 = vmatmul.f32.gmra.mxu0 %v2230
        %v2249 = vpop.f32.mrf.mxu0
        %v2250 = vadd.f32 0.0, %v2249
        %2251 = vdwg.mxu0
        %v2252 = vadd.f32 %v1838, %v2250
        %s2253 = scalar_lea.vmem %s12, 2
        %v2254 = vld [vmem:[%s2253] sm:$0x1]
        %v2256 = vperm.slane %v2254, 0
        %v2258 = vadd.f32 %v2252, %v2256
        %s2259 = scalar_lea.vmem %s13, 2
        %v2260 = vld [vmem:[%s2259] sm:$0x1]
        %s2261 = scalar_lea.vmem %s14, 2
        %v2262 = vld [vmem:[%s2261] sm:$0x1]
        %v2263 = vsel %vm726, %v2258, 0.0
        %2264 = vadd.xlane.f32.xlu0 %v2263
        %v2265 = vpop.xlane.xlu0 %2264
        %v2266 = vmul.f32 %v2265, %v736
        %v2267 = vsub.f32 %v2258, %v2266
        %v2268 = vmul.f32 %v2267, %v2267
        %v2269 = vsel %vm726, %v2268, 0.0
        %2270 = vadd.xlane.f32.xlu0 %v2269
        %v2271 = vpop.xlane.xlu0 %2270
        %v2272 = vmul.f32 %v2271, %v736
        %v2273 = vadd.f32 %v2272, 1e-05
        %v2274 = vrsqrt.pop %v2273
        %v2275 = vmul.f32 %v2274, %v2273
        %v2276 = vmul.f32 %v2275, %v2274
        %v2277 = vmul.f32 0.5, %v2276
        %v2278 = vsub.f32 1.5, %v2277
        %v2279 = vmul.f32 %v2274, %v2278
        %vm2280 = vweird.f32 %v2273
        %vm2281 = vweird.f32 %v2274
        %vm2282 = vmor %vm2280, %vm2281
        %v2283 = vsel %vm2282, %v2274, %v2279
        %v2284 = vmul.f32 %v2267, %v2283
        %v2286 = vperm.slane %v2260, 0
        %v2288 = vmul.f32 %v2284, %v2286
        %v2290 = vperm.slane %v2262, 0
        %v2292 = vadd.f32 %v2288, %v2290
        %s2293 = scalar_lea.vmem %s15, 64
        %v2294 = vld [vmem:[%s2293] sm:$0xff]
        %v2295 = vld [vmem:[%s2293 + $0x8] sm:$0xff]
        %v2296 = vld [vmem:[%s2293 + $0x10] sm:$0xff]
        %v2297 = vld [vmem:[%s2293 + $0x18] sm:$0xff]
        %s2298 = scalar_lea.vmem %s16, 2
        %v2299 = vld [vmem:[%s2298] sm:$0x1]
        %v2301 = vperm.slane %v2299, 0
        %v2304 = vsel %vm726, %v2292, 0
        %2306 = vmatpush.msra.mxu0 0.0
        %2307 = vmatpush.msra.mxu0 0.0
        %2308 = vmatpush.msra.mxu0 0.0
        %2309 = vmatpush.msra.mxu0 0.0
        %2310 = vmatpush.msra.mxu0 0.0
        %2311 = vmatpush.msra.mxu0 0.0
        %2312 = vmatpush.msra.mxu0 0.0
        %2313 = vmatpush.msra.mxu0 0.0
        %2314 = vmatpush.msra.mxu0 0.0
        %2315 = vmatpush.msra.mxu0 0.0
        %2316 = vmatpush.msra.mxu0 0.0
        %2317 = vmatpush.msra.mxu0 0.0
        %2318 = vmatpush.msra.mxu0 %v2297
        %2319 = vmatpush.msra.mxu0 %v2296
        %2320 = vmatpush.msra.mxu0 %v2295
        %2321 = vmatpush.msra.mxu0 %v2294
        %2322 = vmatmul.f32.gmra.mxu0 %v2304
        %v2323 = vpop.f32.mrf.mxu0
        %v2324 = vadd.f32 %v2301, %v2323
        %2325 = vdwg.mxu0
        %v2326 = vmul.f32 %v2324, 0.5
        %v2327 = vmul.f32 %v2324, 0.044715
        %v2328 = vmul.f32 %v2327, %v2324
        %v2329 = vmul.f32 %v2328, %v2324
        %v2330 = vadd.f32 %v2324, %v2329
        %v2331 = vmul.f32 %v2330, 0.7978846
        %v2332 = vtanh.pop %v2331
        %v2333 = vadd.f32 %v2332, 1.0
        %v2334 = vmul.f32 %v2326, %v2333
        %s2335 = scalar_lea.vmem %s17, 256
        %v2336 = vld [vmem:[%s2335] sm:$0xff]
        %v2337 = vld [vmem:[%s2335 + $0x8] sm:$0xff]
        %v2338 = vld [vmem:[%s2335 + $0x10] sm:$0xff]
        %v2339 = vld [vmem:[%s2335 + $0x18] sm:$0xff]
        %v2340 = vld [vmem:[%s2335 + $0x20] sm:$0xff]
        %v2341 = vld [vmem:[%s2335 + $0x28] sm:$0xff]
        %v2342 = vld [vmem:[%s2335 + $0x30] sm:$0xff]
        %v2343 = vld [vmem:[%s2335 + $0x38] sm:$0xff]
        %v2344 = vld [vmem:[%s2335 + $0x40] sm:$0xff]
        %v2345 = vld [vmem:[%s2335 + $0x48] sm:$0xff]
        %v2346 = vld [vmem:[%s2335 + $0x50] sm:$0xff]
        %v2347 = vld [vmem:[%s2335 + $0x58] sm:$0xff]
        %v2348 = vld [vmem:[%s2335 + $0x60] sm:$0xff]
        %v2349 = vld [vmem:[%s2335 + $0x68] sm:$0xff]
        %v2350 = vld [vmem:[%s2335 + $0x70] sm:$0xff]
        %v2351 = vld [vmem:[%s2335 + $0x78] sm:$0xff]
        %2352 = vmatpush.msra.mxu0 %v2351
        %2353 = vmatpush.msra.mxu0 %v2350
        %2354 = vmatpush.msra.mxu0 %v2349
        %2355 = vmatpush.msra.mxu0 %v2348
        %2356 = vmatpush.msra.mxu0 %v2347
        %2357 = vmatpush.msra.mxu0 %v2346
        %2358 = vmatpush.msra.mxu0 %v2345
        %2359 = vmatpush.msra.mxu0 %v2344
        %2360 = vmatpush.msra.mxu0 %v2343
        %2361 = vmatpush.msra.mxu0 %v2342
        %2362 = vmatpush.msra.mxu0 %v2341
        %2363 = vmatpush.msra.mxu0 %v2340
        %2364 = vmatpush.msra.mxu0 %v2339
        %2365 = vmatpush.msra.mxu0 %v2338
        %2366 = vmatpush.msra.mxu0 %v2337
        %2367 = vmatpush.msra.mxu0 %v2336
        %2368 = vmatmul.f32.gmra.mxu0 %v2334
        %v2369 = vpop.f32.mrf.mxu0
        %v2370 = vadd.f32 0.0, %v2369
        %2371 = vdwg.mxu0
        %v2372 = vadd.f32 %v2258, %v2370
        %s2373 = scalar_lea.vmem %s18, 2
        %v2374 = vld [vmem:[%s2373] sm:$0x1]
        %v2376 = vperm.slane %v2374, 0
        %v2378 = vadd.f32 %v2372, %v2376
        %s2379 = scalar_lea.vmem %s7, 3
        %v2380 = vld [vmem:[%s2379] sm:$0x1]
        %s2381 = scalar_lea.vmem %s8, 3
        %v2382 = vld [vmem:[%s2381] sm:$0x1]
        %v2383 = vsel %vm726, %v2378, 0.0
        %2384 = vadd.xlane.f32.xlu0 %v2383
        %v2385 = vpop.xlane.xlu0 %2384
        %v2386 = vmul.f32 %v2385, %v736
        %v2387 = vsub.f32 %v2378, %v2386
        %v2388 = vmul.f32 %v2387, %v2387
        %v2389 = vsel %vm726, %v2388, 0.0
        %2390 = vadd.xlane.f32.xlu0 %v2389
        %v2391 = vpop.xlane.xlu0 %2390
        %v2392 = vmul.f32 %v2391, %v736
        %v2393 = vadd.f32 %v2392, 1e-05
        %v2394 = vrsqrt.pop %v2393
        %v2395 = vmul.f32 %v2394, %v2393
        %v2396 = vmul.f32 %v2395, %v2394
        %v2397 = vmul.f32 0.5, %v2396
        %v2398 = vsub.f32 1.5, %v2397
        %v2399 = vmul.f32 %v2394, %v2398
        %vm2400 = vweird.f32 %v2393
        %vm2401 = vweird.f32 %v2394
        %vm2402 = vmor %vm2400, %vm2401
        %v2403 = vsel %vm2402, %v2394, %v2399
        %v2404 = vmul.f32 %v2387, %v2403
        %v2406 = vperm.slane %v2380, 0
        %v2408 = vmul.f32 %v2404, %v2406
        %v2410 = vperm.slane %v2382, 0
        %v2412 = vadd.f32 %v2408, %v2410
        %s2413 = scalar_lea.vmem %s9, 96
        %v2414 = vld [vmem:[%s2413] sm:$0xff]
        %v2415 = vld [vmem:[%s2413 + $0x8] sm:$0xff]
        %v2416 = vld [vmem:[%s2413 + $0x10] sm:$0xff]
        %v2417 = vld [vmem:[%s2413 + $0x18] sm:$0xff]
        %s2418 = scalar_lea.vmem %s10, 3
        %v2419 = vld [vmem:[%s2418] sm:$0x1]
        %v2421 = vperm.slane %v2419, 0
        %v2424 = vsel %vm726, %v2412, 0
        %2426 = vmatpush.msra.mxu0 0.0
        %2427 = vmatpush.msra.mxu0 0.0
        %2428 = vmatpush.msra.mxu0 0.0
        %2429 = vmatpush.msra.mxu0 0.0
        %2430 = vmatpush.msra.mxu0 0.0
        %2431 = vmatpush.msra.mxu0 0.0
        %2432 = vmatpush.msra.mxu0 0.0
        %2433 = vmatpush.msra.mxu0 0.0
        %2434 = vmatpush.msra.mxu0 0.0
        %2435 = vmatpush.msra.mxu0 0.0
        %2436 = vmatpush.msra.mxu0 0.0
        %2437 = vmatpush.msra.mxu0 0.0
        %2438 = vmatpush.msra.mxu0 %v2417
        %2439 = vmatpush.msra.mxu0 %v2416
        %2440 = vmatpush.msra.mxu0 %v2415
        %2441 = vmatpush.msra.mxu0 %v2414
        %2442 = vmatmul.f32.gmra.mxu0 %v2424
        %v2443 = vpop.f32.mrf.mxu0
        %v2444 = vadd.f32 %v2421, %v2443
        %2445 = vdwg.mxu0
        %v2446 = vmul.f32 %v2444, 0.35355338
        %v2447 = vmul.f32 %v2446, %v668
        %v2449 = vsel %vm726, %v2446, 0
        %2451 = vmatpush.msra.mxu0 0.0
        %2452 = vmatpush.msra.mxu0 0.0
        %2453 = vmatpush.msra.mxu0 0.0
        %2454 = vmatpush.msra.mxu0 0.0
        %2455 = vmatpush.msra.mxu0 0.0
        %2456 = vmatpush.msra.mxu0 0.0
        %2457 = vmatpush.msra.mxu0 0.0
        %2458 = vmatpush.msra.mxu0 0.0
        %2459 = vmatpush.msra.mxu0 0.0
        %2460 = vmatpush.msra.mxu0 0.0
        %2461 = vmatpush.msra.mxu0 0.0
        %2462 = vmatpush.msra.mxu0 0.0
        %2463 = vmatpush.msra.mxu0 %v673
        %2464 = vmatpush.msra.mxu0 %v672
        %2465 = vmatpush.msra.mxu0 %v671
        %2466 = vmatpush.msra.mxu0 %v670
        %2467 = vmatmul.f32.gmra.mxu0 %v2449
        %v2468 = vpop.f32.mrf.mxu0
        %v2469 = vadd.f32 0.0, %v2468
        %2470 = vdwg.mxu0
        %v2471 = vmul.f32 %v2469, %v669
        %v2472 = vadd.f32 %v2447, %v2471
        %v2473 = vmul.f32 %v2444, %v824
        %2475 = vrot.lane.b32.xlu0 %v2444, 96
        %v2476 = vpop.permute.xlu0 %2475
        %v2477 = vsel %vm726, %v2476, 0
        %2479 = vmatpush.msra.mxu0 0.0
        %2480 = vmatpush.msra.mxu0 0.0
        %2481 = vmatpush.msra.mxu0 0.0
        %2482 = vmatpush.msra.mxu0 0.0
        %2483 = vmatpush.msra.mxu0 0.0
        %2484 = vmatpush.msra.mxu0 0.0
        %2485 = vmatpush.msra.mxu0 0.0
        %2486 = vmatpush.msra.mxu0 0.0
        %2487 = vmatpush.msra.mxu0 0.0
        %2488 = vmatpush.msra.mxu0 0.0
        %2489 = vmatpush.msra.mxu0 0.0
        %2490 = vmatpush.msra.mxu0 0.0
        %2491 = vmatpush.msra.mxu0 %v673
        %2492 = vmatpush.msra.mxu0 %v672
        %2493 = vmatpush.msra.mxu0 %v671
        %2494 = vmatpush.msra.mxu0 %v670
        %2495 = vmatmul.f32.gmra.mxu0 %v2477
        %v2496 = vpop.f32.mrf.mxu0
        %v2497 = vadd.f32 0.0, %v2496
        %2498 = vdwg.mxu0
        %v2499 = vmul.f32 %v2497, %v669
        %2501 = vrot.lane.b32.xlu0 %v2499, 32
        %v2502 = vpop.permute.xlu0 %2501
        %v2504 = vadd.f32 %v2473, %v2502
        %v2505 = vmul.f32 %v2472, %v860
        %2507 = vrot.lane.b32.xlu0 %v2504, 96
        %v2508 = vpop.permute.xlu0 %2507
        %v2510 = vsel %vm726, %v2505, 0
        %v2512 = vsel %vm726, %v2508, 0
        %2514 = vmatpush.xpose.msra.mxu0 0.0
        %2515 = vmatpush.xpose.msra.mxu0 0.0
        %2516 = vmatpush.xpose.msra.mxu0 0.0
        %2517 = vmatpush.xpose.msra.mxu0 0.0
        %2518 = vmatpush.xpose.msra.mxu0 0.0
        %2519 = vmatpush.xpose.msra.mxu0 0.0
        %2520 = vmatpush.xpose.msra.mxu0 0.0
        %2521 = vmatpush.xpose.msra.mxu0 0.0
        %2522 = vmatpush.xpose.msra.mxu0 0.0
        %2523 = vmatpush.xpose.msra.mxu0 0.0
        %2524 = vmatpush.xpose.msra.mxu0 0.0
        %2525 = vmatpush.xpose.msra.mxu0 0.0
        %2526 = vmatpush.xpose.msra.mxu0 0.0
        %2527 = vmatpush.xpose.msra.mxu0 0.0
        %2528 = vmatpush.xpose.msra.mxu0 0.0
        %2529 = vmatpush.xpose.msra.mxu0 %v2512
        %2530 = vmatmul.f32.gmra.mxu0 %v2510
        %v2531 = vpop.f32.mrf.mxu0
        %v2532 = vadd.f32 %v864, %v2531
        %2533 = vdwg.mxu0
        %v2534 = vsel %vm894, %v2532, -inf
        %2535 = vmax.xlane.f32.xlu0 %v2534
        %v2536 = vpop.xlane.xlu0 %2535
        %v2537 = vsub.f32 %v2532, %v2536
        %v2538 = vmul.f32 %v2537, 1.442695
        %v2539 = vpow.pop %v2538
        %v2540 = vsel %vm894, %v2539, 0.0
        %2541 = vadd.xlane.f32.xlu0 %v2540
        %v2542 = vpop.xlane.xlu0 %2541
        %v2543 = vrcp.pop %v2542
        %v2544 = vmul.f32 %v2539, %v2543
        %v2545 = vmul.f32 %v2444, %v907
        %v2546 = vmul.f32 %v2472, %v913
        %v2548 = vsel %vm726, %v2546, 0
        %2550 = vmatpush.xpose.msra.mxu0 0.0
        %2551 = vmatpush.xpose.msra.mxu0 0.0
        %2552 = vmatpush.xpose.msra.mxu0 0.0
        %2553 = vmatpush.xpose.msra.mxu0 0.0
        %2554 = vmatpush.xpose.msra.mxu0 0.0
        %2555 = vmatpush.xpose.msra.mxu0 0.0
        %2556 = vmatpush.xpose.msra.mxu0 0.0
        %2557 = vmatpush.xpose.msra.mxu0 0.0
        %2558 = vmatpush.xpose.msra.mxu0 0.0
        %2559 = vmatpush.xpose.msra.mxu0 0.0
        %2560 = vmatpush.xpose.msra.mxu0 0.0
        %2561 = vmatpush.xpose.msra.mxu0 0.0
        %2562 = vmatpush.xpose.msra.mxu0 0.0
        %2563 = vmatpush.xpose.msra.mxu0 0.0
        %2564 = vmatpush.xpose.msra.mxu0 0.0
        %2565 = vmatpush.xpose.msra.mxu0 %v2512
        %2566 = vmatmul.f32.gmra.mxu0 %v2548
        %v2567 = vpop.f32.mrf.mxu0
        %v2568 = vadd.f32 %v864, %v2567
        %2569 = vdwg.mxu0
        %v2570 = vsel %vm894, %v2568, -inf
        %2571 = vmax.xlane.f32.xlu0 %v2570
        %v2572 = vpop.xlane.xlu0 %2571
        %v2573 = vsub.f32 %v2568, %v2572
        %v2574 = vmul.f32 %v2573, 1.442695
        %v2575 = vpow.pop %v2574
        %v2576 = vsel %vm894, %v2575, 0.0
        %2577 = vadd.xlane.f32.xlu0 %v2576
        %v2578 = vpop.xlane.xlu0 %2577
        %v2579 = vrcp.pop %v2578
        %v2580 = vmul.f32 %v2575, %v2579
        %v2581 = vmul.f32 %v2444, %v951
        %2583 = vrot.lane.b32.xlu0 %v2581, 64
        %v2584 = vpop.permute.xlu0 %2583
        %v2587 = vsel %vm894, %v2580, 0
        %2589 = vmatpush.msra.mxu0 0.0
        %2590 = vmatpush.msra.mxu0 0.0
        %2591 = vmatpush.msra.mxu0 0.0
        %2592 = vmatpush.msra.mxu0 0.0
        %2593 = vmatpush.msra.mxu0 0.0
        %2594 = vmatpush.msra.mxu0 0.0
        %2595 = vmatpush.msra.mxu0 0.0
        %2596 = vmatpush.msra.mxu0 0.0
        %2597 = vmatpush.msra.mxu0 0.0
        %2598 = vmatpush.msra.mxu0 0.0
        %2599 = vmatpush.msra.mxu0 0.0
        %2600 = vmatpush.msra.mxu0 0.0
        %2601 = vmatpush.msra.mxu0 0.0
        %2602 = vmatpush.msra.mxu0 0.0
        %2603 = vmatpush.msra.mxu0 0.0
        %2604 = vmatpush.msra.mxu0 %v2584
        %2605 = vmatmul.f32.gmra.mxu0 %v2587
        %v2606 = vpop.f32.mrf.mxu0
        %v2607 = vadd.f32 0.0, %v2606
        %2608 = vdwg.mxu0
        %2610 = vrot.lane.b32.xlu0 %v2545, 64
        %v2611 = vpop.permute.xlu0 %2610
        %v2614 = vsel %vm894, %v2544, 0
        %2616 = vmatpush.msra.mxu0 0.0
        %2617 = vmatpush.msra.mxu0 0.0
        %2618 = vmatpush.msra.mxu0 0.0
        %2619 = vmatpush.msra.mxu0 0.0
        %2620 = vmatpush.msra.mxu0 0.0
        %2621 = vmatpush.msra.mxu0 0.0
        %2622 = vmatpush.msra.mxu0 0.0
        %2623 = vmatpush.msra.mxu0 0.0
        %2624 = vmatpush.msra.mxu0 0.0
        %2625 = vmatpush.msra.mxu0 0.0
        %2626 = vmatpush.msra.mxu0 0.0
        %2627 = vmatpush.msra.mxu0 0.0
        %2628 = vmatpush.msra.mxu0 0.0
        %2629 = vmatpush.msra.mxu0 0.0
        %2630 = vmatpush.msra.mxu0 0.0
        %2631 = vmatpush.msra.mxu0 %v2611
        %2632 = vmatmul.f32.gmra.mxu0 %v2614
        %v2633 = vpop.f32.mrf.mxu0
        %v2634 = vadd.f32 %v2607, %v2633
        %2635 = vdwg.mxu0
        %v2636 = vmul.f32 %v2472, %v1011
        %v2638 = vsel %vm726, %v2636, 0
        %2640 = vmatpush.xpose.msra.mxu0 0.0
        %2641 = vmatpush.xpose.msra.mxu0 0.0
        %2642 = vmatpush.xpose.msra.mxu0 0.0
        %2643 = vmatpush.xpose.msra.mxu0 0.0
        %2644 = vmatpush.xpose.msra.mxu0 0.0
        %2645 = vmatpush.xpose.msra.mxu0 0.0
        %2646 = vmatpush.xpose.msra.mxu0 0.0
        %2647 = vmatpush.xpose.msra.mxu0 0.0
        %2648 = vmatpush.xpose.msra.mxu0 0.0
        %2649 = vmatpush.xpose.msra.mxu0 0.0
        %2650 = vmatpush.xpose.msra.mxu0 0.0
        %2651 = vmatpush.xpose.msra.mxu0 0.0
        %2652 = vmatpush.xpose.msra.mxu0 0.0
        %2653 = vmatpush.xpose.msra.mxu0 0.0
        %2654 = vmatpush.xpose.msra.mxu0 0.0
        %2655 = vmatpush.xpose.msra.mxu0 %v2512
        %2656 = vmatmul.f32.gmra.mxu0 %v2638
        %v2657 = vpop.f32.mrf.mxu0
        %v2658 = vadd.f32 %v864, %v2657
        %2659 = vdwg.mxu0
        %v2660 = vsel %vm894, %v2658, -inf
        %2661 = vmax.xlane.f32.xlu0 %v2660
        %v2662 = vpop.xlane.xlu0 %2661
        %v2663 = vsub.f32 %v2658, %v2662
        %v2664 = vmul.f32 %v2663, 1.442695
        %v2665 = vpow.pop %v2664
        %v2666 = vsel %vm894, %v2665, 0.0
        %2667 = vadd.xlane.f32.xlu0 %v2666
        %v2668 = vpop.xlane.xlu0 %2667
        %v2669 = vrcp.pop %v2668
        %v2670 = vmul.f32 %v2665, %v2669
        %v2671 = vmul.f32 %v2444, %v1049
        %2673 = vrot.lane.b32.xlu0 %v2671, 64
        %v2674 = vpop.permute.xlu0 %2673
        %v2677 = vsel %vm894, %v2670, 0
        %2679 = vmatpush.msra.mxu0 0.0
        %2680 = vmatpush.msra.mxu0 0.0
        %2681 = vmatpush.msra.mxu0 0.0
        %2682 = vmatpush.msra.mxu0 0.0
        %2683 = vmatpush.msra.mxu0 0.0
        %2684 = vmatpush.msra.mxu0 0.0
        %2685 = vmatpush.msra.mxu0 0.0
        %2686 = vmatpush.msra.mxu0 0.0
        %2687 = vmatpush.msra.mxu0 0.0
        %2688 = vmatpush.msra.mxu0 0.0
        %2689 = vmatpush.msra.mxu0 0.0
        %2690 = vmatpush.msra.mxu0 0.0
        %2691 = vmatpush.msra.mxu0 0.0
        %2692 = vmatpush.msra.mxu0 0.0
        %2693 = vmatpush.msra.mxu0 0.0
        %2694 = vmatpush.msra.mxu0 %v2674
        %2695 = vmatmul.f32.gmra.mxu0 %v2677
        %v2696 = vpop.f32.mrf.mxu0
        %v2697 = vadd.f32 0.0, %v2696
        %2698 = vdwg.mxu0
        %v2699 = vadd.f32 %v2634, %v2697
        %v2700 = vmul.f32 %v2472, %v1083
        %v2702 = vsel %vm726, %v2700, 0
        %2704 = vmatpush.xpose.msra.mxu0 0.0
        %2705 = vmatpush.xpose.msra.mxu0 0.0
        %2706 = vmatpush.xpose.msra.mxu0 0.0
        %2707 = vmatpush.xpose.msra.mxu0 0.0
        %2708 = vmatpush.xpose.msra.mxu0 0.0
        %2709 = vmatpush.xpose.msra.mxu0 0.0
        %2710 = vmatpush.xpose.msra.mxu0 0.0
        %2711 = vmatpush.xpose.msra.mxu0 0.0
        %2712 = vmatpush.xpose.msra.mxu0 0.0
        %2713 = vmatpush.xpose.msra.mxu0 0.0
        %2714 = vmatpush.xpose.msra.mxu0 0.0
        %2715 = vmatpush.xpose.msra.mxu0 0.0
        %2716 = vmatpush.xpose.msra.mxu0 0.0
        %2717 = vmatpush.xpose.msra.mxu0 0.0
        %2718 = vmatpush.xpose.msra.mxu0 0.0
        %2719 = vmatpush.xpose.msra.mxu0 %v2512
        %2720 = vmatmul.f32.gmra.mxu0 %v2702
        %v2721 = vpop.f32.mrf.mxu0
        %v2722 = vadd.f32 %v864, %v2721
        %2723 = vdwg.mxu0
        %v2724 = vsel %vm894, %v2722, -inf
        %2725 = vmax.xlane.f32.xlu0 %v2724
        %v2726 = vpop.xlane.xlu0 %2725
        %v2727 = vsub.f32 %v2722, %v2726
        %v2728 = vmul.f32 %v2727, 1.442695
        %v2729 = vpow.pop %v2728
        %v2730 = vsel %vm894, %v2729, 0.0
        %2731 = vadd.xlane.f32.xlu0 %v2730
        %v2732 = vpop.xlane.xlu0 %2731
        %v2733 = vrcp.pop %v2732
        %v2734 = vmul.f32 %v2729, %v2733
        %v2735 = vmul.f32 %v2444, %v1121
        %2737 = vrot.lane.b32.xlu0 %v2735, 64
        %v2738 = vpop.permute.xlu0 %2737
        %v2741 = vsel %vm894, %v2734, 0
        %2743 = vmatpush.msra.mxu0 0.0
        %2744 = vmatpush.msra.mxu0 0.0
        %2745 = vmatpush.msra.mxu0 0.0
        %2746 = vmatpush.msra.mxu0 0.0
        %2747 = vmatpush.msra.mxu0 0.0
        %2748 = vmatpush.msra.mxu0 0.0
        %2749 = vmatpush.msra.mxu0 0.0
        %2750 = vmatpush.msra.mxu0 0.0
        %2751 = vmatpush.msra.mxu0 0.0
        %2752 = vmatpush.msra.mxu0 0.0
        %2753 = vmatpush.msra.mxu0 0.0
        %2754 = vmatpush.msra.mxu0 0.0
        %2755 = vmatpush.msra.mxu0 0.0
        %2756 = vmatpush.msra.mxu0 0.0
        %2757 = vmatpush.msra.mxu0 0.0
        %2758 = vmatpush.msra.mxu0 %v2738
        %2759 = vmatmul.f32.gmra.mxu0 %v2741
        %v2760 = vpop.f32.mrf.mxu0
        %v2761 = vadd.f32 0.0, %v2760
        %2762 = vdwg.mxu0
        %v2763 = vadd.f32 %v2699, %v2761
        %s2764 = scalar_lea.vmem %s11, 96
        %v2765 = vld [vmem:[%s2764] sm:$0xff]
        %v2766 = vld [vmem:[%s2764 + $0x8] sm:$0xff]
        %v2767 = vld [vmem:[%s2764 + $0x10] sm:$0xff]
        %v2768 = vld [vmem:[%s2764 + $0x18] sm:$0xff]
        %v2770 = vsel %vm726, %v2763, 0
        %2772 = vmatpush.msra.mxu0 0.0
        %2773 = vmatpush.msra.mxu0 0.0
        %2774 = vmatpush.msra.mxu0 0.0
        %2775 = vmatpush.msra.mxu0 0.0
        %2776 = vmatpush.msra.mxu0 0.0
        %2777 = vmatpush.msra.mxu0 0.0
        %2778 = vmatpush.msra.mxu0 0.0
        %2779 = vmatpush.msra.mxu0 0.0
        %2780 = vmatpush.msra.mxu0 0.0
        %2781 = vmatpush.msra.mxu0 0.0
        %2782 = vmatpush.msra.mxu0 0.0
        %2783 = vmatpush.msra.mxu0 0.0
        %2784 = vmatpush.msra.mxu0 %v2768
        %2785 = vmatpush.msra.mxu0 %v2767
        %2786 = vmatpush.msra.mxu0 %v2766
        %2787 = vmatpush.msra.mxu0 %v2765
        %2788 = vmatmul.f32.gmra.mxu0 %v2770
        %v2789 = vpop.f32.mrf.mxu0
        %v2790 = vadd.f32 0.0, %v2789
        %2791 = vdwg.mxu0
        %v2792 = vadd.f32 %v2378, %v2790
        %s2793 = scalar_lea.vmem %s12, 3
        %v2794 = vld [vmem:[%s2793] sm:$0x1]
        %v2796 = vperm.slane %v2794, 0
        %v2798 = vadd.f32 %v2792, %v2796
        %s2799 = scalar_lea.vmem %s13, 3
        %v2800 = vld [vmem:[%s2799] sm:$0x1]
        %s2801 = scalar_lea.vmem %s14, 3
        %v2802 = vld [vmem:[%s2801] sm:$0x1]
        %v2803 = vsel %vm726, %v2798, 0.0
        %2804 = vadd.xlane.f32.xlu0 %v2803
        %v2805 = vpop.xlane.xlu0 %2804
        %v2806 = vmul.f32 %v2805, %v736
        %v2807 = vsub.f32 %v2798, %v2806
        %v2808 = vmul.f32 %v2807, %v2807
        %v2809 = vsel %vm726, %v2808, 0.0
        %2810 = vadd.xlane.f32.xlu0 %v2809
        %v2811 = vpop.xlane.xlu0 %2810
        %v2812 = vmul.f32 %v2811, %v736
        %v2813 = vadd.f32 %v2812, 1e-05
        %v2814 = vrsqrt.pop %v2813
        %v2815 = vmul.f32 %v2814, %v2813
        %v2816 = vmul.f32 %v2815, %v2814
        %v2817 = vmul.f32 0.5, %v2816
        %v2818 = vsub.f32 1.5, %v2817
        %v2819 = vmul.f32 %v2814, %v2818
        %vm2820 = vweird.f32 %v2813
        %vm2821 = vweird.f32 %v2814
        %vm2822 = vmor %vm2820, %vm2821
        %v2823 = vsel %vm2822, %v2814, %v2819
        %v2824 = vmul.f32 %v2807, %v2823
        %v2826 = vperm.slane %v2800, 0
        %v2828 = vmul.f32 %v2824, %v2826
        %v2830 = vperm.slane %v2802, 0
        %v2832 = vadd.f32 %v2828, %v2830
        %s2833 = scalar_lea.vmem %s15, 96
        %v2834 = vld [vmem:[%s2833] sm:$0xff]
        %v2835 = vld [vmem:[%s2833 + $0x8] sm:$0xff]
        %v2836 = vld [vmem:[%s2833 + $0x10] sm:$0xff]
        %v2837 = vld [vmem:[%s2833 + $0x18] sm:$0xff]
        %s2838 = scalar_lea.vmem %s16, 3
        %v2839 = vld [vmem:[%s2838] sm:$0x1]
        %v2841 = vperm.slane %v2839, 0
        %v2844 = vsel %vm726, %v2832, 0
        %2846 = vmatpush.msra.mxu0 0.0
        %2847 = vmatpush.msra.mxu0 0.0
        %2848 = vmatpush.msra.mxu0 0.0
        %2849 = vmatpush.msra.mxu0 0.0
        %2850 = vmatpush.msra.mxu0 0.0
        %2851 = vmatpush.msra.mxu0 0.0
        %2852 = vmatpush.msra.mxu0 0.0
        %2853 = vmatpush.msra.mxu0 0.0
        %2854 = vmatpush.msra.mxu0 0.0
        %2855 = vmatpush.msra.mxu0 0.0
        %2856 = vmatpush.msra.mxu0 0.0
        %2857 = vmatpush.msra.mxu0 0.0
        %2858 = vmatpush.msra.mxu0 %v2837
        %2859 = vmatpush.msra.mxu0 %v2836
        %2860 = vmatpush.msra.mxu0 %v2835
        %2861 = vmatpush.msra.mxu0 %v2834
        %2862 = vmatmul.f32.gmra.mxu0 %v2844
        %v2863 = vpop.f32.mrf.mxu0
        %v2864 = vadd.f32 %v2841, %v2863
        %2865 = vdwg.mxu0
        %v2866 = vmul.f32 %v2864, 0.5
        %v2867 = vmul.f32 %v2864, 0.044715
        %v2868 = vmul.f32 %v2867, %v2864
        %v2869 = vmul.f32 %v2868, %v2864
        %v2870 = vadd.f32 %v2864, %v2869
        %v2871 = vmul.f32 %v2870, 0.7978846
        %v2872 = vtanh.pop %v2871
        %v2873 = vadd.f32 %v2872, 1.0
        %v2874 = vmul.f32 %v2866, %v2873
        %s2875 = scalar_lea.vmem %s17, 384
        %v2876 = vld [vmem:[%s2875] sm:$0xff]
        %v2877 = vld [vmem:[%s2875 + $0x8] sm:$0xff]
        %v2878 = vld [vmem:[%s2875 + $0x10] sm:$0xff]
        %v2879 = vld [vmem:[%s2875 + $0x18] sm:$0xff]
        %v2880 = vld [vmem:[%s2875 + $0x20] sm:$0xff]
        %v2881 = vld [vmem:[%s2875 + $0x28] sm:$0xff]
        %v2882 = vld [vmem:[%s2875 + $0x30] sm:$0xff]
        %v2883 = vld [vmem:[%s2875 + $0x38] sm:$0xff]
        %v2884 = vld [vmem:[%s2875 + $0x40] sm:$0xff]
        %v2885 = vld [vmem:[%s2875 + $0x48] sm:$0xff]
        %v2886 = vld [vmem:[%s2875 + $0x50] sm:$0xff]
        %v2887 = vld [vmem:[%s2875 + $0x58] sm:$0xff]
        %v2888 = vld [vmem:[%s2875 + $0x60] sm:$0xff]
        %v2889 = vld [vmem:[%s2875 + $0x68] sm:$0xff]
        %v2890 = vld [vmem:[%s2875 + $0x70] sm:$0xff]
        %v2891 = vld [vmem:[%s2875 + $0x78] sm:$0xff]
        %2892 = vmatpush.msra.mxu0 %v2891
        %2893 = vmatpush.msra.mxu0 %v2890
        %2894 = vmatpush.msra.mxu0 %v2889
        %2895 = vmatpush.msra.mxu0 %v2888
        %2896 = vmatpush.msra.mxu0 %v2887
        %2897 = vmatpush.msra.mxu0 %v2886
        %2898 = vmatpush.msra.mxu0 %v2885
        %2899 = vmatpush.msra.mxu0 %v2884
        %2900 = vmatpush.msra.mxu0 %v2883
        %2901 = vmatpush.msra.mxu0 %v2882
        %2902 = vmatpush.msra.mxu0 %v2881
        %2903 = vmatpush.msra.mxu0 %v2880
        %2904 = vmatpush.msra.mxu0 %v2879
        %2905 = vmatpush.msra.mxu0 %v2878
        %2906 = vmatpush.msra.mxu0 %v2877
        %2907 = vmatpush.msra.mxu0 %v2876
        %2908 = vmatmul.f32.gmra.mxu0 %v2874
        %v2909 = vpop.f32.mrf.mxu0
        %v2910 = vadd.f32 0.0, %v2909
        %2911 = vdwg.mxu0
        %v2912 = vadd.f32 %v2798, %v2910
        %s2913 = scalar_lea.vmem %s18, 3
        %v2914 = vld [vmem:[%s2913] sm:$0x1]
        %v2916 = vperm.slane %v2914, 0
        %v2918 = vadd.f32 %v2912, %v2916
        %v2919 = vld [vmem:[%s19] sm:$0x1]
        %v2920 = vld [vmem:[%s20] sm:$0x1]
        %v2921 = vsel %vm726, %v2918, 0.0
        %2922 = vadd.xlane.f32.xlu0 %v2921
        %v2923 = vpop.xlane.xlu0 %2922
        %v2924 = vmul.f32 %v2923, %v736
        %v2925 = vsub.f32 %v2918, %v2924
        %v2926 = vmul.f32 %v2925, %v2925
        %v2927 = vsel %vm726, %v2926, 0.0
        %2928 = vadd.xlane.f32.xlu0 %v2927
        %v2929 = vpop.xlane.xlu0 %2928
        %v2930 = vmul.f32 %v2929, %v736
        %v2931 = vadd.f32 %v2930, 1e-05
        %v2932 = vrsqrt.pop %v2931
        %v2933 = vmul.f32 %v2932, %v2931
        %v2934 = vmul.f32 %v2933, %v2932
        %v2935 = vmul.f32 0.5, %v2934
        %v2936 = vsub.f32 1.5, %v2935
        %v2937 = vmul.f32 %v2932, %v2936
        %vm2938 = vweird.f32 %v2931
        %vm2939 = vweird.f32 %v2932
        %vm2940 = vmor %vm2938, %vm2939
        %v2941 = vsel %vm2940, %v2932, %v2937
        %v2942 = vmul.f32 %v2925, %v2941
        %v2944 = vperm.slane %v2919, 0
        %v2946 = vmul.f32 %v2942, %v2944
        %v2948 = vperm.slane %v2920, 0
        %v2950 = vadd.f32 %v2946, %v2948
        %2951 = vst.msk [vmem:[%s658] sm:$0xff] %vm726, %v2950
        %s2952 = sand.u32 %s494, 1
        %s2953 = scalar_lea.sflag [#allocation3], %s2952
        %s2954 = sand.u32 %s494, 1
        %s2955 = smul.addr %s2954, 8
        %s2956 = scalar_lea.vmem [#allocation2], %s2955
        // Predicated region
        $region105: #{tpu_custom_call.1} parent=103 // pred_check
          %p2957 = pneg %p504
        $region106: #{tpu_custom_call.1} parent=103 // pred_check_branch
          %2959 = sbr.rel (%p2957) target = $region108
        $region107: #{tpu_custom_call.1} parent=103 // pred_region
          %2961 = vsyncadd %s2953, 0
          %s2962 = smul.addr %s35, 8
          %s2963 = scalar_lea.hbm %s21, %s2962
          %s2965 = sshll.u32 %s2956, 4
          %s2966 = int_to_ptr.vmem [resolvable:$true] %s2965
          %s2967 = sshll.u32 %s2963, 4
          %s2968 = int_to_ptr.hbm [resolvable:$true] %s2967
          %2970 = dma.vmem_to_hbm [thread:$0]  %s2966, 128, %s2968, %s2953
        $region108: #{tpu_custom_call.1} parent=103 // pred_fallthru
          _
      $region104: #{tpu_custom_call.1} parent=5 // pred_fallthru
        _
      %p2971 = scmp.le.s32.totalorder 2, %s30
      // Predicated region
      $region109: #{tpu_custom_call.1} parent=5 // pred_check
        %p2972 = pneg %p2971
      $region110: #{tpu_custom_call.1} parent=5 // pred_check_branch
        %2974 = sbr.rel (%p2972) target = $region112
      $region111: #{tpu_custom_call.1} parent=5 // pred_region
        %s2975 = ssub.s32 %s30, 2
        // Predicated region
        $region113: #{tpu_custom_call.1} parent=111 // pred_check
          %p2976 = pneg %p510
        $region114: #{tpu_custom_call.1} parent=111 // pred_check_branch
          %2978 = sbr.rel (%p2976) target = $region116
        $region115: #{tpu_custom_call.1} parent=111 // pred_region
          %s2979 = sand.u32 %s495, 1
          %s2980 = scalar_lea.sflag [#allocation3], %s2979
          %s2981 = sand.u32 %s495, 1
          %s2982 = smul.addr %s2981, 8
          %s2983 = scalar_lea.vmem [#allocation2], %s2982
          %2985 = dma.done %s2980, 128
        $region116: #{tpu_custom_call.1} parent=111 // pred_fallthru
          _
      $region112: #{tpu_custom_call.1} parent=5 // pred_fallthru
        _
    $region6: #{tpu_custom_call.1} parent=1 // loop_footer
      %s34 = sadd.s32 1, %s30
    $region7: #{tpu_custom_call.1} parent=1 // loop_footer_branch
      %29 = sbr.rel target = $region3
    $region8: #{tpu_custom_call.1} parent=1 // loop_exit
      _
    %2986 = vsyncpa [#allocation3], 1
    %s2987 = scalar_lea.sflag [#allocation3], 1
    %2988 = vsyncpa %s2987, 1

</llo_original>
